<compile_context>
chip_gen: v6e
topology: v6e:2x2x1
jax: 0.10.0
libtpu: 0.0.40
codegen_flags: <defaults>
</compile_context>

<pallas_src>
import functools

import jax
import jax.numpy as jnp
from jax import lax
from jax.experimental import pallas as pl
from jax.experimental.pallas import tpu as pltpu

EPS = 1e-5  # PyTorch GroupNorm default eps


def _silu(x):
    return x * jax.nn.sigmoid(x)


def _pick_row_tile(h):
    for th in (8, 4, 2, 1):
        if h % th == 0:
            return th
    return 1


def _pick_cout_tile(cout):
    # Prefer MXU-friendly 256/128-wide output tiles; fall back to full width.
    if cout % 256 == 0:
        return 256
    if cout % 128 == 0:
        return 128
    return cout


def _tile_moments(x2d):
    """x2d: (n, C) f32 -> (2, C) stacked [sum, centered M2] (Chan-combinable)."""
    n = x2d.shape[0]
    s = jnp.sum(x2d, axis=0, keepdims=True)
    mu = s * (1.0 / n)
    d = x2d - mu
    m2 = jnp.sum(d * d, axis=0, keepdims=True)
    return jnp.concatenate([s, m2], axis=0)


# ---------------------------------------------------------------------------
# Kernel 1: tiled GroupNorm statistics (per row-tile partial moments)
# ---------------------------------------------------------------------------
def _gn_stats_kernel(x_ref, o_ref, *, th, w):
    c = x_ref.shape[-1]
    x = x_ref[0].astype(jnp.float32).reshape(th * w, c)
    o_ref[0, 0] = _tile_moments(x)


def gn_stats(x_nhwc, th):
    b, h, w, c = x_nhwc.shape
    n_rt = h // th
    return pl.pallas_call(
        functools.partial(_gn_stats_kernel, th=th, w=w),
        out_shape=jax.ShapeDtypeStruct((b, n_rt, 2, c), jnp.float32),
        grid=(b, n_rt),
        in_specs=[pl.BlockSpec((1, th, w, c), lambda bi, ri: (bi, ri, 0, 0))],
        out_specs=pl.BlockSpec((1, 1, 2, c), lambda bi, ri: (bi, ri, 0, 0)),
        compiler_params=pltpu.CompilerParams(
            dimension_semantics=("parallel", "parallel")),
    )(x_nhwc)


# ---------------------------------------------------------------------------
# Plain-JAX glue: combine tile moments into the folded per-channel affine.
# ---------------------------------------------------------------------------
def _gn_scale_shift(stats, hw, gamma, beta, num_groups, t=None, eps=EPS):
    """stats: (B, T, 2, C) per-tile [sum, centered M2].  Returns (scale, shift)
    of shape (B, 1, C) f32 such that GN(x + t) == x * scale + shift.
    Chan's formula avoids the E[x^2]-mean^2 cancellation; the broadcast time
    embedding `t` is folded in analytically (M2 is shift-invariant)."""
    b, n_tiles, _, c = stats.shape
    g = num_groups
    cg = c // g
    n0 = float(hw // n_tiles)            # elements per tile per channel
    n_all = float(hw * cg)               # elements per (batch, group)

    t_c = (jnp.zeros((b, c), jnp.float32) if t is None
           else jnp.broadcast_to(t.astype(jnp.float32), (b, c)))

    s_t = stats[:, :, 0, :] + n0 * t_c[:, None, :]           # (b, T, c)
    m2_t = stats[:, :, 1, :]
    s_g = s_t.reshape(b, n_tiles, g, cg)
    s_sum = s_g.sum(axis=(1, 3))                             # (b, g)
    m2 = (m2_t.reshape(b, n_tiles, g, cg).sum(axis=(1, 3))
          + (s_g * s_g).sum(axis=(1, 3)) / n0
          - (s_sum * s_sum) / n_all)
    mean_g = s_sum / n_all
    var_g = jnp.maximum(m2 / n_all, 0.0)
    rstd_g = lax.rsqrt(var_g + eps)

    mean_c = jnp.repeat(mean_g, cg, axis=1)                  # (b, c)
    rstd_c = jnp.repeat(rstd_g, cg, axis=1)
    scale = rstd_c * gamma.astype(jnp.float32)[None, :]
    shift = (t_c - mean_c) * scale + beta.astype(jnp.float32)[None, :]
    return scale[:, None, :], shift[:, None, :]              # (b, 1, c)


# ---------------------------------------------------------------------------
# Kernel 2: fused GN-normalize + SiLU + 3x3 SAME conv (+ residual / stats)
# ---------------------------------------------------------------------------
def _shifted_inputs(cur_ref, top_ref, bot_ref, scale_ref, shift_ref, *, th, w):
    """Apply the folded GN affine + SiLU to the (th+2)-row input slab (halo
    rows zeroed at the image border, matching padding=1) and return the three
    column-shifted bf16 copies flattened to ((th+2)*w, cin), indexed by dx
    (input column = out_col + dx - 1).  Built once per tile so every per-tap
    slice in _conv_taps stays 8-sublane aligned."""
    cin = cur_ref.shape[-1]
    sc = scale_ref[...]                  # (1, 1, cin) f32
    sh = shift_ref[...]
    r = pl.program_id(2)                 # row-tile grid axis
    last = pl.num_programs(2) - 1

    def act(v):                          # GN affine + SiLU in f32
        v = v.astype(jnp.float32) * sc + sh
        return v * jax.nn.sigmoid(v)

    cur = act(cur_ref[0])                                        # (th, w, cin)
    top = act(top_ref[0]) * (r > 0).astype(jnp.float32)          # (1, w, cin)
    bot = act(bot_ref[0]) * (r < last).astype(jnp.float32)
    a = jnp.concatenate([top, cur, bot], axis=0)                 # (th+2, w, cin)

    zc = jnp.zeros((th + 2, 1, cin), jnp.float32)
    a_m = jnp.concatenate([zc, a[:, : w - 1, :]], axis=1)        # col -> col-1
    a_p = jnp.concatenate([a[:, 1:, :], zc], axis=1)             # col -> col+1

    m = (th + 2) * w
    bf = jnp.bfloat16
    return [a_m.astype(bf).reshape(m, cin),
            a.astype(bf).reshape(m, cin),
            a_p.astype(bf).reshape(m, cin)]


def _conv_taps(shifted, w_ref, *, th, w):
    """9 row-batched MXU matmuls (th*w, cin) x (cin, tn), f32 accumulation."""
    tn = w_ref.shape[-1]
    acc = jnp.zeros((th * w, tn), jnp.float32)
    for dy in range(3):
        lo = dy * w                      # aligned slice start (w % 8 == 0)
        for dx in range(3):
            patch = shifted[dx][lo:lo + th * w, :]
            acc = acc + jnp.dot(patch, w_ref[dy * 3 + dx],
                                preferred_element_type=jnp.float32)
    return acc


def _gn_conv3x3_stats_kernel(xc, xt, xb, sc, sh, wk, bk, o_ref, st_ref, *, th, w):
    shifted = _shifted_inputs(xc, xt, xb, sc, sh, th=th, w=w)
    acc = _conv_taps(shifted, wk, th=th, w=w) + bk[...]
    # Per-tile moments of this conv's own (f32) output -> feeds the next GN.
    st_ref[0, 0] = _tile_moments(acc)
    o_ref[0] = acc.reshape(th, w, acc.shape[-1]).astype(o_ref.dtype)


def _gn_conv3x3_res_proj_kernel(xc, xt, xb, sc, sh, wk, bk, xr, wr, o_ref, *, th, w):
    shifted = _shifted_inputs(xc, xt, xb, sc, sh, th=th, w=w)
    acc = _conv_taps(shifted, wk, th=th, w=w) + bk[...]
    res = xr[0].astype(jnp.bfloat16).reshape(th * w, xr.shape[-1])
    acc = acc + jnp.dot(res, wr[...], preferred_element_type=jnp.float32)
    o_ref[0] = acc.reshape(th, w, acc.shape[-1]).astype(o_ref.dtype)


def _gn_conv3x3_res_id_kernel(xc, xt, xb, sc, sh, wk, bk, xr, o_ref, *, th, w):
    shifted = _shifted_inputs(xc, xt, xb, sc, sh, th=th, w=w)
    acc = _conv_taps(shifted, wk, th=th, w=w) + bk[...]
    acc = acc + xr[0].astype(jnp.float32).reshape(th * w, acc.shape[-1])
    o_ref[0] = acc.reshape(th, w, acc.shape[-1]).astype(o_ref.dtype)


def gn_conv3x3(x, scale, shift, w9, bias, *, th, tn, out_dtype,
               residual=None, res_w=None, emit_stats=False):
    """Fused (x*scale + shift -> SiLU) + 3x3 SAME conv.

    x        : (B, H, W, Cin)  raw (un-normalized) input, any float dtype
    scale    : (B, 1, Cin) f32 folded GroupNorm scale (rstd * gamma)
    shift    : (B, 1, Cin) f32 folded GroupNorm shift (incl. time embedding)
    w9       : (9, Cin, Cout) bf16 taps ordered dy*3+dx
    bias     : (1, Cout) f32 (residual bias may be folded in by the caller)
    residual : optional (B,H,W,Cr) raw residual input (identity if res_w None)
    emit_stats: also return (B, n_rt, 2, Cout) per-tile moments of the output
    """
    b, h, w, cin = x.shape
    cout = w9.shape[-1]
    n_rt = h // th
    n_ct = cout // tn
    grid = (b, n_ct, n_rt)   # weights stay resident across the inner row axis

    x_cur = pl.BlockSpec((1, th, w, cin), lambda bi, ni, ri: (bi, ri, 0, 0))
    x_top = pl.BlockSpec(
        (1, 1, w, cin),
        lambda bi, ni, ri: (bi, jnp.maximum(ri * th - 1, 0), 0, 0))
    x_bot = pl.BlockSpec(
        (1, 1, w, cin),
        lambda bi, ni, ri: (bi, jnp.minimum(ri * th + th, h - 1), 0, 0))
    ss_spec = pl.BlockSpec((1, 1, cin), lambda bi, ni, ri: (bi, 0, 0))
    w_spec = pl.BlockSpec((9, cin, tn), lambda bi, ni, ri: (0, 0, ni))
    b_spec = pl.BlockSpec((1, tn), lambda bi, ni, ri: (0, ni))
    o_spec = pl.BlockSpec((1, th, w, tn), lambda bi, ni, ri: (bi, ri, 0, ni))

    in_specs = [x_cur, x_top, x_bot, ss_spec, ss_spec, w_spec, b_spec]
    args = [x, x, x, scale, shift, w9, bias]

    if emit_stats:
        kernel = functools.partial(_gn_conv3x3_stats_kernel, th=th, w=w)
        out_shape = (jax.ShapeDtypeStruct((b, h, w, cout), out_dtype),
                     jax.ShapeDtypeStruct((b, n_rt, 2, cout), jnp.float32))
        out_specs = (o_spec,
                     pl.BlockSpec((1, 1, 2, tn),
                                  lambda bi, ni, ri: (bi, ri, 0, ni)))
    elif res_w is not None:
        cr = residual.shape[-1]
        in_specs += [pl.BlockSpec((1, th, w, cr),
                                  lambda bi, ni, ri: (bi, ri, 0, 0)),
                     pl.BlockSpec((cr, tn), lambda bi, ni, ri: (0, ni))]
        args += [residual, res_w]
        kernel = functools.partial(_gn_conv3x3_res_proj_kernel, th=th, w=w)
        out_shape = jax.ShapeDtypeStruct((b, h, w, cout), out_dtype)
        out_specs = o_spec
    elif residual is not None:
        in_specs += [pl.BlockSpec((1, th, w, tn),
                                  lambda bi, ni, ri: (bi, ri, 0, ni))]
        args += [residual]
        kernel = functools.partial(_gn_conv3x3_res_id_kernel, th=th, w=w)
        out_shape = jax.ShapeDtypeStruct((b, h, w, cout), out_dtype)
        out_specs = o_spec
    else:
        raise ValueError("need emit_stats or a residual input")

    return pl.pallas_call(
        kernel,
        out_shape=out_shape,
        grid=grid,
        in_specs=in_specs,
        out_specs=out_specs,
        compiler_params=pltpu.CompilerParams(
            dimension_semantics=("parallel", "parallel", "parallel")),
    )(*args)


# ---------------------------------------------------------------------------
# Full UNET_ResidualBlock forward (wrapper: NCHW in / NCHW out)
# ---------------------------------------------------------------------------
def unet_residual_block(feature_nchw, time, params, num_groups=32):
    f32 = jnp.float32
    bf16 = jnp.bfloat16
    b, cin, h, w = feature_nchw.shape
    cout = params["conv_feature_w"].shape[0]
    hw = h * w
    th = _pick_row_tile(h)

    x = jnp.transpose(feature_nchw.astype(f32), (0, 2, 3, 1))      # NHWC

    # GroupNorm(feature): tiled stats pass, then the normalize+SiLU is fused
    # into conv_feature below.
    st1 = gn_stats(x, th)
    scale1, shift1 = _gn_scale_shift(st1, hw, params["gn1_w"],
                                     params["gn1_b"], num_groups)

    # Time embedding: SiLU + Linear is an M=1 matmul -> plain JAX, no kernel.
    t = _silu(time.astype(f32)) @ params["lin_w"].astype(f32).T \
        + params["lin_b"].astype(f32)                               # (1, cout)

    # conv_feature with fused GN1 normalize + SiLU; also emits the per-tile
    # moments of its own output so GroupNorm(merged) needs no extra read.
    w1 = jnp.transpose(params["conv_feature_w"], (2, 3, 1, 0)) \
            .reshape(9, cin, cout).astype(bf16)
    b1 = params["conv_feature_b"].astype(f32).reshape(1, cout)
    feat, st2 = gn_conv3x3(x, scale1, shift1, w1, b1, th=th,
                           tn=_pick_cout_tile(cout), out_dtype=bf16,
                           emit_stats=True)

    # GroupNorm(merged): the broadcast time add is folded analytically into
    # the per-channel scale/shift (stats are shift-adjusted, M2 is invariant).
    scale2, shift2 = _gn_scale_shift(st2, hw, params["gn2_w"],
                                     params["gn2_b"], num_groups, t=t)

    # conv_merged with fused GN2 + SiLU and fused residual path.
    w2 = jnp.transpose(params["conv_merged_w"], (2, 3, 1, 0)) \
            .reshape(9, cout, cout).astype(bf16)
    if cin == cout:
        b2 = params["conv_merged_b"].astype(f32).reshape(1, cout)
        out = gn_conv3x3(feat, scale2, shift2, w2, b2, th=th,
                         tn=_pick_cout_tile(cout), out_dtype=f32,
                         residual=x)
    else:
        wres = params["res_w"].reshape(cout, cin).T.astype(bf16)
        b2 = (params["conv_merged_b"] + params["res_b"]).astype(f32) \
                .reshape(1, cout)
        out = gn_conv3x3(feat, scale2, shift2, w2, b2, th=th,
                         tn=_pick_cout_tile(cout), out_dtype=f32,
                         residual=x, res_w=wres)
    return jnp.transpose(out, (0, 3, 1, 2))                         # NCHW


# ---------------------------------------------------------------------------
# Pure-JAX reference (mirrors the PyTorch module, NCHW, f32)
# ---------------------------------------------------------------------------
def _ref_group_norm(x, gamma, beta, g, eps=EPS):
    b, c, h, w = x.shape
    xg = x.reshape(b, g, -1)
    mean = xg.mean(axis=-1, keepdims=True)
    var = xg.var(axis=-1, keepdims=True)
    xn = ((xg - mean) / jnp.sqrt(var + eps)).reshape(b, c, h, w)
    return xn * gamma[None, :, None, None] + beta[None, :, None, None]


def _ref_conv(x, w, bias, padding):
    out = lax.conv_general_dilated(x, w, (1, 1), [(padding, padding)] * 2,
                                   dimension_numbers=("NCHW", "OIHW", "NCHW"))
    return out + bias[None, :, None, None]


def ref_forward(feature, time, p):
    h = _silu(_ref_group_norm(feature, p["gn1_w"], p["gn1_b"], 32))
    h = _ref_conv(h, p["conv_feature_w"], p["conv_feature_b"], 1)
    t = _silu(time) @ p["lin_w"].T + p["lin_b"]
    merged = h + t[:, :, None, None]
    merged = _silu(_ref_group_norm(merged, p["gn2_w"], p["gn2_b"], 32))
    merged = _ref_conv(merged, p["conv_merged_w"], p["conv_merged_b"], 1)
    res = _ref_conv(feature, p["res_w"], p["res_b"], 0) if "res_w" in p else feature
    return merged + res


def _make_params(key, cin, cout, n_time, with_res):
    ks = jax.random.split(key, 12)
    p = {
        "gn1_w": 1.0 + 0.1 * jax.random.normal(ks[0], (cin,), jnp.float32),
        "gn1_b": 0.1 * jax.random.normal(ks[1], (cin,), jnp.float32),
        "conv_feature_w": 0.05 * jax.random.normal(ks[2], (cout, cin, 3, 3), jnp.float32),
        "conv_feature_b": 0.05 * jax.random.normal(ks[3], (cout,), jnp.float32),
        "lin_w": 0.05 * jax.random.normal(ks[4], (cout, n_time), jnp.float32),
        "lin_b": 0.05 * jax.random.normal(ks[5], (cout,), jnp.float32),
        "gn2_w": 1.0 + 0.1 * jax.random.normal(ks[6], (cout,), jnp.float32),
        "gn2_b": 0.1 * jax.random.normal(ks[7], (cout,), jnp.float32),
        "conv_merged_w": 0.05 * jax.random.normal(ks[8], (cout, cout, 3, 3), jnp.float32),
        "conv_merged_b": 0.05 * jax.random.normal(ks[9], (cout,), jnp.float32),
    }
    if with_res:
        p["res_w"] = 0.05 * jax.random.normal(ks[10], (cout, cin, 1, 1), jnp.float32)
        p["res_b"] = 0.05 * jax.random.normal(ks[11], (cout,), jnp.float32)
    return p


if __name__ == "__main__":
    key = jax.random.PRNGKey(0)
    n_time = 128
    fwd = jax.jit(unet_residual_block)

    # Case 1: in_channels != out_channels (fused 1x1-conv residual path).
    # Case 2: in_channels == out_channels (identity residual path).
    for (b, cin, cout, h, w) in ((2, 32, 64, 16, 16), (2, 32, 32, 16, 16)):
        kp, kf, kt = jax.random.split(jax.random.fold_in(key, cout), 3)
        params = _make_params(kp, cin, cout, n_time, with_res=(cin != cout))
        feature = jax.random.normal(kf, (b, cin, h, w), jnp.float32)   # NCHW
        time = jax.random.normal(kt, (1, n_time), jnp.float32)

        out = jax.block_until_ready(fwd(feature, time, params))
        ref = jax.block_until_ready(ref_forward(feature, time, params))

        assert out.shape == (b, cout, h, w), out.shape
        err = jnp.abs(out - ref)
        max_err = float(jnp.max(err))
        mean_err = float(jnp.mean(err))
        # bf16 MXU operands with f32 accumulation vs an f32 reference:
        # expected worst-case ~1e-2 (tightened from the previous 1e-1).
        assert max_err < 3e-2, f"max abs err {max_err}"
        assert mean_err < 6e-3, f"mean abs err {mean_err}"

    print("KERNEL_OK")
</pallas_src>

<mosaic_0001>
module attributes {stable_mosaic.version = 11 : i64} {
  func.func @_gn_stats_kernel(%arg0: i32, %arg1: i32, %arg2: memref<1x8x16x32xf32, #tpu.memory_space<vmem>>, %arg3: memref<1x1x2x32xf32, #tpu.memory_space<vmem>>) attributes {dimension_semantics = [#tpu.dimension_semantics<parallel>, #tpu.dimension_semantics<parallel>], iteration_bounds = array<i64: 2, 2>, scalar_prefetch = 0 : i64, scratch_operands = 0 : i64, tpu.core_type = #tpu.core_type<tc>, window_params = [{transform_indices = @transform_0, window_bounds = array<i64: 1, 8, 16, 32>}, {transform_indices = @transform_1, window_bounds = array<i64: 1, 1, 2, 32>}]} {
    %c0 = arith.constant 0 : index
    %c0_0 = arith.constant 0 : index
    %c0_1 = arith.constant 0 : index
    %c0_2 = arith.constant 0 : index
    %0 = vector.load %arg2[%c0, %c0_0, %c0_1, %c0_2] : memref<1x8x16x32xf32, #tpu.memory_space<vmem>>, vector<1x8x16x32xf32>
    %1 = vector.shape_cast %0 : vector<1x8x16x32xf32> to vector<8x16x32xf32>
    %2 = vector.shape_cast %1 : vector<8x16x32xf32> to vector<128x32xf32>
    %cst = arith.constant dense<0.000000e+00> : vector<32xf32>
    %3 = vector.multi_reduction <add>, %2, %cst [0] : vector<128x32xf32> to vector<32xf32>
    %4 = vector.shape_cast %3 : vector<32xf32> to vector<1x32xf32>
    %cst_3 = arith.constant 7.812500e-03 : f32
    %5 = vector.broadcast %cst_3 : f32 to vector<1x32xf32>
    %6 = arith.mulf %4, %5 : vector<1x32xf32>
    %7 = vector.broadcast %6 : vector<1x32xf32> to vector<128x32xf32>
    %8 = arith.subf %2, %7 : vector<128x32xf32>
    %9 = arith.mulf %8, %8 : vector<128x32xf32>
    %cst_4 = arith.constant dense<0.000000e+00> : vector<32xf32>
    %10 = vector.multi_reduction <add>, %9, %cst_4 [0] : vector<128x32xf32> to vector<32xf32>
    %11 = vector.shape_cast %10 : vector<32xf32> to vector<1x32xf32>
    %12 = tpu.concatenate %4, %11 in 0 : vector<1x32xf32>, vector<1x32xf32> -> vector<2x32xf32>
    %c0_5 = arith.constant 0 : index
    %c0_6 = arith.constant 0 : index
    %c0_7 = arith.constant 0 : index
    %c0_8 = arith.constant 0 : index
    %13 = vector.load %arg3[%c0_5, %c0_6, %c0_7, %c0_8] : memref<1x1x2x32xf32, #tpu.memory_space<vmem>>, vector<1x1x2x32xf32>
    %14 = vector.shape_cast %13 : vector<1x1x2x32xf32> to vector<2x32xf32>
    %15 = vector.shape_cast %12 : vector<2x32xf32> to vector<1x1x2x32xf32>
    tpu.vector_store %arg3[%c0_5, %c0_6, %c0_7, %c0_8], %15 {strides = array<i32>} : memref<1x1x2x32xf32, #tpu.memory_space<vmem>>, vector<1x1x2x32xf32>,
    return
  }
  func.func @transform_0(%arg0: i32, %arg1: i32) -> (i32, i32, i32, i32) {
    %c0_i32 = arith.constant 0 : i32
    %c0_i32_0 = arith.constant 0 : i32
    %c0_i32_1 = arith.constant 0 : i32
    return %arg0, %arg1, %c0_i32, %c0_i32_0 : i32, i32, i32, i32
  }
  func.func @transform_1(%arg0: i32, %arg1: i32) -> (i32, i32, i32, i32) {
    %c0_i32 = arith.constant 0 : i32
    %c0_i32_0 = arith.constant 0 : i32
    %c0_i32_1 = arith.constant 0 : i32
    return %arg0, %arg1, %c0_i32, %c0_i32_0 : i32, i32, i32, i32
  }
}

module attributes {stable_mosaic.version = 11 : i64} {
  func.func @_gn_conv3x3_stats_kernel(%arg0: i32, %arg1: i32, %arg2: i32, %arg3: memref<1x8x16x32xf32, #tpu.memory_space<vmem>>, %arg4: memref<1x1x16x32xf32, #tpu.memory_space<vmem>>, %arg5: memref<1x1x16x32xf32, #tpu.memory_space<vmem>>, %arg6: memref<1x1x32xf32, #tpu.memory_space<vmem>>, %arg7: memref<1x1x32xf32, #tpu.memory_space<vmem>>, %arg8: memref<9x32x64xbf16, #tpu.memory_space<vmem>>, %arg9: memref<1x64xf32, #tpu.memory_space<vmem>>, %arg10: memref<1x8x16x64xbf16, #tpu.memory_space<vmem>>, %arg11: memref<1x1x2x64xf32, #tpu.memory_space<vmem>>) attributes {dimension_semantics = [#tpu.dimension_semantics<parallel>, #tpu.dimension_semantics<parallel>, #tpu.dimension_semantics<parallel>], iteration_bounds = array<i64: 2, 1, 2>, scalar_prefetch = 0 : i64, scratch_operands = 0 : i64, tpu.core_type = #tpu.core_type<tc>, window_params = [{transform_indices = @transform_0, window_bounds = array<i64: 1, 8, 16, 32>}, {transform_indices = @transform_1, window_bounds = array<i64: 1, 1, 16, 32>}, {transform_indices = @transform_2, window_bounds = array<i64: 1, 1, 16, 32>}, {transform_indices = @transform_3, window_bounds = array<i64: 1, 1, 32>}, {transform_indices = @transform_4, window_bounds = array<i64: 1, 1, 32>}, {transform_indices = @transform_5, window_bounds = array<i64: 9, 32, 64>}, {transform_indices = @transform_6, window_bounds = array<i64: 1, 64>}, {transform_indices = @transform_7, window_bounds = array<i64: 1, 8, 16, 64>}, {transform_indices = @transform_8, window_bounds = array<i64: 1, 1, 2, 64>}]} {
    %c0 = arith.constant 0 : index
    %c0_0 = arith.constant 0 : index
    %c0_1 = arith.constant 0 : index
    %0 = vector.load %arg6[%c0, %c0_0, %c0_1] : memref<1x1x32xf32, #tpu.memory_space<vmem>>, vector<1x1x32xf32>
    %c0_2 = arith.constant 0 : index
    %c0_3 = arith.constant 0 : index
    %c0_4 = arith.constant 0 : index
    %1 = vector.load %arg7[%c0_2, %c0_3, %c0_4] : memref<1x1x32xf32, #tpu.memory_space<vmem>>, vector<1x1x32xf32>
    %c0_5 = arith.constant 0 : index
    %c0_6 = arith.constant 0 : index
    %c0_7 = arith.constant 0 : index
    %c0_8 = arith.constant 0 : index
    %2 = vector.load %arg3[%c0_5, %c0_6, %c0_7, %c0_8] : memref<1x8x16x32xf32, #tpu.memory_space<vmem>>, vector<1x8x16x32xf32>
    %3 = vector.shape_cast %2 : vector<1x8x16x32xf32> to vector<8x16x32xf32>
    %4 = vector.broadcast %0 : vector<1x1x32xf32> to vector<8x16x32xf32>
    %5 = arith.mulf %3, %4 : vector<8x16x32xf32>
    %6 = vector.broadcast %1 : vector<1x1x32xf32> to vector<8x16x32xf32>
    %7 = arith.addf %5, %6 : vector<8x16x32xf32>
    %8 = arith.negf %7 : vector<8x16x32xf32>
    %9 = math.exp %8 : vector<8x16x32xf32>
    %cst = arith.constant 1.000000e+00 : f32
    %10 = vector.broadcast %cst : f32 to vector<8x16x32xf32>
    %11 = arith.addf %10, %9 : vector<8x16x32xf32>
    %12 = arith.divf %10, %11 : vector<8x16x32xf32>
    %13 = arith.mulf %7, %12 : vector<8x16x32xf32>
    %c0_9 = arith.constant 0 : index
    %c0_10 = arith.constant 0 : index
    %c0_11 = arith.constant 0 : index
    %c0_12 = arith.constant 0 : index
    %14 = vector.load %arg4[%c0_9, %c0_10, %c0_11, %c0_12] : memref<1x1x16x32xf32, #tpu.memory_space<vmem>>, vector<1x1x16x32xf32>
    %15 = vector.shape_cast %14 : vector<1x1x16x32xf32> to vector<1x16x32xf32>
    %16 = vector.broadcast %0 : vector<1x1x32xf32> to vector<1x16x32xf32>
    %17 = arith.mulf %15, %16 : vector<1x16x32xf32>
    %18 = vector.broadcast %1 : vector<1x1x32xf32> to vector<1x16x32xf32>
    %19 = arith.addf %17, %18 : vector<1x16x32xf32>
    %20 = arith.negf %19 : vector<1x16x32xf32>
    %21 = math.exp %20 : vector<1x16x32xf32>
    %cst_13 = arith.constant 1.000000e+00 : f32
    %22 = vector.broadcast %cst_13 : f32 to vector<1x16x32xf32>
    %23 = arith.addf %22, %21 : vector<1x16x32xf32>
    %24 = arith.divf %22, %23 : vector<1x16x32xf32>
    %25 = arith.mulf %19, %24 : vector<1x16x32xf32>
    %c0_i32 = arith.constant 0 : i32
    %26 = arith.cmpi sgt, %arg2, %c0_i32 : i32
    %27 = arith.extui %26 : i1 to i32
    %28 = arith.sitofp %27 : i32 to f32
    %29 = vector.broadcast %28 : f32 to vector<1x16x32xf32>
    %30 = arith.mulf %25, %29 : vector<1x16x32xf32>
    %c0_14 = arith.constant 0 : index
    %c0_15 = arith.constant 0 : index
    %c0_16 = arith.constant 0 : index
    %c0_17 = arith.constant 0 : index
    %31 = vector.load %arg5[%c0_14, %c0_15, %c0_16, %c0_17] : memref<1x1x16x32xf32, #tpu.memory_space<vmem>>, vector<1x1x16x32xf32>
    %32 = vector.shape_cast %31 : vector<1x1x16x32xf32> to vector<1x16x32xf32>
    %33 = vector.broadcast %0 : vector<1x1x32xf32> to vector<1x16x32xf32>
    %34 = arith.mulf %32, %33 : vector<1x16x32xf32>
    %35 = vector.broadcast %1 : vector<1x1x32xf32> to vector<1x16x32xf32>
    %36 = arith.addf %34, %35 : vector<1x16x32xf32>
    %37 = arith.negf %36 : vector<1x16x32xf32>
    %38 = math.exp %37 : vector<1x16x32xf32>
    %cst_18 = arith.constant 1.000000e+00 : f32
    %39 = vector.broadcast %cst_18 : f32 to vector<1x16x32xf32>
    %40 = arith.addf %39, %38 : vector<1x16x32xf32>
    %41 = arith.divf %39, %40 : vector<1x16x32xf32>
    %42 = arith.mulf %36, %41 : vector<1x16x32xf32>
    %c1_i32 = arith.constant 1 : i32
    %43 = arith.cmpi slt, %arg2, %c1_i32 : i32
    %44 = arith.extui %43 : i1 to i32
    %45 = arith.sitofp %44 : i32 to f32
    %46 = vector.broadcast %45 : f32 to vector<1x16x32xf32>
    %47 = arith.mulf %42, %46 : vector<1x16x32xf32>
    %48 = tpu.concatenate %30, %13, %47 in 0 : vector<1x16x32xf32>, vector<8x16x32xf32>, vector<1x16x32xf32> -> vector<10x16x32xf32>
    %cst_19 = arith.constant 0.000000e+00 : f32
    %49 = vector.broadcast %cst_19 : f32 to vector<10x1x32xf32>
    %50 = vector.extract_strided_slice %48 {offsets = [0, 0, 0], sizes = [10, 15, 32], strides = [1, 1, 1]} : vector<10x16x32xf32> to vector<10x15x32xf32>
    %51 = tpu.concatenate %49, %50 in 1 : vector<10x1x32xf32>, vector<10x15x32xf32> -> vector<10x16x32xf32>
    %52 = vector.extract_strided_slice %48 {offsets = [0, 1, 0], sizes = [10, 15, 32], strides = [1, 1, 1]} : vector<10x16x32xf32> to vector<10x15x32xf32>
    %53 = tpu.concatenate %52, %49 in 1 : vector<10x15x32xf32>, vector<10x1x32xf32> -> vector<10x16x32xf32>
    %54 = arith.truncf %51 : vector<10x16x32xf32> to vector<10x16x32xbf16>
    %55 = vector.shape_cast %54 : vector<10x16x32xbf16> to vector<160x32xbf16>
    %56 = arith.truncf %48 : vector<10x16x32xf32> to vector<10x16x32xbf16>
    %57 = vector.shape_cast %56 : vector<10x16x32xbf16> to vector<160x32xbf16>
    %58 = arith.truncf %53 : vector<10x16x32xf32> to vector<10x16x32xbf16>
    %59 = vector.shape_cast %58 : vector<10x16x32xbf16> to vector<160x32xbf16>
    %cst_20 = arith.constant 0.000000e+00 : f32
    %60 = vector.broadcast %cst_20 : f32 to vector<128x64xf32>
    %61 = vector.extract_strided_slice %55 {offsets = [0, 0], sizes = [128, 32], strides = [1, 1]} : vector<160x32xbf16> to vector<128x32xbf16>
    %c0_21 = arith.constant 0 : index
    %c0_22 = arith.constant 0 : index
    %c0_23 = arith.constant 0 : index
    %62 = vector.load %arg8[%c0_21, %c0_22, %c0_23] : memref<9x32x64xbf16, #tpu.memory_space<vmem>>, vector<1x32x64xbf16>
    %63 = vector.shape_cast %62 : vector<1x32x64xbf16> to vector<32x64xbf16>
    %cst_24 = arith.constant dense<0.000000e+00> : vector<128x64xf32>
    %64 = tpu.matmul %61, %63, %cst_24 {dimension_numbers = #tpu.dot_dimension_numbers<[1], [0], [0], [1], [0, 0, 1, 1], [], []>} : vector<128x32xbf16>, vector<32x64xbf16>, vector<128x64xf32> -> vector<128x64xf32>
    %65 = arith.addf %60, %64 : vector<128x64xf32>
    %66 = vector.extract_strided_slice %57 {offsets = [0, 0], sizes = [128, 32], strides = [1, 1]} : vector<160x32xbf16> to vector<128x32xbf16>
    %c1 = arith.constant 1 : index
    %c0_25 = arith.constant 0 : index
    %c0_26 = arith.constant 0 : index
    %67 = vector.load %arg8[%c1, %c0_25, %c0_26] : memref<9x32x64xbf16, #tpu.memory_space<vmem>>, vector<1x32x64xbf16>
    %68 = vector.shape_cast %67 : vector<1x32x64xbf16> to vector<32x64xbf16>
    %cst_27 = arith.constant dense<0.000000e+00> : vector<128x64xf32>
    %69 = tpu.matmul %66, %68, %cst_27 {dimension_numbers = #tpu.dot_dimension_numbers<[1], [0], [0], [1], [0, 0, 1, 1], [], []>} : vector<128x32xbf16>, vector<32x64xbf16>, vector<128x64xf32> -> vector<128x64xf32>
    %70 = arith.addf %65, %69 : vector<128x64xf32>
    %71 = vector.extract_strided_slice %59 {offsets = [0, 0], sizes = [128, 32], strides = [1, 1]} : vector<160x32xbf16> to vector<128x32xbf16>
    %c2 = arith.constant 2 : index
    %c0_28 = arith.constant 0 : index
    %c0_29 = arith.constant 0 : index
    %72 = vector.load %arg8[%c2, %c0_28, %c0_29] : memref<9x32x64xbf16, #tpu.memory_space<vmem>>, vector<1x32x64xbf16>
    %73 = vector.shape_cast %72 : vector<1x32x64xbf16> to vector<32x64xbf16>
    %cst_30 = arith.constant dense<0.000000e+00> : vector<128x64xf32>
    %74 = tpu.matmul %71, %73, %cst_30 {dimension_numbers = #tpu.dot_dimension_numbers<[1], [0], [0], [1], [0, 0, 1, 1], [], []>} : vector<128x32xbf16>, vector<32x64xbf16>, vector<128x64xf32> -> vector<128x64xf32>
    %75 = arith.addf %70, %74 : vector<128x64xf32>
    %76 = vector.extract_strided_slice %55 {offsets = [16, 0], sizes = [128, 32], strides = [1, 1]} : vector<160x32xbf16> to vector<128x32xbf16>
    %c3 = arith.constant 3 : index
    %c0_31 = arith.constant 0 : index
    %c0_32 = arith.constant 0 : index
    %77 = vector.load %arg8[%c3, %c0_31, %c0_32] : memref<9x32x64xbf16, #tpu.memory_space<vmem>>, vector<1x32x64xbf16>
    %78 = vector.shape_cast %77 : vector<1x32x64xbf16> to vector<32x64xbf16>
    %cst_33 = arith.constant dense<0.000000e+00> : vector<128x64xf32>
    %79 = tpu.matmul %76, %78, %cst_33 {dimension_numbers = #tpu.dot_dimension_numbers<[1], [0], [0], [1], [0, 0, 1, 1], [], []>} : vector<128x32xbf16>, vector<32x64xbf16>, vector<128x64xf32> -> vector<128x64xf32>
    %80 = arith.addf %75, %79 : vector<128x64xf32>
    %81 = vector.extract_strided_slice %57 {offsets = [16, 0], sizes = [128, 32], strides = [1, 1]} : vector<160x32xbf16> to vector<128x32xbf16>
    %c4 = arith.constant 4 : index
    %c0_34 = arith.constant 0 : index
    %c0_35 = arith.constant 0 : index
    %82 = vector.load %arg8[%c4, %c0_34, %c0_35] : memref<9x32x64xbf16, #tpu.memory_space<vmem>>, vector<1x32x64xbf16>
    %83 = vector.shape_cast %82 : vector<1x32x64xbf16> to vector<32x64xbf16>
    %cst_36 = arith.constant dense<0.000000e+00> : vector<128x64xf32>
    %84 = tpu.matmul %81, %83, %cst_36 {dimension_numbers = #tpu.dot_dimension_numbers<[1], [0], [0], [1], [0, 0, 1, 1], [], []>} : vector<128x32xbf16>, vector<32x64xbf16>, vector<128x64xf32> -> vector<128x64xf32>
    %85 = arith.addf %80, %84 : vector<128x64xf32>
    %86 = vector.extract_strided_slice %59 {offsets = [16, 0], sizes = [128, 32], strides = [1, 1]} : vector<160x32xbf16> to vector<128x32xbf16>
    %c5 = arith.constant 5 : index
    %c0_37 = arith.constant 0 : index
    %c0_38 = arith.constant 0 : index
    %87 = vector.load %arg8[%c5, %c0_37, %c0_38] : memref<9x32x64xbf16, #tpu.memory_space<vmem>>, vector<1x32x64xbf16>
    %88 = vector.shape_cast %87 : vector<1x32x64xbf16> to vector<32x64xbf16>
    %cst_39 = arith.constant dense<0.000000e+00> : vector<128x64xf32>
    %89 = tpu.matmul %86, %88, %cst_39 {dimension_numbers = #tpu.dot_dimension_numbers<[1], [0], [0], [1], [0, 0, 1, 1], [], []>} : vector<128x32xbf16>, vector<32x64xbf16>, vector<128x64xf32> -> vector<128x64xf32>
    %90 = arith.addf %85, %89 : vector<128x64xf32>
    %91 = vector.extract_strided_slice %55 {offsets = [32, 0], sizes = [128, 32], strides = [1, 1]} : vector<160x32xbf16> to vector<128x32xbf16>
    %c6 = arith.constant 6 : index
    %c0_40 = arith.constant 0 : index
    %c0_41 = arith.constant 0 : index
    %92 = vector.load %arg8[%c6, %c0_40, %c0_41] : memref<9x32x64xbf16, #tpu.memory_space<vmem>>, vector<1x32x64xbf16>
    %93 = vector.shape_cast %92 : vector<1x32x64xbf16> to vector<32x64xbf16>
    %cst_42 = arith.constant dense<0.000000e+00> : vector<128x64xf32>
    %94 = tpu.matmul %91, %93, %cst_42 {dimension_numbers = #tpu.dot_dimension_numbers<[1], [0], [0], [1], [0, 0, 1, 1], [], []>} : vector<128x32xbf16>, vector<32x64xbf16>, vector<128x64xf32> -> vector<128x64xf32>
    %95 = arith.addf %90, %94 : vector<128x64xf32>
    %96 = vector.extract_strided_slice %57 {offsets = [32, 0], sizes = [128, 32], strides = [1, 1]} : vector<160x32xbf16> to vector<128x32xbf16>
    %c7 = arith.constant 7 : index
    %c0_43 = arith.constant 0 : index
    %c0_44 = arith.constant 0 : index
    %97 = vector.load %arg8[%c7, %c0_43, %c0_44] : memref<9x32x64xbf16, #tpu.memory_space<vmem>>, vector<1x32x64xbf16>
    %98 = vector.shape_cast %97 : vector<1x32x64xbf16> to vector<32x64xbf16>
    %cst_45 = arith.constant dense<0.000000e+00> : vector<128x64xf32>
    %99 = tpu.matmul %96, %98, %cst_45 {dimension_numbers = #tpu.dot_dimension_numbers<[1], [0], [0], [1], [0, 0, 1, 1], [], []>} : vector<128x32xbf16>, vector<32x64xbf16>, vector<128x64xf32> -> vector<128x64xf32>
    %100 = arith.addf %95, %99 : vector<128x64xf32>
    %101 = vector.extract_strided_slice %59 {offsets = [32, 0], sizes = [128, 32], strides = [1, 1]} : vector<160x32xbf16> to vector<128x32xbf16>
    %c8 = arith.constant 8 : index
    %c0_46 = arith.constant 0 : index
    %c0_47 = arith.constant 0 : index
    %102 = vector.load %arg8[%c8, %c0_46, %c0_47] : memref<9x32x64xbf16, #tpu.memory_space<vmem>>, vector<1x32x64xbf16>
    %103 = vector.shape_cast %102 : vector<1x32x64xbf16> to vector<32x64xbf16>
    %cst_48 = arith.constant dense<0.000000e+00> : vector<128x64xf32>
    %104 = tpu.matmul %101, %103, %cst_48 {dimension_numbers = #tpu.dot_dimension_numbers<[1], [0], [0], [1], [0, 0, 1, 1], [], []>} : vector<128x32xbf16>, vector<32x64xbf16>, vector<128x64xf32> -> vector<128x64xf32>
    %105 = arith.addf %100, %104 : vector<128x64xf32>
    %c0_49 = arith.constant 0 : index
    %c0_50 = arith.constant 0 : index
    %106 = vector.load %arg9[%c0_49, %c0_50] : memref<1x64xf32, #tpu.memory_space<vmem>>, vector<1x64xf32>
    %107 = vector.broadcast %106 : vector<1x64xf32> to vector<128x64xf32>
    %108 = arith.addf %105, %107 : vector<128x64xf32>
    %cst_51 = arith.constant dense<0.000000e+00> : vector<64xf32>
    %109 = vector.multi_reduction <add>, %108, %cst_51 [0] : vector<128x64xf32> to vector<64xf32>
    %110 = vector.shape_cast %109 : vector<64xf32> to vector<1x64xf32>
    %cst_52 = arith.constant 7.812500e-03 : f32
    %111 = vector.broadcast %cst_52 : f32 to vector<1x64xf32>
    %112 = arith.mulf %110, %111 : vector<1x64xf32>
    %113 = vector.broadcast %112 : vector<1x64xf32> to vector<128x64xf32>
    %114 = arith.subf %108, %113 : vector<128x64xf32>
    %115 = arith.mulf %114, %114 : vector<128x64xf32>
    %cst_53 = arith.constant dense<0.000000e+00> : vector<64xf32>
    %116 = vector.multi_reduction <add>, %115, %cst_53 [0] : vector<128x64xf32> to vector<64xf32>
    %117 = vector.shape_cast %116 : vector<64xf32> to vector<1x64xf32>
    %118 = tpu.concatenate %110, %117 in 0 : vector<1x64xf32>, vector<1x64xf32> -> vector<2x64xf32>
    %c0_54 = arith.constant 0 : index
    %c0_55 = arith.constant 0 : index
    %c0_56 = arith.constant 0 : index
    %c0_57 = arith.constant 0 : index
    %119 = vector.load %arg11[%c0_54, %c0_55, %c0_56, %c0_57] : memref<1x1x2x64xf32, #tpu.memory_space<vmem>>, vector<1x1x2x64xf32>
    %120 = vector.shape_cast %119 : vector<1x1x2x64xf32> to vector<2x64xf32>
    %121 = vector.shape_cast %118 : vector<2x64xf32> to vector<1x1x2x64xf32>
    tpu.vector_store %arg11[%c0_54, %c0_55, %c0_56, %c0_57], %121 {strides = array<i32>} : memref<1x1x2x64xf32, #tpu.memory_space<vmem>>, vector<1x1x2x64xf32>,
    %122 = vector.shape_cast %108 : vector<128x64xf32> to vector<8x16x64xf32>
    %123 = arith.truncf %122 : vector<8x16x64xf32> to vector<8x16x64xbf16>
    %c0_58 = arith.constant 0 : index
    %c0_59 = arith.constant 0 : index
    %c0_60 = arith.constant 0 : index
    %c0_61 = arith.constant 0 : index
    %124 = vector.load %arg10[%c0_58, %c0_59, %c0_60, %c0_61] : memref<1x8x16x64xbf16, #tpu.memory_space<vmem>>, vector<1x8x16x64xbf16>
    %125 = vector.shape_cast %124 : vector<1x8x16x64xbf16> to vector<8x16x64xbf16>
    %126 = vector.shape_cast %123 : vector<8x16x64xbf16> to vector<1x8x16x64xbf16>
    tpu.vector_store %arg10[%c0_58, %c0_59, %c0_60, %c0_61], %126 {strides = array<i32>} : memref<1x8x16x64xbf16, #tpu.memory_space<vmem>>, vector<1x8x16x64xbf16>,
    return
  }
  func.func @transform_0(%arg0: i32, %arg1: i32, %arg2: i32) -> (i32, i32, i32, i32) {
    %c0_i32 = arith.constant 0 : i32
    %c0_i32_0 = arith.constant 0 : i32
    %c0_i32_1 = arith.constant 0 : i32
    return %arg0, %arg2, %c0_i32, %c0_i32_0 : i32, i32, i32, i32
  }
  func.func @transform_1(%arg0: i32, %arg1: i32, %arg2: i32) -> (i32, i32, i32, i32) {
    %c8_i32 = arith.constant 8 : i32
    %0 = arith.muli %arg2, %c8_i32 : i32
    %c1_i32 = arith.constant 1 : i32
    %1 = arith.subi %0, %c1_i32 : i32
    %c0_i32 = arith.constant 0 : i32
    %2 = arith.maxsi %1, %c0_i32 : i32
    %c0_i32_0 = arith.constant 0 : i32
    %c0_i32_1 = arith.constant 0 : i32
    %c0_i32_2 = arith.constant 0 : i32
    return %arg0, %2, %c0_i32_0, %c0_i32_1 : i32, i32, i32, i32
  }
  func.func @transform_2(%arg0: i32, %arg1: i32, %arg2: i32) -> (i32, i32, i32, i32) {
    %c8_i32 = arith.constant 8 : i32
    %0 = arith.muli %arg2, %c8_i32 : i32
    %c8_i32_0 = arith.constant 8 : i32
    %1 = arith.addi %0, %c8_i32_0 : i32
    %c15_i32 = arith.constant 15 : i32
    %2 = arith.minsi %1, %c15_i32 : i32
    %c0_i32 = arith.constant 0 : i32
    %c0_i32_1 = arith.constant 0 : i32
    %c0_i32_2 = arith.constant 0 : i32
    return %arg0, %2, %c0_i32, %c0_i32_1 : i32, i32, i32, i32
  }
  func.func @transform_3(%arg0: i32, %arg1: i32, %arg2: i32) -> (i32, i32, i32) {
    %c0_i32 = arith.constant 0 : i32
    %c0_i32_0 = arith.constant 0 : i32
    %c0_i32_1 = arith.constant 0 : i32
    return %arg0, %c0_i32, %c0_i32_0 : i32, i32, i32
  }
  func.func @transform_4(%arg0: i32, %arg1: i32, %arg2: i32) -> (i32, i32, i32) {
    %c0_i32 = arith.constant 0 : i32
    %c0_i32_0 = arith.constant 0 : i32
    %c0_i32_1 = arith.constant 0 : i32
    return %arg0, %c0_i32, %c0_i32_0 : i32, i32, i32
  }
  func.func @transform_5(%arg0: i32, %arg1: i32, %arg2: i32) -> (i32, i32, i32) {
    %c0_i32 = arith.constant 0 : i32
    %c0_i32_0 = arith.constant 0 : i32
    %c0_i32_1 = arith.constant 0 : i32
    return %c0_i32, %c0_i32_0, %arg1 : i32, i32, i32
  }
  func.func @transform_6(%arg0: i32, %arg1: i32, %arg2: i32) -> (i32, i32) {
    %c0_i32 = arith.constant 0 : i32
    %c0_i32_0 = arith.constant 0 : i32
    return %c0_i32, %arg1 : i32, i32
  }
  func.func @transform_7(%arg0: i32, %arg1: i32, %arg2: i32) -> (i32, i32, i32, i32) {
    %c0_i32 = arith.constant 0 : i32
    %c0_i32_0 = arith.constant 0 : i32
    return %arg0, %arg2, %c0_i32, %arg1 : i32, i32, i32, i32
  }
  func.func @transform_8(%arg0: i32, %arg1: i32, %arg2: i32) -> (i32, i32, i32, i32) {
    %c0_i32 = arith.constant 0 : i32
    %c0_i32_0 = arith.constant 0 : i32
    return %arg0, %arg2, %c0_i32, %arg1 : i32, i32, i32, i32
  }
}

module attributes {stable_mosaic.version = 11 : i64} {
  func.func @_gn_conv3x3_res_proj_kernel(%arg0: i32, %arg1: i32, %arg2: i32, %arg3: memref<1x8x16x64xbf16, #tpu.memory_space<vmem>>, %arg4: memref<1x1x16x64xbf16, #tpu.memory_space<vmem>>, %arg5: memref<1x1x16x64xbf16, #tpu.memory_space<vmem>>, %arg6: memref<1x1x64xf32, #tpu.memory_space<vmem>>, %arg7: memref<1x1x64xf32, #tpu.memory_space<vmem>>, %arg8: memref<9x64x64xbf16, #tpu.memory_space<vmem>>, %arg9: memref<1x64xf32, #tpu.memory_space<vmem>>, %arg10: memref<1x8x16x32xf32, #tpu.memory_space<vmem>>, %arg11: memref<32x64xbf16, #tpu.memory_space<vmem>>, %arg12: memref<1x8x16x64xf32, #tpu.memory_space<vmem>>) attributes {dimension_semantics = [#tpu.dimension_semantics<parallel>, #tpu.dimension_semantics<parallel>, #tpu.dimension_semantics<parallel>], iteration_bounds = array<i64: 2, 1, 2>, scalar_prefetch = 0 : i64, scratch_operands = 0 : i64, tpu.core_type = #tpu.core_type<tc>, window_params = [{transform_indices = @transform_0, window_bounds = array<i64: 1, 8, 16, 64>}, {transform_indices = @transform_1, window_bounds = array<i64: 1, 1, 16, 64>}, {transform_indices = @transform_2, window_bounds = array<i64: 1, 1, 16, 64>}, {transform_indices = @transform_3, window_bounds = array<i64: 1, 1, 64>}, {transform_indices = @transform_4, window_bounds = array<i64: 1, 1, 64>}, {transform_indices = @transform_5, window_bounds = array<i64: 9, 64, 64>}, {transform_indices = @transform_6, window_bounds = array<i64: 1, 64>}, {transform_indices = @transform_7, window_bounds = array<i64: 1, 8, 16, 32>}, {transform_indices = @transform_8, window_bounds = array<i64: 32, 64>}, {transform_indices = @transform_9, window_bounds = array<i64: 1, 8, 16, 64>}]} {
    %c0 = arith.constant 0 : index
    %c0_0 = arith.constant 0 : index
    %c0_1 = arith.constant 0 : index
    %0 = vector.load %arg6[%c0, %c0_0, %c0_1] : memref<1x1x64xf32, #tpu.memory_space<vmem>>, vector<1x1x64xf32>
    %c0_2 = arith.constant 0 : index
    %c0_3 = arith.constant 0 : index
    %c0_4 = arith.constant 0 : index
    %1 = vector.load %arg7[%c0_2, %c0_3, %c0_4] : memref<1x1x64xf32, #tpu.memory_space<vmem>>, vector<1x1x64xf32>
    %c0_5 = arith.constant 0 : index
    %c0_6 = arith.constant 0 : index
    %c0_7 = arith.constant 0 : index
    %c0_8 = arith.constant 0 : index
    %2 = vector.load %arg3[%c0_5, %c0_6, %c0_7, %c0_8] : memref<1x8x16x64xbf16, #tpu.memory_space<vmem>>, vector<1x8x16x64xbf16>
    %3 = vector.shape_cast %2 : vector<1x8x16x64xbf16> to vector<8x16x64xbf16>
    %4 = arith.extf %3 : vector<8x16x64xbf16> to vector<8x16x64xf32>
    %5 = vector.broadcast %0 : vector<1x1x64xf32> to vector<8x16x64xf32>
    %6 = arith.mulf %4, %5 : vector<8x16x64xf32>
    %7 = vector.broadcast %1 : vector<1x1x64xf32> to vector<8x16x64xf32>
    %8 = arith.addf %6, %7 : vector<8x16x64xf32>
    %9 = arith.negf %8 : vector<8x16x64xf32>
    %10 = math.exp %9 : vector<8x16x64xf32>
    %cst = arith.constant 1.000000e+00 : f32
    %11 = vector.broadcast %cst : f32 to vector<8x16x64xf32>
    %12 = arith.addf %11, %10 : vector<8x16x64xf32>
    %13 = arith.divf %11, %12 : vector<8x16x64xf32>
    %14 = arith.mulf %8, %13 : vector<8x16x64xf32>
    %c0_9 = arith.constant 0 : index
    %c0_10 = arith.constant 0 : index
    %c0_11 = arith.constant 0 : index
    %c0_12 = arith.constant 0 : index
    %15 = vector.load %arg4[%c0_9, %c0_10, %c0_11, %c0_12] : memref<1x1x16x64xbf16, #tpu.memory_space<vmem>>, vector<1x1x16x64xbf16>
    %16 = vector.shape_cast %15 : vector<1x1x16x64xbf16> to vector<1x16x64xbf16>
    %17 = arith.extf %16 : vector<1x16x64xbf16> to vector<1x16x64xf32>
    %18 = vector.broadcast %0 : vector<1x1x64xf32> to vector<1x16x64xf32>
    %19 = arith.mulf %17, %18 : vector<1x16x64xf32>
    %20 = vector.broadcast %1 : vector<1x1x64xf32> to vector<1x16x64xf32>
    %21 = arith.addf %19, %20 : vector<1x16x64xf32>
    %22 = arith.negf %21 : vector<1x16x64xf32>
    %23 = math.exp %22 : vector<1x16x64xf32>
    %cst_13 = arith.constant 1.000000e+00 : f32
    %24 = vector.broadcast %cst_13 : f32 to vector<1x16x64xf32>
    %25 = arith.addf %24, %23 : vector<1x16x64xf32>
    %26 = arith.divf %24, %25 : vector<1x16x64xf32>
    %27 = arith.mulf %21, %26 : vector<1x16x64xf32>
    %c0_i32 = arith.constant 0 : i32
    %28 = arith.cmpi sgt, %arg2, %c0_i32 : i32
    %29 = arith.extui %28 : i1 to i32
    %30 = arith.sitofp %29 : i32 to f32
    %31 = vector.broadcast %30 : f32 to vector<1x16x64xf32>
    %32 = arith.mulf %27, %31 : vector<1x16x64xf32>
    %c0_14 = arith.constant 0 : index
    %c0_15 = arith.constant 0 : index
    %c0_16 = arith.constant 0 : index
    %c0_17 = arith.constant 0 : index
    %33 = vector.load %arg5[%c0_14, %c0_15, %c0_16, %c0_17] : memref<1x1x16x64xbf16, #tpu.memory_space<vmem>>, vector<1x1x16x64xbf16>
    %34 = vector.shape_cast %33 : vector<1x1x16x64xbf16> to vector<1x16x64xbf16>
    %35 = arith.extf %34 : vector<1x16x64xbf16> to vector<1x16x64xf32>
    %36 = vector.broadcast %0 : vector<1x1x64xf32> to vector<1x16x64xf32>
    %37 = arith.mulf %35, %36 : vector<1x16x64xf32>
    %38 = vector.broadcast %1 : vector<1x1x64xf32> to vector<1x16x64xf32>
    %39 = arith.addf %37, %38 : vector<1x16x64xf32>
    %40 = arith.negf %39 : vector<1x16x64xf32>
    %41 = math.exp %40 : vector<1x16x64xf32>
    %cst_18 = arith.constant 1.000000e+00 : f32
    %42 = vector.broadcast %cst_18 : f32 to vector<1x16x64xf32>
    %43 = arith.addf %42, %41 : vector<1x16x64xf32>
    %44 = arith.divf %42, %43 : vector<1x16x64xf32>
    %45 = arith.mulf %39, %44 : vector<1x16x64xf32>
    %c1_i32 = arith.constant 1 : i32
    %46 = arith.cmpi slt, %arg2, %c1_i32 : i32
    %47 = arith.extui %46 : i1 to i32
    %48 = arith.sitofp %47 : i32 to f32
    %49 = vector.broadcast %48 : f32 to vector<1x16x64xf32>
    %50 = arith.mulf %45, %49 : vector<1x16x64xf32>
    %51 = tpu.concatenate %32, %14, %50 in 0 : vector<1x16x64xf32>, vector<8x16x64xf32>, vector<1x16x64xf32> -> vector<10x16x64xf32>
    %cst_19 = arith.constant 0.000000e+00 : f32
    %52 = vector.broadcast %cst_19 : f32 to vector<10x1x64xf32>
    %53 = vector.extract_strided_slice %51 {offsets = [0, 0, 0], sizes = [10, 15, 64], strides = [1, 1, 1]} : vector<10x16x64xf32> to vector<10x15x64xf32>
    %54 = tpu.concatenate %52, %53 in 1 : vector<10x1x64xf32>, vector<10x15x64xf32> -> vector<10x16x64xf32>
    %55 = vector.extract_strided_slice %51 {offsets = [0, 1, 0], sizes = [10, 15, 64], strides = [1, 1, 1]} : vector<10x16x64xf32> to vector<10x15x64xf32>
    %56 = tpu.concatenate %55, %52 in 1 : vector<10x15x64xf32>, vector<10x1x64xf32> -> vector<10x16x64xf32>
    %57 = arith.truncf %54 : vector<10x16x64xf32> to vector<10x16x64xbf16>
    %58 = vector.shape_cast %57 : vector<10x16x64xbf16> to vector<160x64xbf16>
    %59 = arith.truncf %51 : vector<10x16x64xf32> to vector<10x16x64xbf16>
    %60 = vector.shape_cast %59 : vector<10x16x64xbf16> to vector<160x64xbf16>
    %61 = arith.truncf %56 : vector<10x16x64xf32> to vector<10x16x64xbf16>
    %62 = vector.shape_cast %61 : vector<10x16x64xbf16> to vector<160x64xbf16>
    %cst_20 = arith.constant 0.000000e+00 : f32
    %63 = vector.broadcast %cst_20 : f32 to vector<128x64xf32>
    %64 = vector.extract_strided_slice %58 {offsets = [0, 0], sizes = [128, 64], strides = [1, 1]} : vector<160x64xbf16> to vector<128x64xbf16>
    %c0_21 = arith.constant 0 : index
    %c0_22 = arith.constant 0 : index
    %c0_23 = arith.constant 0 : index
    %65 = vector.load %arg8[%c0_21, %c0_22, %c0_23] : memref<9x64x64xbf16, #tpu.memory_space<vmem>>, vector<1x64x64xbf16>
    %66 = vector.shape_cast %65 : vector<1x64x64xbf16> to vector<64x64xbf16>
    %cst_24 = arith.constant dense<0.000000e+00> : vector<128x64xf32>
    %67 = tpu.matmul %64, %66, %cst_24 {dimension_numbers = #tpu.dot_dimension_numbers<[1], [0], [0], [1], [0, 0, 1, 1], [], []>} : vector<128x64xbf16>, vector<64x64xbf16>, vector<128x64xf32> -> vector<128x64xf32>
    %68 = arith.addf %63, %67 : vector<128x64xf32>
    %69 = vector.extract_strided_slice %60 {offsets = [0, 0], sizes = [128, 64], strides = [1, 1]} : vector<160x64xbf16> to vector<128x64xbf16>
    %c1 = arith.constant 1 : index
    %c0_25 = arith.constant 0 : index
    %c0_26 = arith.constant 0 : index
    %70 = vector.load %arg8[%c1, %c0_25, %c0_26] : memref<9x64x64xbf16, #tpu.memory_space<vmem>>, vector<1x64x64xbf16>
    %71 = vector.shape_cast %70 : vector<1x64x64xbf16> to vector<64x64xbf16>
    %cst_27 = arith.constant dense<0.000000e+00> : vector<128x64xf32>
    %72 = tpu.matmul %69, %71, %cst_27 {dimension_numbers = #tpu.dot_dimension_numbers<[1], [0], [0], [1], [0, 0, 1, 1], [], []>} : vector<128x64xbf16>, vector<64x64xbf16>, vector<128x64xf32> -> vector<128x64xf32>
    %73 = arith.addf %68, %72 : vector<128x64xf32>
    %74 = vector.extract_strided_slice %62 {offsets = [0, 0], sizes = [128, 64], strides = [1, 1]} : vector<160x64xbf16> to vector<128x64xbf16>
    %c2 = arith.constant 2 : index
    %c0_28 = arith.constant 0 : index
    %c0_29 = arith.constant 0 : index
    %75 = vector.load %arg8[%c2, %c0_28, %c0_29] : memref<9x64x64xbf16, #tpu.memory_space<vmem>>, vector<1x64x64xbf16>
    %76 = vector.shape_cast %75 : vector<1x64x64xbf16> to vector<64x64xbf16>
    %cst_30 = arith.constant dense<0.000000e+00> : vector<128x64xf32>
    %77 = tpu.matmul %74, %76, %cst_30 {dimension_numbers = #tpu.dot_dimension_numbers<[1], [0], [0], [1], [0, 0, 1, 1], [], []>} : vector<128x64xbf16>, vector<64x64xbf16>, vector<128x64xf32> -> vector<128x64xf32>
    %78 = arith.addf %73, %77 : vector<128x64xf32>
    %79 = vector.extract_strided_slice %58 {offsets = [16, 0], sizes = [128, 64], strides = [1, 1]} : vector<160x64xbf16> to vector<128x64xbf16>
    %c3 = arith.constant 3 : index
    %c0_31 = arith.constant 0 : index
    %c0_32 = arith.constant 0 : index
    %80 = vector.load %arg8[%c3, %c0_31, %c0_32] : memref<9x64x64xbf16, #tpu.memory_space<vmem>>, vector<1x64x64xbf16>
    %81 = vector.shape_cast %80 : vector<1x64x64xbf16> to vector<64x64xbf16>
    %cst_33 = arith.constant dense<0.000000e+00> : vector<128x64xf32>
    %82 = tpu.matmul %79, %81, %cst_33 {dimension_numbers = #tpu.dot_dimension_numbers<[1], [0], [0], [1], [0, 0, 1, 1], [], []>} : vector<128x64xbf16>, vector<64x64xbf16>, vector<128x64xf32> -> vector<128x64xf32>
    %83 = arith.addf %78, %82 : vector<128x64xf32>
    %84 = vector.extract_strided_slice %60 {offsets = [16, 0], sizes = [128, 64], strides = [1, 1]} : vector<160x64xbf16> to vector<128x64xbf16>
    %c4 = arith.constant 4 : index
    %c0_34 = arith.constant 0 : index
    %c0_35 = arith.constant 0 : index
    %85 = vector.load %arg8[%c4, %c0_34, %c0_35] : memref<9x64x64xbf16, #tpu.memory_space<vmem>>, vector<1x64x64xbf16>
    %86 = vector.shape_cast %85 : vector<1x64x64xbf16> to vector<64x64xbf16>
    %cst_36 = arith.constant dense<0.000000e+00> : vector<128x64xf32>
    %87 = tpu.matmul %84, %86, %cst_36 {dimension_numbers = #tpu.dot_dimension_numbers<[1], [0], [0], [1], [0, 0, 1, 1], [], []>} : vector<128x64xbf16>, vector<64x64xbf16>, vector<128x64xf32> -> vector<128x64xf32>
    %88 = arith.addf %83, %87 : vector<128x64xf32>
    %89 = vector.extract_strided_slice %62 {offsets = [16, 0], sizes = [128, 64], strides = [1, 1]} : vector<160x64xbf16> to vector<128x64xbf16>
    %c5 = arith.constant 5 : index
    %c0_37 = arith.constant 0 : index
    %c0_38 = arith.constant 0 : index
    %90 = vector.load %arg8[%c5, %c0_37, %c0_38] : memref<9x64x64xbf16, #tpu.memory_space<vmem>>, vector<1x64x64xbf16>
    %91 = vector.shape_cast %90 : vector<1x64x64xbf16> to vector<64x64xbf16>
    %cst_39 = arith.constant dense<0.000000e+00> : vector<128x64xf32>
    %92 = tpu.matmul %89, %91, %cst_39 {dimension_numbers = #tpu.dot_dimension_numbers<[1], [0], [0], [1], [0, 0, 1, 1], [], []>} : vector<128x64xbf16>, vector<64x64xbf16>, vector<128x64xf32> -> vector<128x64xf32>
    %93 = arith.addf %88, %92 : vector<128x64xf32>
    %94 = vector.extract_strided_slice %58 {offsets = [32, 0], sizes = [128, 64], strides = [1, 1]} : vector<160x64xbf16> to vector<128x64xbf16>
    %c6 = arith.constant 6 : index
    %c0_40 = arith.constant 0 : index
    %c0_41 = arith.constant 0 : index
    %95 = vector.load %arg8[%c6, %c0_40, %c0_41] : memref<9x64x64xbf16, #tpu.memory_space<vmem>>, vector<1x64x64xbf16>
    %96 = vector.shape_cast %95 : vector<1x64x64xbf16> to vector<64x64xbf16>
    %cst_42 = arith.constant dense<0.000000e+00> : vector<128x64xf32>
    %97 = tpu.matmul %94, %96, %cst_42 {dimension_numbers = #tpu.dot_dimension_numbers<[1], [0], [0], [1], [0, 0, 1, 1], [], []>} : vector<128x64xbf16>, vector<64x64xbf16>, vector<128x64xf32> -> vector<128x64xf32>
    %98 = arith.addf %93, %97 : vector<128x64xf32>
    %99 = vector.extract_strided_slice %60 {offsets = [32, 0], sizes = [128, 64], strides = [1, 1]} : vector<160x64xbf16> to vector<128x64xbf16>
    %c7 = arith.constant 7 : index
    %c0_43 = arith.constant 0 : index
    %c0_44 = arith.constant 0 : index
    %100 = vector.load %arg8[%c7, %c0_43, %c0_44] : memref<9x64x64xbf16, #tpu.memory_space<vmem>>, vector<1x64x64xbf16>
    %101 = vector.shape_cast %100 : vector<1x64x64xbf16> to vector<64x64xbf16>
    %cst_45 = arith.constant dense<0.000000e+00> : vector<128x64xf32>
    %102 = tpu.matmul %99, %101, %cst_45 {dimension_numbers = #tpu.dot_dimension_numbers<[1], [0], [0], [1], [0, 0, 1, 1], [], []>} : vector<128x64xbf16>, vector<64x64xbf16>, vector<128x64xf32> -> vector<128x64xf32>
    %103 = arith.addf %98, %102 : vector<128x64xf32>
    %104 = vector.extract_strided_slice %62 {offsets = [32, 0], sizes = [128, 64], strides = [1, 1]} : vector<160x64xbf16> to vector<128x64xbf16>
    %c8 = arith.constant 8 : index
    %c0_46 = arith.constant 0 : index
    %c0_47 = arith.constant 0 : index
    %105 = vector.load %arg8[%c8, %c0_46, %c0_47] : memref<9x64x64xbf16, #tpu.memory_space<vmem>>, vector<1x64x64xbf16>
    %106 = vector.shape_cast %105 : vector<1x64x64xbf16> to vector<64x64xbf16>
    %cst_48 = arith.constant dense<0.000000e+00> : vector<128x64xf32>
    %107 = tpu.matmul %104, %106, %cst_48 {dimension_numbers = #tpu.dot_dimension_numbers<[1], [0], [0], [1], [0, 0, 1, 1], [], []>} : vector<128x64xbf16>, vector<64x64xbf16>, vector<128x64xf32> -> vector<128x64xf32>
    %108 = arith.addf %103, %107 : vector<128x64xf32>
    %c0_49 = arith.constant 0 : index
    %c0_50 = arith.constant 0 : index
    %109 = vector.load %arg9[%c0_49, %c0_50] : memref<1x64xf32, #tpu.memory_space<vmem>>, vector<1x64xf32>
    %110 = vector.broadcast %109 : vector<1x64xf32> to vector<128x64xf32>
    %111 = arith.addf %108, %110 : vector<128x64xf32>
    %c0_51 = arith.constant 0 : index
    %c0_52 = arith.constant 0 : index
    %c0_53 = arith.constant 0 : index
    %c0_54 = arith.constant 0 : index
    %112 = vector.load %arg10[%c0_51, %c0_52, %c0_53, %c0_54] : memref<1x8x16x32xf32, #tpu.memory_space<vmem>>, vector<1x8x16x32xf32>
    %113 = vector.shape_cast %112 : vector<1x8x16x32xf32> to vector<8x16x32xf32>
    %114 = arith.truncf %113 : vector<8x16x32xf32> to vector<8x16x32xbf16>
    %115 = vector.shape_cast %114 : vector<8x16x32xbf16> to vector<128x32xbf16>
    %c0_55 = arith.constant 0 : index
    %c0_56 = arith.constant 0 : index
    %116 = vector.load %arg11[%c0_55, %c0_56] : memref<32x64xbf16, #tpu.memory_space<vmem>>, vector<32x64xbf16>
    %cst_57 = arith.constant dense<0.000000e+00> : vector<128x64xf32>
    %117 = tpu.matmul %115, %116, %cst_57 {dimension_numbers = #tpu.dot_dimension_numbers<[1], [0], [0], [1], [0, 0, 1, 1], [], []>} : vector<128x32xbf16>, vector<32x64xbf16>, vector<128x64xf32> -> vector<128x64xf32>
    %118 = arith.addf %111, %117 : vector<128x64xf32>
    %119 = vector.shape_cast %118 : vector<128x64xf32> to vector<8x16x64xf32>
    %c0_58 = arith.constant 0 : index
    %c0_59 = arith.constant 0 : index
    %c0_60 = arith.constant 0 : index
    %c0_61 = arith.constant 0 : index
    %120 = vector.load %arg12[%c0_58, %c0_59, %c0_60, %c0_61] : memref<1x8x16x64xf32, #tpu.memory_space<vmem>>, vector<1x8x16x64xf32>
    %121 = vector.shape_cast %120 : vector<1x8x16x64xf32> to vector<8x16x64xf32>
    %122 = vector.shape_cast %119 : vector<8x16x64xf32> to vector<1x8x16x64xf32>
    tpu.vector_store %arg12[%c0_58, %c0_59, %c0_60, %c0_61], %122 {strides = array<i32>} : memref<1x8x16x64xf32, #tpu.memory_space<vmem>>, vector<1x8x16x64xf32>,
    return
  }
  func.func @transform_0(%arg0: i32, %arg1: i32, %arg2: i32) -> (i32, i32, i32, i32) {
    %c0_i32 = arith.constant 0 : i32
    %c0_i32_0 = arith.constant 0 : i32
    %c0_i32_1 = arith.constant 0 : i32
    return %arg0, %arg2, %c0_i32, %c0_i32_0 : i32, i32, i32, i32
  }
  func.func @transform_1(%arg0: i32, %arg1: i32, %arg2: i32) -> (i32, i32, i32, i32) {
    %c8_i32 = arith.constant 8 : i32
    %0 = arith.muli %arg2, %c8_i32 : i32
    %c1_i32 = arith.constant 1 : i32
    %1 = arith.subi %0, %c1_i32 : i32
    %c0_i32 = arith.constant 0 : i32
    %2 = arith.maxsi %1, %c0_i32 : i32
    %c0_i32_0 = arith.constant 0 : i32
    %c0_i32_1 = arith.constant 0 : i32
    %c0_i32_2 = arith.constant 0 : i32
    return %arg0, %2, %c0_i32_0, %c0_i32_1 : i32, i32, i32, i32
  }
  func.func @transform_2(%arg0: i32, %arg1: i32, %arg2: i32) -> (i32, i32, i32, i32) {
    %c8_i32 = arith.constant 8 : i32
    %0 = arith.muli %arg2, %c8_i32 : i32
    %c8_i32_0 = arith.constant 8 : i32
    %1 = arith.addi %0, %c8_i32_0 : i32
    %c15_i32 = arith.constant 15 : i32
    %2 = arith.minsi %1, %c15_i32 : i32
    %c0_i32 = arith.constant 0 : i32
    %c0_i32_1 = arith.constant 0 : i32
    %c0_i32_2 = arith.constant 0 : i32
    return %arg0, %2, %c0_i32, %c0_i32_1 : i32, i32, i32, i32
  }
  func.func @transform_3(%arg0: i32, %arg1: i32, %arg2: i32) -> (i32, i32, i32) {
    %c0_i32 = arith.constant 0 : i32
    %c0_i32_0 = arith.constant 0 : i32
    %c0_i32_1 = arith.constant 0 : i32
    return %arg0, %c0_i32, %c0_i32_0 : i32, i32, i32
  }
  func.func @transform_4(%arg0: i32, %arg1: i32, %arg2: i32) -> (i32, i32, i32) {
    %c0_i32 = arith.constant 0 : i32
    %c0_i32_0 = arith.constant 0 : i32
    %c0_i32_1 = arith.constant 0 : i32
    return %arg0, %c0_i32, %c0_i32_0 : i32, i32, i32
  }
  func.func @transform_5(%arg0: i32, %arg1: i32, %arg2: i32) -> (i32, i32, i32) {
    %c0_i32 = arith.constant 0 : i32
    %c0_i32_0 = arith.constant 0 : i32
    %c0_i32_1 = arith.constant 0 : i32
    return %c0_i32, %c0_i32_0, %arg1 : i32, i32, i32
  }
  func.func @transform_6(%arg0: i32, %arg1: i32, %arg2: i32) -> (i32, i32) {
    %c0_i32 = arith.constant 0 : i32
    %c0_i32_0 = arith.constant 0 : i32
    return %c0_i32, %arg1 : i32, i32
  }
  func.func @transform_7(%arg0: i32, %arg1: i32, %arg2: i32) -> (i32, i32, i32, i32) {
    %c0_i32 = arith.constant 0 : i32
    %c0_i32_0 = arith.constant 0 : i32
    %c0_i32_1 = arith.constant 0 : i32
    return %arg0, %arg2, %c0_i32, %c0_i32_0 : i32, i32, i32, i32
  }
  func.func @transform_8(%arg0: i32, %arg1: i32, %arg2: i32) -> (i32, i32) {
    %c0_i32 = arith.constant 0 : i32
    %c0_i32_0 = arith.constant 0 : i32
    return %c0_i32, %arg1 : i32, i32
  }
  func.func @transform_9(%arg0: i32, %arg1: i32, %arg2: i32) -> (i32, i32, i32, i32) {
    %c0_i32 = arith.constant 0 : i32
    %c0_i32_0 = arith.constant 0 : i32
    return %arg0, %arg2, %c0_i32, %arg1 : i32, i32, i32, i32
  }
}

</mosaic_0001>

<llo_original>
// kernel: unet_residual_block.3
$region0: #{unet_residual_block.3}
  #allocation0 [shape = 'u32[]', space=smem, size = 0x4, offset = 0x4, fixed_abs, tag = 'smem constant byte address 0x4 - core index']
  #allocation1 [shape = 'u32[144,128]{1,0:T(1,128)}', space=vmem, size = 0x12000, scoped, tag = 'internal scratch']
  %s0 = inlined_call_operand.hbm [shape: f32[2,16,16,32], index: 0, kind: input, shape index: {}]
  %s1 = inlined_call_operand.vmem [shape: f32[2,2,2,32], index: 1, kind: output, shape index: {}]
  %s2 = sld [smem:[#allocation0]]
  $region41: #{unet_residual_block.3} parent=0
    _
  %s4 = ssub.s32 1, %s2
  %s5 = scalar_select 0, %s4, %s2
  $region1: #{unet_residual_block.3} parent=0
    #allocation2 [shape = 'u8[131072]{0}', space=vmem, size = 0x20000, scoped, tag = 'input window, operand 0']
    #allocation3 [shape = 's32[2]{0}', space=sflag, size = 0x8, scoped, tag = 'scoped memory for unet_residual_block.3']
    %6 = vsyncpa [#allocation3], 0
    %s7 = scalar_lea.sflag [#allocation3], 1
    %8 = vsyncpa %s7, 0
    loop: start=0, step=1, limit=6
    $region2: #{unet_residual_block.3} parent=1 // loop_pre_header
      _
    $region3: #{unet_residual_block.3} parent=1 // loop_header
      %s10 = sphi 0, %s14
      %p11 = scmp.ge.s32.totalorder %s10, 6
      %s17 = sphi 0, %s29
      %s18 = sphi 0, %s25
      %s19 = sphi 0, %s17
      %s20 = sphi 0, %s18
      %s21 = sphi 0, %s19
      %s22 = sphi 0, %s20
      %s34 = sphi 0, %s36
      %s37 = sphi 0, %s34
      %s38 = sphi 0, %s37
      %s54 = sphi 0, %s38
      %s62 = sphi 0, %s64
      %s65 = sphi 0, %s62
      %s66 = sphi 0, %s65
      %s82 = sphi 0, %s66
    $region4: #{unet_residual_block.3} parent=1 // loop_header_branch
      %13 = sbr.rel (%p11) target = $region8
    $region5: #{unet_residual_block.3} parent=1 // loop_body
      %s15 = ssub.s32 %s10, 1
      %s16 = ssub.s32 %s10, 2
      %s23 = sadd.s32 1, %s18
      %p24 = scmp.ge.s32.totalorder %s23, 2
      %s25 = scalar_select %p24, 0, %s23
      %s26 = sadd.s32 1, %s17
      %s27 = scalar_select %p24, %s26, %s17
      %p28 = scmp.ge.s32.totalorder %s27, 2
      %s29 = scalar_select %p28, 0, %s27
      %s30 = ssub.s32 %s17, %s29
      %s31 = ssub.s32 %s18, %s25
      %s32 = sor.u32 %s30, %s31
      %p33 = scmp.eq.s32.totalorder %s32, 0
      %s35 = sadd.s32 %s34, 1
      %s36 = scalar_select %p33, %s34, %s35
      %p39 = pneg %p33
      %p40 = scmp.eq.s32.totalorder %s10, 3
      %p41 = por %p39, %p40
      %p42 = scmp.ne.s32.totalorder %s34, %s37
      %p43 = scmp.eq.s32.totalorder %s10, 0
      %p44 = por %p42, %p43
      %p45 = scmp.ne.s32.totalorder %s34, %s37
      %p46 = scmp.eq.s32.totalorder %s15, 3
      %p47 = por %p45, %p46
      %p48 = scmp.ne.s32.totalorder %s37, %s38
      %p49 = scmp.eq.s32.totalorder %s15, 0
      %p50 = por %p48, %p49
      %p51 = scmp.ne.s32.totalorder %s37, %s38
      %p52 = scmp.eq.s32.totalorder %s16, 3
      %p53 = por %p51, %p52
      %p55 = scmp.ne.s32.totalorder %s38, %s54
      %p56 = scmp.eq.s32.totalorder %s16, 0
      %p57 = por %p55, %p56
      %s58 = ssub.s32 %s17, %s29
      %s59 = ssub.s32 %s18, %s25
      %s60 = sor.u32 %s58, %s59
      %p61 = scmp.eq.s32.totalorder %s60, 0
      %s63 = sadd.s32 %s62, 1
      %s64 = scalar_select %p61, %s62, %s63
      %p67 = pneg %p61
      %p68 = scmp.eq.s32.totalorder %s10, 3
      %p69 = por %p67, %p68
      %p70 = scmp.ne.s32.totalorder %s62, %s65
      %p71 = scmp.eq.s32.totalorder %s10, 0
      %p72 = por %p70, %p71
      %p73 = scmp.ne.s32.totalorder %s62, %s65
      %p74 = scmp.eq.s32.totalorder %s15, 3
      %p75 = por %p73, %p74
      %p76 = scmp.ne.s32.totalorder %s65, %s66
      %p77 = scmp.eq.s32.totalorder %s15, 0
      %p78 = por %p76, %p77
      %p79 = scmp.ne.s32.totalorder %s65, %s66
      %p80 = scmp.eq.s32.totalorder %s16, 3
      %p81 = por %p79, %p80
      %p83 = scmp.ne.s32.totalorder %s66, %s82
      %p84 = scmp.eq.s32.totalorder %s16, 0
      %p85 = por %p83, %p84
      %p86 = scmp.le.s32.totalorder 1, %s10
      %p87 = scmp.lt.s32.totalorder %s10, 5
      %p88 = pnand %p86, %p87
      %p89 = pneg %p88
      // Predicated region
      $region9: #{unet_residual_block.3} parent=5 // pred_check
        _
      $region10: #{unet_residual_block.3} parent=5 // pred_check_branch
        %91 = sbr.rel (%p88) target = $region12
      $region11: #{unet_residual_block.3} parent=5 // pred_region
        %s92 = ssub.s32 %s10, 1
      $region12: #{unet_residual_block.3} parent=5 // pred_fallthru
        _
      %p93 = scmp.lt.s32.totalorder %s10, 4
      // Predicated region
      $region13: #{unet_residual_block.3} parent=5 // pred_check
        %p94 = pneg %p93
      $region14: #{unet_residual_block.3} parent=5 // pred_check_branch
        %96 = sbr.rel (%p94) target = $region16
      $region15: #{unet_residual_block.3} parent=5 // pred_region
        // Predicated region
        $region17: #{unet_residual_block.3} parent=15 // pred_check
          %p97 = pneg %p44
        $region18: #{unet_residual_block.3} parent=15 // pred_check_branch
          %99 = sbr.rel (%p97) target = $region20
        $region19: #{unet_residual_block.3} parent=15 // pred_region
          %s100 = sand.u32 %s34, 1
          %s101 = scalar_lea.sflag [#allocation3], %s100
          %s102 = sand.u32 %s34, 1
          %s103 = smul.addr %s102, 128
          %s104 = scalar_lea.vmem [#allocation2], %s103
          %s105 = smul.u32 8, %s18
          %s107 = ssub.s32 2048, 2048
          %108 = vsyncadd %s101, %s107
          %s109 = smul.addr %s105, 2
          %s110 = smul.addr %s17, 32
          %s111 = sadd.s32 %s109, %s110
          %s112 = smul.addr %s111, 128
          %s113 = scalar_lea.hbm %s0, %s112
          %s114 = sshll.u32 %s104, 4
          %s115 = int_to_ptr.vmem [resolvable:$true] %s114
          %120 = dma.hbm_to_vmem [thread:$0]  %s113, 2048, %s115, %s101, 128, 128, 8
        $region20: #{unet_residual_block.3} parent=15 // pred_fallthru
          _
      $region16: #{unet_residual_block.3} parent=5 // pred_fallthru
        _
      %p121 = scmp.le.s32.totalorder 1, %s10
      %p122 = scmp.lt.s32.totalorder %s10, 5
      %p123 = pnand %p121, %p122
      %p124 = pneg %p123
      // Predicated region
      $region21: #{unet_residual_block.3} parent=5 // pred_check
        _
      $region22: #{unet_residual_block.3} parent=5 // pred_check_branch
        %126 = sbr.rel (%p123) target = $region24
      $region23: #{unet_residual_block.3} parent=5 // pred_region
        %s127 = ssub.s32 %s10, 1
        %s128 = sand.u32 %s37, 1
        %s129 = scalar_lea.sflag [#allocation3], %s128
        %s130 = sand.u32 %s37, 1
        %s131 = smul.addr %s130, 128
        %s132 = scalar_lea.vmem [#allocation2], %s131
        // Predicated region
        $region25: #{unet_residual_block.3} parent=23 // pred_check
          %p133 = pneg %p50
        $region26: #{unet_residual_block.3} parent=23 // pred_check_branch
          %135 = sbr.rel (%p133) target = $region28
        $region27: #{unet_residual_block.3} parent=23 // pred_region
          %136 = dma.done %s129, 2048
        $region28: #{unet_residual_block.3} parent=23 // pred_fallthru
          _
        %s137 = sand.u32 %s37, 1
        %s138 = scalar_lea.sflag [#allocation3], %s137
        %s139 = sand.u32 %s37, 1
        %s140 = smul.addr %s139, 128
        %s141 = scalar_lea.vmem [#allocation2], %s140
        %p142 = pneg %p50
        %p143 = pneg %p47
        %p144 = pneg %p78
        %p145 = pneg %p75
        %p146 = scmp.lt.s32.totalorder %s19, 1
        %s147 = scalar_select %p146, %s19, 1
        %p148 = scmp.lt.s32.totalorder %s20, 1
        %s149 = scalar_select %p148, %s20, 1
        %s150 = smul.addr %s147, 2
        %s151 = sadd.s32 %s149, %s150
        %s152 = smul.addr %s151, 2
        %s153 = scalar_lea.vmem %s1, %s152
        %s154 = smul.u32 8, %s20
        %p155 = scmp.lt.s32.totalorder %s19, 1
        %s156 = scalar_select %p155, %s19, 1
        %p157 = scmp.lt.s32.totalorder %s20, 1
        %s158 = scalar_select %p157, %s20, 1
        %s159 = smul.addr %s156, 2
        %s160 = sadd.s32 %s158, %s159
        %s161 = smul.addr %s160, 2
        %s162 = scalar_lea.vmem %s1, %s161
        %v163 = vld [vmem:[%s132] sm:$0xff]
        %v164 = vld [vmem:[%s132 + $0x8] sm:$0xff]
        %v165 = vld [vmem:[%s132 + $0x10] sm:$0xff]
        %v166 = vld [vmem:[%s132 + $0x18] sm:$0xff]
        %v167 = vld [vmem:[%s132 + $0x20] sm:$0xff]
        %v168 = vld [vmem:[%s132 + $0x28] sm:$0xff]
        %v169 = vld [vmem:[%s132 + $0x30] sm:$0xff]
        %v170 = vld [vmem:[%s132 + $0x38] sm:$0xff]
        %v171 = vld [vmem:[%s132 + $0x40] sm:$0xff]
        %v172 = vld [vmem:[%s132 + $0x48] sm:$0xff]
        %v173 = vld [vmem:[%s132 + $0x50] sm:$0xff]
        %v174 = vld [vmem:[%s132 + $0x58] sm:$0xff]
        %v175 = vld [vmem:[%s132 + $0x60] sm:$0xff]
        %v176 = vld [vmem:[%s132 + $0x68] sm:$0xff]
        %v177 = vld [vmem:[%s132 + $0x70] sm:$0xff]
        %v178 = vld [vmem:[%s132 + $0x78] sm:$0xff]
        %vm179 = vcmask 261120
        %v180 = vsel %vm179, %v163, 0.0
        %v181 = vsel %vm179, %v164, 0.0
        %v182 = vadd.f32 %v180, %v181
        %v183 = vsel %vm179, %v165, 0.0
        %v184 = vadd.f32 %v182, %v183
        %v185 = vsel %vm179, %v166, 0.0
        %v186 = vadd.f32 %v184, %v185
        %v187 = vsel %vm179, %v167, 0.0
        %v188 = vadd.f32 %v186, %v187
        %v189 = vsel %vm179, %v168, 0.0
        %v190 = vadd.f32 %v188, %v189
        %v191 = vsel %vm179, %v169, 0.0
        %v192 = vadd.f32 %v190, %v191
        %v193 = vsel %vm179, %v170, 0.0
        %v194 = vadd.f32 %v192, %v193
        %v195 = vsel %vm179, %v171, 0.0
        %v196 = vadd.f32 %v194, %v195
        %v197 = vsel %vm179, %v172, 0.0
        %v198 = vadd.f32 %v196, %v197
        %v199 = vsel %vm179, %v173, 0.0
        %v200 = vadd.f32 %v198, %v199
        %v201 = vsel %vm179, %v174, 0.0
        %v202 = vadd.f32 %v200, %v201
        %v203 = vsel %vm179, %v175, 0.0
        %v204 = vadd.f32 %v202, %v203
        %v205 = vsel %vm179, %v176, 0.0
        %v206 = vadd.f32 %v204, %v205
        %v207 = vsel %vm179, %v177, 0.0
        %v208 = vadd.f32 %v206, %v207
        %v209 = vsel %vm179, %v178, 0.0
        %v210 = vadd.f32 %v208, %v209
        %v211 = vrot.slane %v210, 4
        %v212 = vadd.f32 %v210, %v211
        %v213 = vrot.slane %v212, 2
        %v214 = vadd.f32 %v212, %v213
        %v215 = vrot.slane %v214, 1
        %v216 = vadd.f32 %v214, %v215
        %v217 = vmul.f32 %v216, 0.0078125
        %v218 = vsub.f32 %v163, %v217
        %v219 = vsub.f32 %v164, %v217
        %v220 = vsub.f32 %v165, %v217
        %v221 = vsub.f32 %v166, %v217
        %v222 = vsub.f32 %v167, %v217
        %v223 = vsub.f32 %v168, %v217
        %v224 = vsub.f32 %v169, %v217
        %v225 = vsub.f32 %v170, %v217
        %v226 = vsub.f32 %v171, %v217
        %v227 = vsub.f32 %v172, %v217
        %v228 = vsub.f32 %v173, %v217
        %v229 = vsub.f32 %v174, %v217
        %v230 = vsub.f32 %v175, %v217
        %v231 = vsub.f32 %v176, %v217
        %v232 = vsub.f32 %v177, %v217
        %v233 = vsub.f32 %v178, %v217
        %v234 = vmul.f32 %v218, %v218
        %v235 = vmul.f32 %v219, %v219
        %v236 = vmul.f32 %v220, %v220
        %v237 = vmul.f32 %v221, %v221
        %v238 = vmul.f32 %v222, %v222
        %v239 = vmul.f32 %v223, %v223
        %v240 = vmul.f32 %v224, %v224
        %v241 = vmul.f32 %v225, %v225
        %v242 = vmul.f32 %v226, %v226
        %v243 = vmul.f32 %v227, %v227
        %v244 = vmul.f32 %v228, %v228
        %v245 = vmul.f32 %v229, %v229
        %v246 = vmul.f32 %v230, %v230
        %v247 = vmul.f32 %v231, %v231
        %v248 = vmul.f32 %v232, %v232
        %v249 = vmul.f32 %v233, %v233
        %v250 = vsel %vm179, %v234, 0.0
        %v251 = vsel %vm179, %v235, 0.0
        %v252 = vadd.f32 %v250, %v251
        %v253 = vsel %vm179, %v236, 0.0
        %v254 = vadd.f32 %v252, %v253
        %v255 = vsel %vm179, %v237, 0.0
        %v256 = vadd.f32 %v254, %v255
        %v257 = vsel %vm179, %v238, 0.0
        %v258 = vadd.f32 %v256, %v257
        %v259 = vsel %vm179, %v239, 0.0
        %v260 = vadd.f32 %v258, %v259
        %v261 = vsel %vm179, %v240, 0.0
        %v262 = vadd.f32 %v260, %v261
        %v263 = vsel %vm179, %v241, 0.0
        %v264 = vadd.f32 %v262, %v263
        %v265 = vsel %vm179, %v242, 0.0
        %v266 = vadd.f32 %v264, %v265
        %v267 = vsel %vm179, %v243, 0.0
        %v268 = vadd.f32 %v266, %v267
        %v269 = vsel %vm179, %v244, 0.0
        %v270 = vadd.f32 %v268, %v269
        %v271 = vsel %vm179, %v245, 0.0
        %v272 = vadd.f32 %v270, %v271
        %v273 = vsel %vm179, %v246, 0.0
        %v274 = vadd.f32 %v272, %v273
        %v275 = vsel %vm179, %v247, 0.0
        %v276 = vadd.f32 %v274, %v275
        %v277 = vsel %vm179, %v248, 0.0
        %v278 = vadd.f32 %v276, %v277
        %v279 = vsel %vm179, %v249, 0.0
        %v280 = vadd.f32 %v278, %v279
        %v281 = vrot.slane %v280, 4
        %v282 = vadd.f32 %v280, %v281
        %v283 = vrot.slane %v282, 2
        %v284 = vadd.f32 %v282, %v283
        %v285 = vrot.slane %v284, 1
        %v286 = vadd.f32 %v284, %v285
        %vm287 = vcmask 1040384
        %v288 = vsel %vm287, %v216, %v286
        %vm289 = vcmask 254976
        %290 = vst.msk [vmem:[%s162] sm:$0x3] %vm289, %v288
        %p291 = scmp.lt.s32.totalorder %s19, 1
        %s292 = scalar_select %p291, %s19, 1
        %p293 = scmp.lt.s32.totalorder %s20, 1
        %s294 = scalar_select %p293, %s20, 1
        %s295 = smul.addr %s292, 2
        %s296 = sadd.s32 %s294, %s295
        %s297 = smul.addr %s296, 2
        %s298 = scalar_lea.vmem %s1, %s297
        // Predicated region
        $region29: #{unet_residual_block.3} parent=23 // pred_check
          %p299 = pneg %p75
        $region30: #{unet_residual_block.3} parent=23 // pred_check_branch
          %301 = sbr.rel (%p299) target = $region32
        $region31: #{unet_residual_block.3} parent=23 // pred_region
          _
        $region32: #{unet_residual_block.3} parent=23 // pred_fallthru
          _
      $region24: #{unet_residual_block.3} parent=5 // pred_fallthru
        _
      %p302 = scmp.le.s32.totalorder 2, %s10
      // Predicated region
      $region33: #{unet_residual_block.3} parent=5 // pred_check
        %p303 = pneg %p302
      $region34: #{unet_residual_block.3} parent=5 // pred_check_branch
        %305 = sbr.rel (%p303) target = $region36
      $region35: #{unet_residual_block.3} parent=5 // pred_region
        %s306 = ssub.s32 %s10, 2
        // Predicated region
        $region37: #{unet_residual_block.3} parent=35 // pred_check
          %p307 = pneg %p81
        $region38: #{unet_residual_block.3} parent=35 // pred_check_branch
          %309 = sbr.rel (%p307) target = $region40
        $region39: #{unet_residual_block.3} parent=35 // pred_region
          %p310 = scmp.lt.s32.totalorder %s21, 1
          %s311 = scalar_select %p310, %s21, 1
          %p312 = scmp.lt.s32.totalorder %s22, 1
          %s313 = scalar_select %p312, %s22, 1
          %s314 = smul.addr %s311, 2
          %s315 = sadd.s32 %s313, %s314
          %s316 = smul.addr %s315, 2
          %s317 = scalar_lea.vmem %s1, %s316
        $region40: #{unet_residual_block.3} parent=35 // pred_fallthru
          _
      $region36: #{unet_residual_block.3} parent=5 // pred_fallthru
        _
    $region6: #{unet_residual_block.3} parent=1 // loop_footer
      %s14 = sadd.s32 1, %s10
    $region7: #{unet_residual_block.3} parent=1 // loop_footer_branch
      %9 = sbr.rel target = $region3
    $region8: #{unet_residual_block.3} parent=1 // loop_exit
      _
    %318 = vsyncpa [#allocation3], 1
    %s319 = scalar_lea.sflag [#allocation3], 1
    %320 = vsyncpa %s319, 1

// kernel: unet_residual_block.4
$region0: #{unet_residual_block.4}
  #allocation0 [shape = 'u32[]', space=smem, size = 0x4, offset = 0x4, fixed_abs, tag = 'smem constant byte address 0x4 - core index']
  #allocation1 [shape = 'u32[144,128]{1,0:T(1,128)}', space=vmem, size = 0x12000, scoped, tag = 'internal scratch']
  %s0 = inlined_call_operand.vmem [shape: f32[2,16,16,32], index: 0, kind: input, shape index: {}, may-alias: {0,1,2}]
  %s1 = inlined_call_operand.vmem [shape: f32[2,16,16,32], index: 1, kind: input, shape index: {}, may-alias: {0,1,2}]
  %s2 = inlined_call_operand.vmem [shape: f32[2,16,16,32], index: 2, kind: input, shape index: {}, may-alias: {0,1,2}]
  %s3 = inlined_call_operand.vmem [shape: f32[2,1,32], index: 3, kind: input, shape index: {}]
  %s4 = inlined_call_operand.vmem [shape: f32[2,1,32], index: 4, kind: input, shape index: {}]
  %s5 = inlined_call_operand.vmem [shape: bf16[9,32,64], index: 5, kind: input, shape index: {}]
  %s6 = inlined_call_operand.vmem [shape: f32[1,64], index: 6, kind: input, shape index: {}]
  %s7 = inlined_call_operand.vmem [shape: bf16[2,16,16,64], index: 7, kind: output, shape index: {0}]
  %s8 = inlined_call_operand.vmem [shape: f32[2,2,2,64], index: 8, kind: output, shape index: {1}]
  %9 = xla_tuple %s7, %s8
  %s10 = sld [smem:[#allocation0]]
  $region69: #{unet_residual_block.4} parent=0
    _
  %s12 = ssub.s32 1, %s10
  %s13 = scalar_select 0, %s12, %s10
  loop: start=0, step=1, limit=6
  $region2: #{unet_residual_block.4} parent=0 // loop_pre_header
    _
  $region3: #{unet_residual_block.4} parent=0 // loop_header
    %s15 = sphi 0, %s19
    %p16 = scmp.ge.s32.totalorder %s15, 6
    %s22 = sphi 0, %s41
    %s23 = sphi 0, %s37
    %s24 = sphi 0, %s33
    %s25 = sphi 0, %s22
    %s26 = sphi 0, %s23
    %s27 = sphi 0, %s24
    %s28 = sphi 0, %s25
    %s29 = sphi 0, %s26
    %s30 = sphi 0, %s27
    %s46 = sphi 0, %s48
    %s49 = sphi 0, %s46
    %s50 = sphi 0, %s49
    %s66 = sphi 0, %s50
    %s82 = sphi 0, %s84
    %s85 = sphi 0, %s82
    %s86 = sphi 0, %s85
    %s102 = sphi 0, %s86
    %s118 = sphi 0, %s120
    %s121 = sphi 0, %s118
    %s122 = sphi 0, %s121
    %s138 = sphi 0, %s122
    %s144 = sphi 0, %s146
    %s147 = sphi 0, %s144
    %s148 = sphi 0, %s147
    %s164 = sphi 0, %s148
    %s170 = sphi 0, %s172
    %s173 = sphi 0, %s170
    %s174 = sphi 0, %s173
    %s190 = sphi 0, %s174
    %s196 = sphi 0, %s198
    %s199 = sphi 0, %s196
    %s200 = sphi 0, %s199
    %s216 = sphi 0, %s200
    %s222 = sphi 0, %s224
    %s225 = sphi 0, %s222
    %s226 = sphi 0, %s225
    %s242 = sphi 0, %s226
    %s252 = sphi 0, %s254
    %s255 = sphi 0, %s252
    %s256 = sphi 0, %s255
    %s272 = sphi 0, %s256
    %s282 = sphi 0, %s284
    %s285 = sphi 0, %s282
    %s286 = sphi 0, %s285
    %s302 = sphi 0, %s286
  $region4: #{unet_residual_block.4} parent=0 // loop_header_branch
    %18 = sbr.rel (%p16) target = $region8
  $region5: #{unet_residual_block.4} parent=0 // loop_body
    %s20 = ssub.s32 %s15, 1
    %s21 = ssub.s32 %s15, 2
    %s31 = sadd.s32 1, %s24
    %p32 = scmp.ge.s32.totalorder %s31, 2
    %s33 = scalar_select %p32, 0, %s31
    %s34 = sadd.s32 1, %s23
    %s35 = scalar_select %p32, %s34, %s23
    %p36 = scmp.ge.s32.totalorder %s35, 1
    %s37 = scalar_select %p36, 0, %s35
    %s38 = sadd.s32 1, %s22
    %s39 = scalar_select %p36, %s38, %s22
    %p40 = scmp.ge.s32.totalorder %s39, 2
    %s41 = scalar_select %p40, 0, %s39
    %s42 = ssub.s32 %s22, %s41
    %s43 = ssub.s32 %s24, %s33
    %s44 = sor.u32 %s42, %s43
    %p45 = scmp.eq.s32.totalorder %s44, 0
    %s47 = sadd.s32 %s46, 1
    %s48 = scalar_select %p45, %s46, %s47
    %p51 = pneg %p45
    %p52 = scmp.eq.s32.totalorder %s15, 3
    %p53 = por %p51, %p52
    %p54 = scmp.ne.s32.totalorder %s46, %s49
    %p55 = scmp.eq.s32.totalorder %s15, 0
    %p56 = por %p54, %p55
    %p57 = scmp.ne.s32.totalorder %s46, %s49
    %p58 = scmp.eq.s32.totalorder %s20, 3
    %p59 = por %p57, %p58
    %p60 = scmp.ne.s32.totalorder %s49, %s50
    %p61 = scmp.eq.s32.totalorder %s20, 0
    %p62 = por %p60, %p61
    %p63 = scmp.ne.s32.totalorder %s49, %s50
    %p64 = scmp.eq.s32.totalorder %s21, 3
    %p65 = por %p63, %p64
    %p67 = scmp.ne.s32.totalorder %s50, %s66
    %p68 = scmp.eq.s32.totalorder %s21, 0
    %p69 = por %p67, %p68
    %s70 = smul.u32 %s24, 8
    %s71 = ssub.s32 %s70, 1
    %p72 = scmp.gt.s32.totalorder %s71, 0
    %s73 = scalar_select %p72, %s71, 0
    %s74 = smul.u32 %s33, 8
    %s75 = ssub.s32 %s74, 1
    %p76 = scmp.gt.s32.totalorder %s75, 0
    %s77 = scalar_select %p76, %s75, 0
    %s78 = ssub.s32 %s22, %s41
    %s79 = ssub.s32 %s73, %s77
    %s80 = sor.u32 %s78, %s79
    %p81 = scmp.eq.s32.totalorder %s80, 0
    %s83 = sadd.s32 %s82, 1
    %s84 = scalar_select %p81, %s82, %s83
    %p87 = pneg %p81
    %p88 = scmp.eq.s32.totalorder %s15, 3
    %p89 = por %p87, %p88
    %p90 = scmp.ne.s32.totalorder %s82, %s85
    %p91 = scmp.eq.s32.totalorder %s15, 0
    %p92 = por %p90, %p91
    %p93 = scmp.ne.s32.totalorder %s82, %s85
    %p94 = scmp.eq.s32.totalorder %s20, 3
    %p95 = por %p93, %p94
    %p96 = scmp.ne.s32.totalorder %s85, %s86
    %p97 = scmp.eq.s32.totalorder %s20, 0
    %p98 = por %p96, %p97
    %p99 = scmp.ne.s32.totalorder %s85, %s86
    %p100 = scmp.eq.s32.totalorder %s21, 3
    %p101 = por %p99, %p100
    %p103 = scmp.ne.s32.totalorder %s86, %s102
    %p104 = scmp.eq.s32.totalorder %s21, 0
    %p105 = por %p103, %p104
    %s106 = smul.u32 %s24, 8
    %s107 = sadd.s32 %s106, 8
    %p108 = scmp.lt.s32.totalorder %s107, 15
    %s109 = scalar_select %p108, %s107, 15
    %s110 = smul.u32 %s33, 8
    %s111 = sadd.s32 %s110, 8
    %p112 = scmp.lt.s32.totalorder %s111, 15
    %s113 = scalar_select %p112, %s111, 15
    %s114 = ssub.s32 %s22, %s41
    %s115 = ssub.s32 %s109, %s113
    %s116 = sor.u32 %s114, %s115
    %p117 = scmp.eq.s32.totalorder %s116, 0
    %s119 = sadd.s32 %s118, 1
    %s120 = scalar_select %p117, %s118, %s119
    %p123 = pneg %p117
    %p124 = scmp.eq.s32.totalorder %s15, 3
    %p125 = por %p123, %p124
    %p126 = scmp.ne.s32.totalorder %s118, %s121
    %p127 = scmp.eq.s32.totalorder %s15, 0
    %p128 = por %p126, %p127
    %p129 = scmp.ne.s32.totalorder %s118, %s121
    %p130 = scmp.eq.s32.totalorder %s20, 3
    %p131 = por %p129, %p130
    %p132 = scmp.ne.s32.totalorder %s121, %s122
    %p133 = scmp.eq.s32.totalorder %s20, 0
    %p134 = por %p132, %p133
    %p135 = scmp.ne.s32.totalorder %s121, %s122
    %p136 = scmp.eq.s32.totalorder %s21, 3
    %p137 = por %p135, %p136
    %p139 = scmp.ne.s32.totalorder %s122, %s138
    %p140 = scmp.eq.s32.totalorder %s21, 0
    %p141 = por %p139, %p140
    %s142 = ssub.s32 %s22, %s41
    %p143 = scmp.eq.s32.totalorder %s142, 0
    %s145 = sadd.s32 %s144, 1
    %s146 = scalar_select %p143, %s144, %s145
    %p149 = pneg %p143
    %p150 = scmp.eq.s32.totalorder %s15, 3
    %p151 = por %p149, %p150
    %p152 = scmp.ne.s32.totalorder %s144, %s147
    %p153 = scmp.eq.s32.totalorder %s15, 0
    %p154 = por %p152, %p153
    %p155 = scmp.ne.s32.totalorder %s144, %s147
    %p156 = scmp.eq.s32.totalorder %s20, 3
    %p157 = por %p155, %p156
    %p158 = scmp.ne.s32.totalorder %s147, %s148
    %p159 = scmp.eq.s32.totalorder %s20, 0
    %p160 = por %p158, %p159
    %p161 = scmp.ne.s32.totalorder %s147, %s148
    %p162 = scmp.eq.s32.totalorder %s21, 3
    %p163 = por %p161, %p162
    %p165 = scmp.ne.s32.totalorder %s148, %s164
    %p166 = scmp.eq.s32.totalorder %s21, 0
    %p167 = por %p165, %p166
    %s168 = ssub.s32 %s22, %s41
    %p169 = scmp.eq.s32.totalorder %s168, 0
    %s171 = sadd.s32 %s170, 1
    %s172 = scalar_select %p169, %s170, %s171
    %p175 = pneg %p169
    %p176 = scmp.eq.s32.totalorder %s15, 3
    %p177 = por %p175, %p176
    %p178 = scmp.ne.s32.totalorder %s170, %s173
    %p179 = scmp.eq.s32.totalorder %s15, 0
    %p180 = por %p178, %p179
    %p181 = scmp.ne.s32.totalorder %s170, %s173
    %p182 = scmp.eq.s32.totalorder %s20, 3
    %p183 = por %p181, %p182
    %p184 = scmp.ne.s32.totalorder %s173, %s174
    %p185 = scmp.eq.s32.totalorder %s20, 0
    %p186 = por %p184, %p185
    %p187 = scmp.ne.s32.totalorder %s173, %s174
    %p188 = scmp.eq.s32.totalorder %s21, 3
    %p189 = por %p187, %p188
    %p191 = scmp.ne.s32.totalorder %s174, %s190
    %p192 = scmp.eq.s32.totalorder %s21, 0
    %p193 = por %p191, %p192
    %s194 = ssub.s32 %s23, %s37
    %p195 = scmp.eq.s32.totalorder %s194, 0
    %s197 = sadd.s32 %s196, 1
    %s198 = scalar_select %p195, %s196, %s197
    %p201 = pneg %p195
    %p202 = scmp.eq.s32.totalorder %s15, 3
    %p203 = por %p201, %p202
    %p204 = scmp.ne.s32.totalorder %s196, %s199
    %p205 = scmp.eq.s32.totalorder %s15, 0
    %p206 = por %p204, %p205
    %p207 = scmp.ne.s32.totalorder %s196, %s199
    %p208 = scmp.eq.s32.totalorder %s20, 3
    %p209 = por %p207, %p208
    %p210 = scmp.ne.s32.totalorder %s199, %s200
    %p211 = scmp.eq.s32.totalorder %s20, 0
    %p212 = por %p210, %p211
    %p213 = scmp.ne.s32.totalorder %s199, %s200
    %p214 = scmp.eq.s32.totalorder %s21, 3
    %p215 = por %p213, %p214
    %p217 = scmp.ne.s32.totalorder %s200, %s216
    %p218 = scmp.eq.s32.totalorder %s21, 0
    %p219 = por %p217, %p218
    %s220 = ssub.s32 %s23, %s37
    %p221 = scmp.eq.s32.totalorder %s220, 0
    %s223 = sadd.s32 %s222, 1
    %s224 = scalar_select %p221, %s222, %s223
    %p227 = pneg %p221
    %p228 = scmp.eq.s32.totalorder %s15, 3
    %p229 = por %p227, %p228
    %p230 = scmp.ne.s32.totalorder %s222, %s225
    %p231 = scmp.eq.s32.totalorder %s15, 0
    %p232 = por %p230, %p231
    %p233 = scmp.ne.s32.totalorder %s222, %s225
    %p234 = scmp.eq.s32.totalorder %s20, 3
    %p235 = por %p233, %p234
    %p236 = scmp.ne.s32.totalorder %s225, %s226
    %p237 = scmp.eq.s32.totalorder %s20, 0
    %p238 = por %p236, %p237
    %p239 = scmp.ne.s32.totalorder %s225, %s226
    %p240 = scmp.eq.s32.totalorder %s21, 3
    %p241 = por %p239, %p240
    %p243 = scmp.ne.s32.totalorder %s226, %s242
    %p244 = scmp.eq.s32.totalorder %s21, 0
    %p245 = por %p243, %p244
    %s246 = ssub.s32 %s22, %s41
    %s247 = ssub.s32 %s24, %s33
    %s248 = sor.u32 %s246, %s247
    %s249 = ssub.s32 %s23, %s37
    %s250 = sor.u32 %s248, %s249
    %p251 = scmp.eq.s32.totalorder %s250, 0
    %s253 = sadd.s32 %s252, 1
    %s254 = scalar_select %p251, %s252, %s253
    %p257 = pneg %p251
    %p258 = scmp.eq.s32.totalorder %s15, 3
    %p259 = por %p257, %p258
    %p260 = scmp.ne.s32.totalorder %s252, %s255
    %p261 = scmp.eq.s32.totalorder %s15, 0
    %p262 = por %p260, %p261
    %p263 = scmp.ne.s32.totalorder %s252, %s255
    %p264 = scmp.eq.s32.totalorder %s20, 3
    %p265 = por %p263, %p264
    %p266 = scmp.ne.s32.totalorder %s255, %s256
    %p267 = scmp.eq.s32.totalorder %s20, 0
    %p268 = por %p266, %p267
    %p269 = scmp.ne.s32.totalorder %s255, %s256
    %p270 = scmp.eq.s32.totalorder %s21, 3
    %p271 = por %p269, %p270
    %p273 = scmp.ne.s32.totalorder %s256, %s272
    %p274 = scmp.eq.s32.totalorder %s21, 0
    %p275 = por %p273, %p274
    %s276 = ssub.s32 %s22, %s41
    %s277 = ssub.s32 %s24, %s33
    %s278 = sor.u32 %s276, %s277
    %s279 = ssub.s32 %s23, %s37
    %s280 = sor.u32 %s278, %s279
    %p281 = scmp.eq.s32.totalorder %s280, 0
    %s283 = sadd.s32 %s282, 1
    %s284 = scalar_select %p281, %s282, %s283
    %p287 = pneg %p281
    %p288 = scmp.eq.s32.totalorder %s15, 3
    %p289 = por %p287, %p288
    %p290 = scmp.ne.s32.totalorder %s282, %s285
    %p291 = scmp.eq.s32.totalorder %s15, 0
    %p292 = por %p290, %p291
    %p293 = scmp.ne.s32.totalorder %s282, %s285
    %p294 = scmp.eq.s32.totalorder %s20, 3
    %p295 = por %p293, %p294
    %p296 = scmp.ne.s32.totalorder %s285, %s286
    %p297 = scmp.eq.s32.totalorder %s20, 0
    %p298 = por %p296, %p297
    %p299 = scmp.ne.s32.totalorder %s285, %s286
    %p300 = scmp.eq.s32.totalorder %s21, 3
    %p301 = por %p299, %p300
    %p303 = scmp.ne.s32.totalorder %s286, %s302
    %p304 = scmp.eq.s32.totalorder %s21, 0
    %p305 = por %p303, %p304
    %p306 = scmp.le.s32.totalorder 1, %s15
    %p307 = scmp.lt.s32.totalorder %s15, 5
    %p308 = pnand %p306, %p307
    %p309 = pneg %p308
    // Predicated region
    $region9: #{unet_residual_block.4} parent=5 // pred_check
      _
    $region10: #{unet_residual_block.4} parent=5 // pred_check_branch
      %311 = sbr.rel (%p308) target = $region12
    $region11: #{unet_residual_block.4} parent=5 // pred_region
      %s312 = ssub.s32 %s15, 1
      // Predicated region
      $region13: #{unet_residual_block.4} parent=11 // pred_check
        %p313 = pneg %p212
      $region14: #{unet_residual_block.4} parent=11 // pred_check_branch
        %315 = sbr.rel (%p313) target = $region16
      $region15: #{unet_residual_block.4} parent=11 // pred_region
        %p316 = scmp.lt.s32.totalorder %s26, 0
        %s317 = scalar_select %p316, %s26, 0
        %s318 = smul.addr %s317, 4
        %s319 = scalar_lea.vmem %s5, %s318
      $region16: #{unet_residual_block.4} parent=11 // pred_fallthru
        _
      // Predicated region
      $region17: #{unet_residual_block.4} parent=11 // pred_check
        %p320 = pneg %p238
      $region18: #{unet_residual_block.4} parent=11 // pred_check_branch
        %322 = sbr.rel (%p320) target = $region20
      $region19: #{unet_residual_block.4} parent=11 // pred_region
        %p323 = scmp.lt.s32.totalorder %s26, 0
        %s324 = scalar_select %p323, %s26, 0
        %s325 = scalar_lea.vmem %s6, %s324
      $region20: #{unet_residual_block.4} parent=11 // pred_fallthru
        _
    $region12: #{unet_residual_block.4} parent=5 // pred_fallthru
      _
    %p326 = scmp.lt.s32.totalorder %s15, 4
    // Predicated region
    $region21: #{unet_residual_block.4} parent=5 // pred_check
      %p327 = pneg %p326
    $region22: #{unet_residual_block.4} parent=5 // pred_check_branch
      %329 = sbr.rel (%p327) target = $region24
    $region23: #{unet_residual_block.4} parent=5 // pred_region
      // Predicated region
      $region25: #{unet_residual_block.4} parent=23 // pred_check
        %p330 = pneg %p56
      $region26: #{unet_residual_block.4} parent=23 // pred_check_branch
        %332 = sbr.rel (%p330) target = $region28
      $region27: #{unet_residual_block.4} parent=23 // pred_region
        %s333 = smul.u32 8, %s24
        %p334 = scmp.lt.s32.totalorder %s22, 1
        %s335 = scalar_select %p334, %s22, 1
        %p336 = scmp.lt.s32.totalorder %s333, 15
        %s337 = scalar_select %p336, %s333, 15
        %s338 = smul.addr %s337, 2
        %s339 = smul.addr %s335, 32
        %s340 = sadd.s32 %s338, %s339
        %s341 = smul.addr %s340, 8
        %s342 = scalar_lea.vmem %s0, %s341
        %s343 = smul.u32 8, %s24
      $region28: #{unet_residual_block.4} parent=23 // pred_fallthru
        _
      // Predicated region
      $region29: #{unet_residual_block.4} parent=23 // pred_check
        %p344 = pneg %p92
      $region30: #{unet_residual_block.4} parent=23 // pred_check_branch
        %346 = sbr.rel (%p344) target = $region32
      $region31: #{unet_residual_block.4} parent=23 // pred_region
        %s347 = smul.u32 %s24, 8
        %s348 = ssub.s32 %s347, 1
        %p349 = scmp.gt.s32.totalorder %s348, 0
        %s350 = scalar_select %p349, %s348, 0
        %p351 = scmp.lt.s32.totalorder %s22, 1
        %s352 = scalar_select %p351, %s22, 1
        %p353 = scmp.lt.s32.totalorder %s350, 15
        %s354 = scalar_select %p353, %s350, 15
        %s355 = smul.addr %s354, 2
        %s356 = smul.addr %s352, 32
        %s357 = sadd.s32 %s355, %s356
        %s358 = smul.addr %s357, 8
        %s359 = scalar_lea.vmem %s1, %s358
        %s360 = smul.u32 %s24, 8
        %s361 = ssub.s32 %s360, 1
        %p362 = scmp.gt.s32.totalorder %s361, 0
        %s363 = scalar_select %p362, %s361, 0
      $region32: #{unet_residual_block.4} parent=23 // pred_fallthru
        _
      // Predicated region
      $region33: #{unet_residual_block.4} parent=23 // pred_check
        %p364 = pneg %p128
      $region34: #{unet_residual_block.4} parent=23 // pred_check_branch
        %366 = sbr.rel (%p364) target = $region36
      $region35: #{unet_residual_block.4} parent=23 // pred_region
        %s367 = smul.u32 %s24, 8
        %s368 = sadd.s32 %s367, 8
        %p369 = scmp.lt.s32.totalorder %s368, 15
        %s370 = scalar_select %p369, %s368, 15
        %p371 = scmp.lt.s32.totalorder %s22, 1
        %s372 = scalar_select %p371, %s22, 1
        %p373 = scmp.lt.s32.totalorder %s370, 15
        %s374 = scalar_select %p373, %s370, 15
        %s375 = smul.addr %s374, 2
        %s376 = smul.addr %s372, 32
        %s377 = sadd.s32 %s375, %s376
        %s378 = smul.addr %s377, 8
        %s379 = scalar_lea.vmem %s2, %s378
        %s380 = smul.u32 %s24, 8
        %s381 = sadd.s32 %s380, 8
        %p382 = scmp.lt.s32.totalorder %s381, 15
        %s383 = scalar_select %p382, %s381, 15
      $region36: #{unet_residual_block.4} parent=23 // pred_fallthru
        _
      // Predicated region
      $region37: #{unet_residual_block.4} parent=23 // pred_check
        %p384 = pneg %p154
      $region38: #{unet_residual_block.4} parent=23 // pred_check_branch
        %386 = sbr.rel (%p384) target = $region40
      $region39: #{unet_residual_block.4} parent=23 // pred_region
        %p387 = scmp.lt.s32.totalorder %s22, 1
        %s388 = scalar_select %p387, %s22, 1
        %s389 = scalar_lea.vmem %s3, %s388
      $region40: #{unet_residual_block.4} parent=23 // pred_fallthru
        _
      // Predicated region
      $region41: #{unet_residual_block.4} parent=23 // pred_check
        %p390 = pneg %p180
      $region42: #{unet_residual_block.4} parent=23 // pred_check_branch
        %392 = sbr.rel (%p390) target = $region44
      $region43: #{unet_residual_block.4} parent=23 // pred_region
        %p393 = scmp.lt.s32.totalorder %s22, 1
        %s394 = scalar_select %p393, %s22, 1
        %s395 = scalar_lea.vmem %s4, %s394
      $region44: #{unet_residual_block.4} parent=23 // pred_fallthru
        _
    $region24: #{unet_residual_block.4} parent=5 // pred_fallthru
      _
    %p396 = scmp.le.s32.totalorder 1, %s15
    %p397 = scmp.lt.s32.totalorder %s15, 5
    %p398 = pnand %p396, %p397
    %p399 = pneg %p398
    // Predicated region
    $region45: #{unet_residual_block.4} parent=5 // pred_check
      _
    $region46: #{unet_residual_block.4} parent=5 // pred_check_branch
      %401 = sbr.rel (%p398) target = $region48
    $region47: #{unet_residual_block.4} parent=5 // pred_region
      %s402 = ssub.s32 %s15, 1
      %s403 = smul.u32 8, %s27
      %p404 = scmp.lt.s32.totalorder %s25, 1
      %s405 = scalar_select %p404, %s25, 1
      %p406 = scmp.lt.s32.totalorder %s403, 15
      %s407 = scalar_select %p406, %s403, 15
      %s408 = smul.addr %s407, 2
      %s409 = smul.addr %s405, 32
      %s410 = sadd.s32 %s408, %s409
      %s411 = smul.addr %s410, 8
      %s412 = scalar_lea.vmem %s0, %s411
      %p413 = pneg %p62
      %p414 = pneg %p59
      %s415 = smul.u32 %s27, 8
      %s416 = ssub.s32 %s415, 1
      %p417 = scmp.gt.s32.totalorder %s416, 0
      %s418 = scalar_select %p417, %s416, 0
      %p419 = scmp.lt.s32.totalorder %s25, 1
      %s420 = scalar_select %p419, %s25, 1
      %p421 = scmp.lt.s32.totalorder %s418, 15
      %s422 = scalar_select %p421, %s418, 15
      %s423 = smul.addr %s422, 2
      %s424 = smul.addr %s420, 32
      %s425 = sadd.s32 %s423, %s424
      %s426 = smul.addr %s425, 8
      %s427 = scalar_lea.vmem %s1, %s426
      %p428 = pneg %p98
      %p429 = pneg %p95
      %s430 = smul.u32 %s27, 8
      %s431 = sadd.s32 %s430, 8
      %p432 = scmp.lt.s32.totalorder %s431, 15
      %s433 = scalar_select %p432, %s431, 15
      %p434 = scmp.lt.s32.totalorder %s25, 1
      %s435 = scalar_select %p434, %s25, 1
      %p436 = scmp.lt.s32.totalorder %s433, 15
      %s437 = scalar_select %p436, %s433, 15
      %s438 = smul.addr %s437, 2
      %s439 = smul.addr %s435, 32
      %s440 = sadd.s32 %s438, %s439
      %s441 = smul.addr %s440, 8
      %s442 = scalar_lea.vmem %s2, %s441
      %p443 = pneg %p134
      %p444 = pneg %p131
      %p445 = scmp.lt.s32.totalorder %s25, 1
      %s446 = scalar_select %p445, %s25, 1
      %s447 = scalar_lea.vmem %s3, %s446
      %p448 = pneg %p160
      %p449 = pneg %p157
      %p450 = scmp.lt.s32.totalorder %s25, 1
      %s451 = scalar_select %p450, %s25, 1
      %s452 = scalar_lea.vmem %s4, %s451
      %p453 = pneg %p186
      %p454 = pneg %p183
      %p455 = scmp.lt.s32.totalorder %s26, 0
      %s456 = scalar_select %p455, %s26, 0
      %s457 = smul.addr %s456, 4
      %s458 = scalar_lea.vmem %s5, %s457
      %p459 = pneg %p212
      %p460 = pneg %p209
      %p461 = scmp.lt.s32.totalorder %s26, 0
      %s462 = scalar_select %p461, %s26, 0
      %s463 = scalar_lea.vmem %s6, %s462
      %p464 = pneg %p238
      %p465 = pneg %p235
      %p466 = pneg %p268
      %p467 = pneg %p265
      %s468 = smul.u32 8, %s27
      %p469 = scmp.lt.s32.totalorder %s25, 1
      %s470 = scalar_select %p469, %s25, 1
      %p471 = scmp.lt.s32.totalorder %s468, 15
      %s472 = scalar_select %p471, %s468, 15
      %p473 = scmp.lt.s32.totalorder %s26, 0
      %s474 = scalar_select %p473, %s26, 0
      %s475 = smul.addr %s472, 2
      %s476 = sadd.s32 %s474, %s475
      %s477 = smul.addr %s470, 32
      %s478 = sadd.s32 %s476, %s477
      %s479 = smul.addr %s478, 4
      %s480 = scalar_lea.vmem %s7, %s479
      %p481 = pneg %p298
      %p482 = pneg %p295
      %p483 = scmp.lt.s32.totalorder %s25, 1
      %s484 = scalar_select %p483, %s25, 1
      %p485 = scmp.lt.s32.totalorder %s27, 1
      %s486 = scalar_select %p485, %s27, 1
      %p487 = scmp.lt.s32.totalorder %s26, 0
      %s488 = scalar_select %p487, %s26, 0
      %s489 = sadd.s32 %s488, %s486
      %s490 = smul.addr %s484, 2
      %s491 = sadd.s32 %s489, %s490
      %s492 = smul.addr %s491, 2
      %s493 = scalar_lea.vmem %s8, %s492
      %s494 = smul.u32 8, %s27
      %p495 = scmp.lt.s32.totalorder %s25, 1
      %s496 = scalar_select %p495, %s25, 1
      %p497 = scmp.lt.s32.totalorder %s494, 15
      %s498 = scalar_select %p497, %s494, 15
      %s499 = smul.addr %s498, 2
      %s500 = smul.addr %s496, 32
      %s501 = sadd.s32 %s499, %s500
      %s502 = smul.addr %s501, 8
      %s503 = scalar_lea.vmem %s0, %s502
      %s504 = smul.u32 8, %s27
      %s505 = smul.u32 %s27, 8
      %s506 = ssub.s32 %s505, 1
      %p507 = scmp.gt.s32.totalorder %s506, 0
      %s508 = scalar_select %p507, %s506, 0
      %p509 = scmp.lt.s32.totalorder %s25, 1
      %s510 = scalar_select %p509, %s25, 1
      %p511 = scmp.lt.s32.totalorder %s508, 15
      %s512 = scalar_select %p511, %s508, 15
      %s513 = smul.addr %s512, 2
      %s514 = smul.addr %s510, 32
      %s515 = sadd.s32 %s513, %s514
      %s516 = smul.addr %s515, 8
      %s517 = scalar_lea.vmem %s1, %s516
      %s518 = smul.u32 %s27, 8
      %s519 = ssub.s32 %s518, 1
      %p520 = scmp.gt.s32.totalorder %s519, 0
      %s521 = scalar_select %p520, %s519, 0
      %s522 = smul.u32 %s27, 8
      %s523 = sadd.s32 %s522, 8
      %p524 = scmp.lt.s32.totalorder %s523, 15
      %s525 = scalar_select %p524, %s523, 15
      %p526 = scmp.lt.s32.totalorder %s25, 1
      %s527 = scalar_select %p526, %s25, 1
      %p528 = scmp.lt.s32.totalorder %s525, 15
      %s529 = scalar_select %p528, %s525, 15
      %s530 = smul.addr %s529, 2
      %s531 = smul.addr %s527, 32
      %s532 = sadd.s32 %s530, %s531
      %s533 = smul.addr %s532, 8
      %s534 = scalar_lea.vmem %s2, %s533
      %s535 = smul.u32 %s27, 8
      %s536 = sadd.s32 %s535, 8
      %p537 = scmp.lt.s32.totalorder %s536, 15
      %s538 = scalar_select %p537, %s536, 15
      %p539 = scmp.lt.s32.totalorder %s25, 1
      %s540 = scalar_select %p539, %s25, 1
      %s541 = scalar_lea.vmem %s3, %s540
      %p542 = scmp.lt.s32.totalorder %s25, 1
      %s543 = scalar_select %p542, %s25, 1
      %s544 = scalar_lea.vmem %s4, %s543
      %p545 = scmp.lt.s32.totalorder %s26, 0
      %s546 = scalar_select %p545, %s26, 0
      %s547 = smul.addr %s546, 4
      %s548 = scalar_lea.vmem %s5, %s547
      %p549 = scmp.lt.s32.totalorder %s26, 0
      %s550 = scalar_select %p549, %s26, 0
      %s551 = scalar_lea.vmem %s6, %s550
      %s552 = smul.u32 8, %s27
      %p553 = scmp.lt.s32.totalorder %s25, 1
      %s554 = scalar_select %p553, %s25, 1
      %p555 = scmp.lt.s32.totalorder %s552, 15
      %s556 = scalar_select %p555, %s552, 15
      %p557 = scmp.lt.s32.totalorder %s26, 0
      %s558 = scalar_select %p557, %s26, 0
      %s559 = smul.addr %s556, 2
      %s560 = sadd.s32 %s558, %s559
      %s561 = smul.addr %s554, 32
      %s562 = sadd.s32 %s560, %s561
      %s563 = smul.addr %s562, 4
      %s564 = scalar_lea.vmem %s7, %s563
      %s565 = smul.u32 8, %s27
      %p566 = scmp.lt.s32.totalorder %s25, 1
      %s567 = scalar_select %p566, %s25, 1
      %p568 = scmp.lt.s32.totalorder %s27, 1
      %s569 = scalar_select %p568, %s27, 1
      %p570 = scmp.lt.s32.totalorder %s26, 0
      %s571 = scalar_select %p570, %s26, 0
      %s572 = sadd.s32 %s571, %s569
      %s573 = smul.addr %s567, 2
      %s574 = sadd.s32 %s572, %s573
      %s575 = smul.addr %s574, 2
      %s576 = scalar_lea.vmem %s8, %s575
      %v578 = vld [vmem:[%s541] sm:$0x1]
      %v579 = vld [vmem:[%s544] sm:$0x1]
      %v580 = vld [vmem:[%s503] sm:$0xff]
      %v581 = vld [vmem:[%s503 + $0x8] sm:$0xff]
      %v582 = vld [vmem:[%s503 + $0x10] sm:$0xff]
      %v583 = vld [vmem:[%s503 + $0x18] sm:$0xff]
      %v584 = vld [vmem:[%s503 + $0x20] sm:$0xff]
      %v585 = vld [vmem:[%s503 + $0x28] sm:$0xff]
      %v586 = vld [vmem:[%s503 + $0x30] sm:$0xff]
      %v587 = vld [vmem:[%s503 + $0x38] sm:$0xff]
      %v588 = vld [vmem:[%s503 + $0x40] sm:$0xff]
      %v589 = vld [vmem:[%s503 + $0x48] sm:$0xff]
      %v590 = vld [vmem:[%s503 + $0x50] sm:$0xff]
      %v591 = vld [vmem:[%s503 + $0x58] sm:$0xff]
      %v592 = vld [vmem:[%s503 + $0x60] sm:$0xff]
      %v593 = vld [vmem:[%s503 + $0x68] sm:$0xff]
      %v594 = vld [vmem:[%s503 + $0x70] sm:$0xff]
      %v595 = vld [vmem:[%s503 + $0x78] sm:$0xff]
      %v597 = vlaneseq
      %v598 = vshrl.u32 %v597, 7
      %v599 = vsub.s32 0, %v598
      %v600 = vrot.slane %v578, %v599
      %v602 = vmul.f32 %v580, %v600
      %v603 = vmul.f32 %v581, %v600
      %v604 = vmul.f32 %v582, %v600
      %v605 = vmul.f32 %v583, %v600
      %v606 = vmul.f32 %v584, %v600
      %v607 = vmul.f32 %v585, %v600
      %v608 = vmul.f32 %v586, %v600
      %v609 = vmul.f32 %v587, %v600
      %v610 = vmul.f32 %v588, %v600
      %v611 = vmul.f32 %v589, %v600
      %v612 = vmul.f32 %v590, %v600
      %v613 = vmul.f32 %v591, %v600
      %v614 = vmul.f32 %v592, %v600
      %v615 = vmul.f32 %v593, %v600
      %v616 = vmul.f32 %v594, %v600
      %v617 = vmul.f32 %v595, %v600
      %v619 = vlaneseq
      %v620 = vshrl.u32 %v619, 7
      %v621 = vsub.s32 0, %v620
      %v622 = vrot.slane %v579, %v621
      %v624 = vadd.f32 %v602, %v622
      %v625 = vadd.f32 %v603, %v622
      %v626 = vadd.f32 %v604, %v622
      %v627 = vadd.f32 %v605, %v622
      %v628 = vadd.f32 %v606, %v622
      %v629 = vadd.f32 %v607, %v622
      %v630 = vadd.f32 %v608, %v622
      %v631 = vadd.f32 %v609, %v622
      %v632 = vadd.f32 %v610, %v622
      %v633 = vadd.f32 %v611, %v622
      %v634 = vadd.f32 %v612, %v622
      %v635 = vadd.f32 %v613, %v622
      %v636 = vadd.f32 %v614, %v622
      %v637 = vadd.f32 %v615, %v622
      %v638 = vadd.f32 %v616, %v622
      %v639 = vadd.f32 %v617, %v622
      %v640 = vxor.u32 %v624, 2147483648
      %v641 = vxor.u32 %v625, 2147483648
      %v642 = vxor.u32 %v626, 2147483648
      %v643 = vxor.u32 %v627, 2147483648
      %v644 = vxor.u32 %v628, 2147483648
      %v645 = vxor.u32 %v629, 2147483648
      %v646 = vxor.u32 %v630, 2147483648
      %v647 = vxor.u32 %v631, 2147483648
      %v648 = vxor.u32 %v632, 2147483648
      %v649 = vxor.u32 %v633, 2147483648
      %v650 = vxor.u32 %v634, 2147483648
      %v651 = vxor.u32 %v635, 2147483648
      %v652 = vxor.u32 %v636, 2147483648
      %v653 = vxor.u32 %v637, 2147483648
      %v654 = vxor.u32 %v638, 2147483648
      %v655 = vxor.u32 %v639, 2147483648
      %v656 = vmul.f32 %v640, 1.442695
      %v657 = vpow.pop %v656
      %v658 = vmul.f32 %v641, 1.442695
      %v659 = vpow.pop %v658
      %v660 = vmul.f32 %v642, 1.442695
      %v661 = vpow.pop %v660
      %v662 = vmul.f32 %v643, 1.442695
      %v663 = vpow.pop %v662
      %v664 = vmul.f32 %v644, 1.442695
      %v665 = vpow.pop %v664
      %v666 = vmul.f32 %v645, 1.442695
      %v667 = vpow.pop %v666
      %v668 = vmul.f32 %v646, 1.442695
      %v669 = vpow.pop %v668
      %v670 = vmul.f32 %v647, 1.442695
      %v671 = vpow.pop %v670
      %v672 = vmul.f32 %v648, 1.442695
      %v673 = vpow.pop %v672
      %v674 = vmul.f32 %v649, 1.442695
      %v675 = vpow.pop %v674
      %v676 = vmul.f32 %v650, 1.442695
      %v677 = vpow.pop %v676
      %v678 = vmul.f32 %v651, 1.442695
      %v679 = vpow.pop %v678
      %v680 = vmul.f32 %v652, 1.442695
      %v681 = vpow.pop %v680
      %v682 = vmul.f32 %v653, 1.442695
      %v683 = vpow.pop %v682
      %v684 = vmul.f32 %v654, 1.442695
      %v685 = vpow.pop %v684
      %v686 = vmul.f32 %v655, 1.442695
      %v687 = vpow.pop %v686
      %v688 = vadd.f32 %v657, 1.0
      %v689 = vadd.f32 %v659, 1.0
      %v690 = vadd.f32 %v661, 1.0
      %v691 = vadd.f32 %v663, 1.0
      %v692 = vadd.f32 %v665, 1.0
      %v693 = vadd.f32 %v667, 1.0
      %v694 = vadd.f32 %v669, 1.0
      %v695 = vadd.f32 %v671, 1.0
      %v696 = vadd.f32 %v673, 1.0
      %v697 = vadd.f32 %v675, 1.0
      %v698 = vadd.f32 %v677, 1.0
      %v699 = vadd.f32 %v679, 1.0
      %v700 = vadd.f32 %v681, 1.0
      %v701 = vadd.f32 %v683, 1.0
      %v702 = vadd.f32 %v685, 1.0
      %v703 = vadd.f32 %v687, 1.0
      %v704 = vrcp.pop %v688
      %v705 = vmul.f32 1.0, %v704
      %v706 = vrcp.pop %v689
      %v707 = vmul.f32 1.0, %v706
      %v708 = vrcp.pop %v690
      %v709 = vmul.f32 1.0, %v708
      %v710 = vrcp.pop %v691
      %v711 = vmul.f32 1.0, %v710
      %v712 = vrcp.pop %v692
      %v713 = vmul.f32 1.0, %v712
      %v714 = vrcp.pop %v693
      %v715 = vmul.f32 1.0, %v714
      %v716 = vrcp.pop %v694
      %v717 = vmul.f32 1.0, %v716
      %v718 = vrcp.pop %v695
      %v719 = vmul.f32 1.0, %v718
      %v720 = vrcp.pop %v696
      %v721 = vmul.f32 1.0, %v720
      %v722 = vrcp.pop %v697
      %v723 = vmul.f32 1.0, %v722
      %v724 = vrcp.pop %v698
      %v725 = vmul.f32 1.0, %v724
      %v726 = vrcp.pop %v699
      %v727 = vmul.f32 1.0, %v726
      %v728 = vrcp.pop %v700
      %v729 = vmul.f32 1.0, %v728
      %v730 = vrcp.pop %v701
      %v731 = vmul.f32 1.0, %v730
      %v732 = vrcp.pop %v702
      %v733 = vmul.f32 1.0, %v732
      %v734 = vrcp.pop %v703
      %v735 = vmul.f32 1.0, %v734
      %v736 = vmul.f32 %v624, %v705
      %v737 = vmul.f32 %v625, %v707
      %v738 = vmul.f32 %v626, %v709
      %v739 = vmul.f32 %v627, %v711
      %v740 = vmul.f32 %v628, %v713
      %v741 = vmul.f32 %v629, %v715
      %v742 = vmul.f32 %v630, %v717
      %v743 = vmul.f32 %v631, %v719
      %v744 = vmul.f32 %v632, %v721
      %v745 = vmul.f32 %v633, %v723
      %v746 = vmul.f32 %v634, %v725
      %v747 = vmul.f32 %v635, %v727
      %v748 = vmul.f32 %v636, %v729
      %v749 = vmul.f32 %v637, %v731
      %v750 = vmul.f32 %v638, %v733
      %v751 = vmul.f32 %v639, %v735
      %v752 = vld [vmem:[%s517] sm:$0xff]
      %v753 = vld [vmem:[%s517 + $0x8] sm:$0xff]
      %v754 = vmul.f32 %v752, %v600
      %v755 = vmul.f32 %v753, %v600
      %v756 = vadd.f32 %v754, %v622
      %v757 = vadd.f32 %v755, %v622
      %v758 = vxor.u32 %v756, 2147483648
      %v759 = vxor.u32 %v757, 2147483648
      %v760 = vmul.f32 %v758, 1.442695
      %v761 = vpow.pop %v760
      %v762 = vmul.f32 %v759, 1.442695
      %v763 = vpow.pop %v762
      %v764 = vadd.f32 %v761, 1.0
      %v765 = vadd.f32 %v763, 1.0
      %v766 = vrcp.pop %v764
      %v767 = vmul.f32 1.0, %v766
      %v768 = vrcp.pop %v765
      %v769 = vmul.f32 1.0, %v768
      %v770 = vmul.f32 %v756, %v767
      %v771 = vmul.f32 %v757, %v769
      %p772 = scmp.gt.s32.totalorder %s27, 0
      %s773 = scalar_select %p772, 1, 0
      %s774 = scvt.s32.f32 %s773
      %v775 = vstv %s774
      %v776 = vmul.f32 %v770, %v775
      %v777 = vmul.f32 %v771, %v775
      %v778 = vld [vmem:[%s534] sm:$0xff]
      %v779 = vld [vmem:[%s534 + $0x8] sm:$0xff]
      %v780 = vmul.f32 %v778, %v600
      %v781 = vmul.f32 %v779, %v600
      %v782 = vadd.f32 %v780, %v622
      %v783 = vadd.f32 %v781, %v622
      %v784 = vxor.u32 %v782, 2147483648
      %v785 = vxor.u32 %v783, 2147483648
      %v786 = vmul.f32 %v784, 1.442695
      %v787 = vpow.pop %v786
      %v788 = vmul.f32 %v785, 1.442695
      %v789 = vpow.pop %v788
      %v790 = vadd.f32 %v787, 1.0
      %v791 = vadd.f32 %v789, 1.0
      %v792 = vrcp.pop %v790
      %v793 = vmul.f32 1.0, %v792
      %v794 = vrcp.pop %v791
      %v795 = vmul.f32 1.0, %v794
      %v796 = vmul.f32 %v782, %v793
      %v797 = vmul.f32 %v783, %v795
      %p798 = scmp.lt.s32.totalorder %s27, 1
      %s799 = scalar_select %p798, 1, 0
      %s800 = scvt.s32.f32 %s799
      %v801 = vstv %s800
      %v802 = vmul.f32 %v796, %v801
      %v803 = vmul.f32 %v797, %v801
      %vm824 = vcmask 1040384
      %v825 = vrot.slane %v776, 7
      %v826 = vrot.slane %v777, 7
      %v827 = vsel %vm824, %v825, %v826
      %v828 = vrot.slane %v736, 7
      %v829 = vrot.slane %v737, 7
      %v830 = vsel %vm824, %v828, %v829
      %v831 = vrot.slane %v738, 7
      %v832 = vrot.slane %v739, 7
      %v833 = vsel %vm824, %v831, %v832
      %v834 = vrot.slane %v740, 7
      %v835 = vrot.slane %v741, 7
      %v836 = vsel %vm824, %v834, %v835
      %v837 = vrot.slane %v742, 7
      %v838 = vrot.slane %v743, 7
      %v839 = vsel %vm824, %v837, %v838
      %v840 = vrot.slane %v744, 7
      %v841 = vrot.slane %v745, 7
      %v842 = vsel %vm824, %v840, %v841
      %v843 = vrot.slane %v746, 7
      %v844 = vrot.slane %v747, 7
      %v845 = vsel %vm824, %v843, %v844
      %v846 = vrot.slane %v748, 7
      %v847 = vrot.slane %v749, 7
      %v848 = vsel %vm824, %v846, %v847
      %v849 = vrot.slane %v750, 7
      %v850 = vrot.slane %v751, 7
      %v851 = vsel %vm824, %v849, %v850
      %v852 = vrot.slane %v802, 7
      %v853 = vrot.slane %v803, 7
      %v854 = vsel %vm824, %v852, %v853
      %v875 = vsel %vm824, 0.0, %v825
      %v876 = vsel %vm824, 0.0, %v828
      %v877 = vsel %vm824, 0.0, %v831
      %v878 = vsel %vm824, 0.0, %v834
      %v879 = vsel %vm824, 0.0, %v837
      %v880 = vsel %vm824, 0.0, %v840
      %v881 = vsel %vm824, 0.0, %v843
      %v882 = vsel %vm824, 0.0, %v846
      %v883 = vsel %vm824, 0.0, %v849
      %v884 = vsel %vm824, 0.0, %v852
      %vm885 = vcmask 1046528
      %v886 = vrot.slane %v776, 1
      %v887 = vrot.slane %v777, 1
      %v888 = vsel %vm885, %v886, %v887
      %v889 = vrot.slane %v736, 1
      %v890 = vrot.slane %v737, 1
      %v891 = vsel %vm885, %v889, %v890
      %v892 = vrot.slane %v738, 1
      %v893 = vrot.slane %v739, 1
      %v894 = vsel %vm885, %v892, %v893
      %v895 = vrot.slane %v740, 1
      %v896 = vrot.slane %v741, 1
      %v897 = vsel %vm885, %v895, %v896
      %v898 = vrot.slane %v742, 1
      %v899 = vrot.slane %v743, 1
      %v900 = vsel %vm885, %v898, %v899
      %v901 = vrot.slane %v744, 1
      %v902 = vrot.slane %v745, 1
      %v903 = vsel %vm885, %v901, %v902
      %v904 = vrot.slane %v746, 1
      %v905 = vrot.slane %v747, 1
      %v906 = vsel %vm885, %v904, %v905
      %v907 = vrot.slane %v748, 1
      %v908 = vrot.slane %v749, 1
      %v909 = vsel %vm885, %v907, %v908
      %v910 = vrot.slane %v750, 1
      %v911 = vrot.slane %v751, 1
      %v912 = vsel %vm885, %v910, %v911
      %v913 = vrot.slane %v802, 1
      %v914 = vrot.slane %v803, 1
      %v915 = vsel %vm885, %v913, %v914
      %v936 = vsel %vm885, %v887, 0.0
      %v937 = vsel %vm885, %v890, 0.0
      %v938 = vsel %vm885, %v893, 0.0
      %v939 = vsel %vm885, %v896, 0.0
      %v940 = vsel %vm885, %v899, 0.0
      %v941 = vsel %vm885, %v902, 0.0
      %v942 = vsel %vm885, %v905, 0.0
      %v943 = vsel %vm885, %v908, 0.0
      %v944 = vsel %vm885, %v911, 0.0
      %v945 = vsel %vm885, %v914, 0.0
      %v946 = vpack.c.bf16 %v827, %v875
      %v947 = vpack.c.bf16 %v830, %v876
      %v948 = vpack.c.bf16 %v833, %v877
      %v949 = vpack.c.bf16 %v836, %v878
      %v950 = vpack.c.bf16 %v839, %v879
      %v951 = vpack.c.bf16 %v842, %v880
      %v952 = vpack.c.bf16 %v845, %v881
      %v953 = vpack.c.bf16 %v848, %v882
      %v954 = vpack.c.bf16 %v851, %v883
      %v955 = vpack.c.bf16 %v854, %v884
      %v956 = vpack.c.bf16 %v777, %v776
      %v957 = vpack.c.bf16 %v737, %v736
      %v958 = vpack.c.bf16 %v739, %v738
      %v959 = vpack.c.bf16 %v741, %v740
      %v960 = vpack.c.bf16 %v743, %v742
      %v961 = vpack.c.bf16 %v745, %v744
      %v962 = vpack.c.bf16 %v747, %v746
      %v963 = vpack.c.bf16 %v749, %v748
      %v964 = vpack.c.bf16 %v751, %v750
      %v965 = vpack.c.bf16 %v803, %v802
      %v966 = vpack.c.bf16 %v936, %v888
      %v967 = vpack.c.bf16 %v937, %v891
      %v968 = vpack.c.bf16 %v938, %v894
      %v969 = vpack.c.bf16 %v939, %v897
      %v970 = vpack.c.bf16 %v940, %v900
      %v971 = vpack.c.bf16 %v941, %v903
      %v972 = vpack.c.bf16 %v942, %v906
      %v973 = vpack.c.bf16 %v943, %v909
      %v974 = vpack.c.bf16 %v944, %v912
      %v975 = vpack.c.bf16 %v945, %v915
      %v976 = vld [vmem:[%s548] sm:$0xf]
      %v977 = vld [vmem:[%s548 + $0x4] sm:$0xf]
      %v978 = vld [vmem:[%s548 + $0x8] sm:$0xf]
      %v979 = vld [vmem:[%s548 + $0xc] sm:$0xf]
      %s980 = scalar_lea.vmem %s548, 16
      %v981 = vld [vmem:[%s980] sm:$0xf]
      %v982 = vld [vmem:[%s980 + $0x4] sm:$0xf]
      %v983 = vld [vmem:[%s980 + $0x8] sm:$0xf]
      %v984 = vld [vmem:[%s980 + $0xc] sm:$0xf]
      %v989 = vunpack.c.l.b16 %v981
      %v990 = vunpack.c.l.b16 %v982
      %v991 = vunpack.c.l.b16 %v983
      %v992 = vunpack.c.l.b16 %v984
      %v993 = vpack.c.b16 %v990, %v989
      %v994 = vpack.c.b16 %v992, %v991
      %vm997 = vcmask 261120
      %v999 = vsel %vm997, %v956, 0
      %v1002 = vsel %vm997, %v957, 0
      %v1005 = vsel %vm997, %v958, 0
      %v1008 = vsel %vm997, %v959, 0
      %v1011 = vsel %vm997, %v960, 0
      %v1014 = vsel %vm997, %v961, 0
      %v1017 = vsel %vm997, %v962, 0
      %v1020 = vsel %vm997, %v963, 0
      %1022 = vmatprep.subr.bf16.mxu0 0
      %1023 = vmatpush1.bf16.msra.mxu0 0
      %1024 = vmatprep.subr.bf16.mxu0 0
      %1025 = vmatpush1.bf16.msra.mxu0 0
      %1026 = vmatprep.subr.bf16.mxu0 0
      %1027 = vmatpush1.bf16.msra.mxu0 0
      %1028 = vmatprep.subr.bf16.mxu0 0
      %1029 = vmatpush1.bf16.msra.mxu0 0
      %1030 = vmatprep.subr.bf16.mxu0 0
      %1031 = vmatpush1.bf16.msra.mxu0 0
      %1032 = vmatprep.subr.bf16.mxu0 0
      %1033 = vmatpush1.bf16.msra.mxu0 0
      %1034 = vmatprep.subr.bf16.mxu0 0
      %1035 = vmatpush1.bf16.msra.mxu0 %v994
      %1036 = vmatprep.subr.bf16.mxu0 0
      %1037 = vmatpush1.bf16.msra.mxu0 %v993
      %1038 = vmatprep.subr.bf16.mxu0 0
      %1039 = vmatpush2.bf16.msra.mxu0 0
      %1040 = vmatprep.subr.bf16.mxu0 0
      %1041 = vmatpush2.bf16.msra.mxu0 0
      %1042 = vmatprep.subr.bf16.mxu0 0
      %1043 = vmatpush2.bf16.msra.mxu0 0
      %1044 = vmatprep.subr.bf16.mxu0 0
      %1045 = vmatpush2.bf16.msra.mxu0 0
      %1046 = vmatprep.subr.bf16.mxu0 0
      %1047 = vmatpush2.bf16.msra.mxu0 0
      %1048 = vmatprep.subr.bf16.mxu0 0
      %1049 = vmatpush2.bf16.msra.mxu0 0
      %1050 = vmatprep.subr.bf16.mxu0 0
      %1051 = vmatpush2.bf16.msra.mxu0 0
      %1052 = vmatprep.subr.bf16.mxu0 0
      %1053 = vmatpush2.bf16.msra.mxu0 0
      %1054 = vmatprep.mubr.bf16.mxu0 0
      %1055 = vmatmul.mubr.bf16.gmra.mxu0 %v999
      %v1056 = vpop.f32.mrf.mxu0
      %v1057 = vadd.f32 0.0, %v1056
      %v1058 = vpop.f32.mrf.mxu0
      %v1059 = vpop.f32.mrf.mxu0
      %v1060 = vadd.f32 0.0, %v1059
      %v1061 = vpop.f32.mrf.mxu0
      %1062 = vmatprep.mubr.bf16.mxu0 0
      %1063 = vmatmul.mubr.bf16.gmra.mxu0 %v1002
      %v1064 = vpop.f32.mrf.mxu0
      %v1065 = vadd.f32 0.0, %v1064
      %v1066 = vpop.f32.mrf.mxu0
      %v1067 = vpop.f32.mrf.mxu0
      %v1068 = vadd.f32 0.0, %v1067
      %v1069 = vpop.f32.mrf.mxu0
      %1070 = vmatprep.mubr.bf16.mxu0 0
      %1071 = vmatmul.mubr.bf16.gmra.mxu0 %v1005
      %v1072 = vpop.f32.mrf.mxu0
      %v1073 = vadd.f32 0.0, %v1072
      %v1074 = vpop.f32.mrf.mxu0
      %v1075 = vpop.f32.mrf.mxu0
      %v1076 = vadd.f32 0.0, %v1075
      %v1077 = vpop.f32.mrf.mxu0
      %1078 = vmatprep.mubr.bf16.mxu0 0
      %1079 = vmatmul.mubr.bf16.gmra.mxu0 %v1008
      %v1080 = vpop.f32.mrf.mxu0
      %v1081 = vadd.f32 0.0, %v1080
      %v1082 = vpop.f32.mrf.mxu0
      %v1083 = vpop.f32.mrf.mxu0
      %v1084 = vadd.f32 0.0, %v1083
      %v1085 = vpop.f32.mrf.mxu0
      %1086 = vmatprep.mubr.bf16.mxu0 0
      %1087 = vmatmul.mubr.bf16.gmra.mxu0 %v1011
      %v1088 = vpop.f32.mrf.mxu0
      %v1089 = vadd.f32 0.0, %v1088
      %v1090 = vpop.f32.mrf.mxu0
      %v1091 = vpop.f32.mrf.mxu0
      %v1092 = vadd.f32 0.0, %v1091
      %v1093 = vpop.f32.mrf.mxu0
      %1094 = vmatprep.mubr.bf16.mxu0 0
      %1095 = vmatmul.mubr.bf16.gmra.mxu0 %v1014
      %v1096 = vpop.f32.mrf.mxu0
      %v1097 = vadd.f32 0.0, %v1096
      %v1098 = vpop.f32.mrf.mxu0
      %v1099 = vpop.f32.mrf.mxu0
      %v1100 = vadd.f32 0.0, %v1099
      %v1101 = vpop.f32.mrf.mxu0
      %1102 = vmatprep.mubr.bf16.mxu0 0
      %1103 = vmatmul.mubr.bf16.gmra.mxu0 %v1017
      %v1104 = vpop.f32.mrf.mxu0
      %v1105 = vadd.f32 0.0, %v1104
      %v1106 = vpop.f32.mrf.mxu0
      %v1107 = vpop.f32.mrf.mxu0
      %v1108 = vadd.f32 0.0, %v1107
      %v1109 = vpop.f32.mrf.mxu0
      %1110 = vmatprep.mubr.bf16.mxu0 0
      %1111 = vmatmul.mubr.bf16.gmra.mxu0 %v1020
      %v1112 = vpop.f32.mrf.mxu0
      %v1113 = vadd.f32 0.0, %v1112
      %v1114 = vpop.f32.mrf.mxu0
      %v1115 = vpop.f32.mrf.mxu0
      %v1116 = vadd.f32 0.0, %v1115
      %v1117 = vpop.f32.mrf.mxu0
      %1118 = vdwg.mxu0
      %v1123 = vunpack.c.l.b16 %v976
      %v1124 = vunpack.c.l.b16 %v977
      %v1125 = vunpack.c.l.b16 %v978
      %v1126 = vunpack.c.l.b16 %v979
      %v1127 = vpack.c.b16 %v1124, %v1123
      %v1128 = vpack.c.b16 %v1126, %v1125
      %v1132 = vsel %vm997, %v946, 0
      %v1135 = vsel %vm997, %v947, 0
      %v1138 = vsel %vm997, %v948, 0
      %v1141 = vsel %vm997, %v949, 0
      %v1144 = vsel %vm997, %v950, 0
      %v1147 = vsel %vm997, %v951, 0
      %v1150 = vsel %vm997, %v952, 0
      %v1153 = vsel %vm997, %v953, 0
      %1155 = vmatprep.subr.bf16.mxu0 0
      %1156 = vmatpush1.bf16.msra.mxu0 0
      %1157 = vmatprep.subr.bf16.mxu0 0
      %1158 = vmatpush1.bf16.msra.mxu0 0
      %1159 = vmatprep.subr.bf16.mxu0 0
      %1160 = vmatpush1.bf16.msra.mxu0 0
      %1161 = vmatprep.subr.bf16.mxu0 0
      %1162 = vmatpush1.bf16.msra.mxu0 0
      %1163 = vmatprep.subr.bf16.mxu0 0
      %1164 = vmatpush1.bf16.msra.mxu0 0
      %1165 = vmatprep.subr.bf16.mxu0 0
      %1166 = vmatpush1.bf16.msra.mxu0 0
      %1167 = vmatprep.subr.bf16.mxu0 0
      %1168 = vmatpush1.bf16.msra.mxu0 %v1128
      %1169 = vmatprep.subr.bf16.mxu0 0
      %1170 = vmatpush1.bf16.msra.mxu0 %v1127
      %1171 = vmatprep.subr.bf16.mxu0 0
      %1172 = vmatpush2.bf16.msra.mxu0 0
      %1173 = vmatprep.subr.bf16.mxu0 0
      %1174 = vmatpush2.bf16.msra.mxu0 0
      %1175 = vmatprep.subr.bf16.mxu0 0
      %1176 = vmatpush2.bf16.msra.mxu0 0
      %1177 = vmatprep.subr.bf16.mxu0 0
      %1178 = vmatpush2.bf16.msra.mxu0 0
      %1179 = vmatprep.subr.bf16.mxu0 0
      %1180 = vmatpush2.bf16.msra.mxu0 0
      %1181 = vmatprep.subr.bf16.mxu0 0
      %1182 = vmatpush2.bf16.msra.mxu0 0
      %1183 = vmatprep.subr.bf16.mxu0 0
      %1184 = vmatpush2.bf16.msra.mxu0 0
      %1185 = vmatprep.subr.bf16.mxu0 0
      %1186 = vmatpush2.bf16.msra.mxu0 0
      %1187 = vmatprep.mubr.bf16.mxu0 0
      %1188 = vmatmul.mubr.bf16.gmra.mxu0 %v1132
      %v1189 = vpop.f32.mrf.mxu0
      %v1190 = vadd.f32 %v1057, %v1189
      %v1191 = vpop.f32.mrf.mxu0
      %v1192 = vpop.f32.mrf.mxu0
      %v1193 = vadd.f32 %v1060, %v1192
      %v1194 = vpop.f32.mrf.mxu0
      %1195 = vmatprep.mubr.bf16.mxu0 0
      %1196 = vmatmul.mubr.bf16.gmra.mxu0 %v1135
      %v1197 = vpop.f32.mrf.mxu0
      %v1198 = vadd.f32 %v1065, %v1197
      %v1199 = vpop.f32.mrf.mxu0
      %v1200 = vpop.f32.mrf.mxu0
      %v1201 = vadd.f32 %v1068, %v1200
      %v1202 = vpop.f32.mrf.mxu0
      %1203 = vmatprep.mubr.bf16.mxu0 0
      %1204 = vmatmul.mubr.bf16.gmra.mxu0 %v1138
      %v1205 = vpop.f32.mrf.mxu0
      %v1206 = vadd.f32 %v1073, %v1205
      %v1207 = vpop.f32.mrf.mxu0
      %v1208 = vpop.f32.mrf.mxu0
      %v1209 = vadd.f32 %v1076, %v1208
      %v1210 = vpop.f32.mrf.mxu0
      %1211 = vmatprep.mubr.bf16.mxu0 0
      %1212 = vmatmul.mubr.bf16.gmra.mxu0 %v1141
      %v1213 = vpop.f32.mrf.mxu0
      %v1214 = vadd.f32 %v1081, %v1213
      %v1215 = vpop.f32.mrf.mxu0
      %v1216 = vpop.f32.mrf.mxu0
      %v1217 = vadd.f32 %v1084, %v1216
      %v1218 = vpop.f32.mrf.mxu0
      %1219 = vmatprep.mubr.bf16.mxu0 0
      %1220 = vmatmul.mubr.bf16.gmra.mxu0 %v1144
      %v1221 = vpop.f32.mrf.mxu0
      %v1222 = vadd.f32 %v1089, %v1221
      %v1223 = vpop.f32.mrf.mxu0
      %v1224 = vpop.f32.mrf.mxu0
      %v1225 = vadd.f32 %v1092, %v1224
      %v1226 = vpop.f32.mrf.mxu0
      %1227 = vmatprep.mubr.bf16.mxu0 0
      %1228 = vmatmul.mubr.bf16.gmra.mxu0 %v1147
      %v1229 = vpop.f32.mrf.mxu0
      %v1230 = vadd.f32 %v1097, %v1229
      %v1231 = vpop.f32.mrf.mxu0
      %v1232 = vpop.f32.mrf.mxu0
      %v1233 = vadd.f32 %v1100, %v1232
      %v1234 = vpop.f32.mrf.mxu0
      %1235 = vmatprep.mubr.bf16.mxu0 0
      %1236 = vmatmul.mubr.bf16.gmra.mxu0 %v1150
      %v1237 = vpop.f32.mrf.mxu0
      %v1238 = vadd.f32 %v1105, %v1237
      %v1239 = vpop.f32.mrf.mxu0
      %v1240 = vpop.f32.mrf.mxu0
      %v1241 = vadd.f32 %v1108, %v1240
      %v1242 = vpop.f32.mrf.mxu0
      %1243 = vmatprep.mubr.bf16.mxu0 0
      %1244 = vmatmul.mubr.bf16.gmra.mxu0 %v1153
      %v1245 = vpop.f32.mrf.mxu0
      %v1246 = vadd.f32 %v1113, %v1245
      %v1247 = vpop.f32.mrf.mxu0
      %v1248 = vpop.f32.mrf.mxu0
      %v1249 = vadd.f32 %v1116, %v1248
      %v1250 = vpop.f32.mrf.mxu0
      %1251 = vdwg.mxu0
      %s1252 = scalar_lea.vmem %s548, 32
      %v1253 = vld [vmem:[%s1252] sm:$0xf]
      %v1254 = vld [vmem:[%s1252 + $0x4] sm:$0xf]
      %v1255 = vld [vmem:[%s1252 + $0x8] sm:$0xf]
      %v1256 = vld [vmem:[%s1252 + $0xc] sm:$0xf]
      %v1261 = vunpack.c.l.b16 %v1253
      %v1262 = vunpack.c.l.b16 %v1254
      %v1263 = vunpack.c.l.b16 %v1255
      %v1264 = vunpack.c.l.b16 %v1256
      %v1265 = vpack.c.b16 %v1262, %v1261
      %v1266 = vpack.c.b16 %v1264, %v1263
      %v1270 = vsel %vm997, %v966, 0
      %v1273 = vsel %vm997, %v967, 0
      %v1276 = vsel %vm997, %v968, 0
      %v1279 = vsel %vm997, %v969, 0
      %v1282 = vsel %vm997, %v970, 0
      %v1285 = vsel %vm997, %v971, 0
      %v1288 = vsel %vm997, %v972, 0
      %v1291 = vsel %vm997, %v973, 0
      %1293 = vmatprep.subr.bf16.mxu0 0
      %1294 = vmatpush1.bf16.msra.mxu0 0
      %1295 = vmatprep.subr.bf16.mxu0 0
      %1296 = vmatpush1.bf16.msra.mxu0 0
      %1297 = vmatprep.subr.bf16.mxu0 0
      %1298 = vmatpush1.bf16.msra.mxu0 0
      %1299 = vmatprep.subr.bf16.mxu0 0
      %1300 = vmatpush1.bf16.msra.mxu0 0
      %1301 = vmatprep.subr.bf16.mxu0 0
      %1302 = vmatpush1.bf16.msra.mxu0 0
      %1303 = vmatprep.subr.bf16.mxu0 0
      %1304 = vmatpush1.bf16.msra.mxu0 0
      %1305 = vmatprep.subr.bf16.mxu0 0
      %1306 = vmatpush1.bf16.msra.mxu0 %v1266
      %1307 = vmatprep.subr.bf16.mxu0 0
      %1308 = vmatpush1.bf16.msra.mxu0 %v1265
      %1309 = vmatprep.subr.bf16.mxu0 0
      %1310 = vmatpush2.bf16.msra.mxu0 0
      %1311 = vmatprep.subr.bf16.mxu0 0
      %1312 = vmatpush2.bf16.msra.mxu0 0
      %1313 = vmatprep.subr.bf16.mxu0 0
      %1314 = vmatpush2.bf16.msra.mxu0 0
      %1315 = vmatprep.subr.bf16.mxu0 0
      %1316 = vmatpush2.bf16.msra.mxu0 0
      %1317 = vmatprep.subr.bf16.mxu0 0
      %1318 = vmatpush2.bf16.msra.mxu0 0
      %1319 = vmatprep.subr.bf16.mxu0 0
      %1320 = vmatpush2.bf16.msra.mxu0 0
      %1321 = vmatprep.subr.bf16.mxu0 0
      %1322 = vmatpush2.bf16.msra.mxu0 0
      %1323 = vmatprep.subr.bf16.mxu0 0
      %1324 = vmatpush2.bf16.msra.mxu0 0
      %1325 = vmatprep.mubr.bf16.mxu0 0
      %1326 = vmatmul.mubr.bf16.gmra.mxu0 %v1270
      %v1327 = vpop.f32.mrf.mxu0
      %v1328 = vadd.f32 0.0, %v1327
      %v1329 = vpop.f32.mrf.mxu0
      %v1330 = vpop.f32.mrf.mxu0
      %v1331 = vadd.f32 0.0, %v1330
      %v1332 = vpop.f32.mrf.mxu0
      %1333 = vmatprep.mubr.bf16.mxu0 0
      %1334 = vmatmul.mubr.bf16.gmra.mxu0 %v1273
      %v1335 = vpop.f32.mrf.mxu0
      %v1336 = vadd.f32 0.0, %v1335
      %v1337 = vpop.f32.mrf.mxu0
      %v1338 = vpop.f32.mrf.mxu0
      %v1339 = vadd.f32 0.0, %v1338
      %v1340 = vpop.f32.mrf.mxu0
      %1341 = vmatprep.mubr.bf16.mxu0 0
      %1342 = vmatmul.mubr.bf16.gmra.mxu0 %v1276
      %v1343 = vpop.f32.mrf.mxu0
      %v1344 = vadd.f32 0.0, %v1343
      %v1345 = vpop.f32.mrf.mxu0
      %v1346 = vpop.f32.mrf.mxu0
      %v1347 = vadd.f32 0.0, %v1346
      %v1348 = vpop.f32.mrf.mxu0
      %1349 = vmatprep.mubr.bf16.mxu0 0
      %1350 = vmatmul.mubr.bf16.gmra.mxu0 %v1279
      %v1351 = vpop.f32.mrf.mxu0
      %v1352 = vadd.f32 0.0, %v1351
      %v1353 = vpop.f32.mrf.mxu0
      %v1354 = vpop.f32.mrf.mxu0
      %v1355 = vadd.f32 0.0, %v1354
      %v1356 = vpop.f32.mrf.mxu0
      %1357 = vmatprep.mubr.bf16.mxu0 0
      %1358 = vmatmul.mubr.bf16.gmra.mxu0 %v1282
      %v1359 = vpop.f32.mrf.mxu0
      %v1360 = vadd.f32 0.0, %v1359
      %v1361 = vpop.f32.mrf.mxu0
      %v1362 = vpop.f32.mrf.mxu0
      %v1363 = vadd.f32 0.0, %v1362
      %v1364 = vpop.f32.mrf.mxu0
      %1365 = vmatprep.mubr.bf16.mxu0 0
      %1366 = vmatmul.mubr.bf16.gmra.mxu0 %v1285
      %v1367 = vpop.f32.mrf.mxu0
      %v1368 = vadd.f32 0.0, %v1367
      %v1369 = vpop.f32.mrf.mxu0
      %v1370 = vpop.f32.mrf.mxu0
      %v1371 = vadd.f32 0.0, %v1370
      %v1372 = vpop.f32.mrf.mxu0
      %1373 = vmatprep.mubr.bf16.mxu0 0
      %1374 = vmatmul.mubr.bf16.gmra.mxu0 %v1288
      %v1375 = vpop.f32.mrf.mxu0
      %v1376 = vadd.f32 0.0, %v1375
      %v1377 = vpop.f32.mrf.mxu0
      %v1378 = vpop.f32.mrf.mxu0
      %v1379 = vadd.f32 0.0, %v1378
      %v1380 = vpop.f32.mrf.mxu0
      %1381 = vmatprep.mubr.bf16.mxu0 0
      %1382 = vmatmul.mubr.bf16.gmra.mxu0 %v1291
      %v1383 = vpop.f32.mrf.mxu0
      %v1384 = vadd.f32 0.0, %v1383
      %v1385 = vpop.f32.mrf.mxu0
      %v1386 = vpop.f32.mrf.mxu0
      %v1387 = vadd.f32 0.0, %v1386
      %v1388 = vpop.f32.mrf.mxu0
      %1389 = vdwg.mxu0
      %v1390 = vadd.f32 %v1190, %v1328
      %v1391 = vadd.f32 %v1193, %v1331
      %v1392 = vadd.f32 %v1198, %v1336
      %v1393 = vadd.f32 %v1201, %v1339
      %v1394 = vadd.f32 %v1206, %v1344
      %v1395 = vadd.f32 %v1209, %v1347
      %v1396 = vadd.f32 %v1214, %v1352
      %v1397 = vadd.f32 %v1217, %v1355
      %v1398 = vadd.f32 %v1222, %v1360
      %v1399 = vadd.f32 %v1225, %v1363
      %v1400 = vadd.f32 %v1230, %v1368
      %v1401 = vadd.f32 %v1233, %v1371
      %v1402 = vadd.f32 %v1238, %v1376
      %v1403 = vadd.f32 %v1241, %v1379
      %v1404 = vadd.f32 %v1246, %v1384
      %v1405 = vadd.f32 %v1249, %v1387
      %s1406 = scalar_lea.vmem %s548, 48
      %v1407 = vld [vmem:[%s1406] sm:$0xf]
      %v1408 = vld [vmem:[%s1406 + $0x4] sm:$0xf]
      %v1409 = vld [vmem:[%s1406 + $0x8] sm:$0xf]
      %v1410 = vld [vmem:[%s1406 + $0xc] sm:$0xf]
      %v1415 = vunpack.c.l.b16 %v1407
      %v1416 = vunpack.c.l.b16 %v1408
      %v1417 = vunpack.c.l.b16 %v1409
      %v1418 = vunpack.c.l.b16 %v1410
      %v1419 = vpack.c.b16 %v1416, %v1415
      %v1420 = vpack.c.b16 %v1418, %v1417
      %v1424 = vsel %vm997, %v954, 0
      %1426 = vmatprep.subr.bf16.mxu0 0
      %1427 = vmatpush1.bf16.msra.mxu0 0
      %1428 = vmatprep.subr.bf16.mxu0 0
      %1429 = vmatpush1.bf16.msra.mxu0 0
      %1430 = vmatprep.subr.bf16.mxu0 0
      %1431 = vmatpush1.bf16.msra.mxu0 0
      %1432 = vmatprep.subr.bf16.mxu0 0
      %1433 = vmatpush1.bf16.msra.mxu0 0
      %1434 = vmatprep.subr.bf16.mxu0 0
      %1435 = vmatpush1.bf16.msra.mxu0 0
      %1436 = vmatprep.subr.bf16.mxu0 0
      %1437 = vmatpush1.bf16.msra.mxu0 0
      %1438 = vmatprep.subr.bf16.mxu0 0
      %1439 = vmatpush1.bf16.msra.mxu0 %v1420
      %1440 = vmatprep.subr.bf16.mxu0 0
      %1441 = vmatpush1.bf16.msra.mxu0 %v1419
      %1442 = vmatprep.subr.bf16.mxu0 0
      %1443 = vmatpush2.bf16.msra.mxu0 0
      %1444 = vmatprep.subr.bf16.mxu0 0
      %1445 = vmatpush2.bf16.msra.mxu0 0
      %1446 = vmatprep.subr.bf16.mxu0 0
      %1447 = vmatpush2.bf16.msra.mxu0 0
      %1448 = vmatprep.subr.bf16.mxu0 0
      %1449 = vmatpush2.bf16.msra.mxu0 0
      %1450 = vmatprep.subr.bf16.mxu0 0
      %1451 = vmatpush2.bf16.msra.mxu0 0
      %1452 = vmatprep.subr.bf16.mxu0 0
      %1453 = vmatpush2.bf16.msra.mxu0 0
      %1454 = vmatprep.subr.bf16.mxu0 0
      %1455 = vmatpush2.bf16.msra.mxu0 0
      %1456 = vmatprep.subr.bf16.mxu0 0
      %1457 = vmatpush2.bf16.msra.mxu0 0
      %1458 = vmatprep.mubr.bf16.mxu0 0
      %1459 = vmatmul.mubr.bf16.gmra.mxu0 %v1135
      %v1460 = vpop.f32.mrf.mxu0
      %v1461 = vadd.f32 0.0, %v1460
      %v1462 = vpop.f32.mrf.mxu0
      %v1463 = vpop.f32.mrf.mxu0
      %v1464 = vadd.f32 0.0, %v1463
      %v1465 = vpop.f32.mrf.mxu0
      %1466 = vmatprep.mubr.bf16.mxu0 0
      %1467 = vmatmul.mubr.bf16.gmra.mxu0 %v1138
      %v1468 = vpop.f32.mrf.mxu0
      %v1469 = vadd.f32 0.0, %v1468
      %v1470 = vpop.f32.mrf.mxu0
      %v1471 = vpop.f32.mrf.mxu0
      %v1472 = vadd.f32 0.0, %v1471
      %v1473 = vpop.f32.mrf.mxu0
      %1474 = vmatprep.mubr.bf16.mxu0 0
      %1475 = vmatmul.mubr.bf16.gmra.mxu0 %v1141
      %v1476 = vpop.f32.mrf.mxu0
      %v1477 = vadd.f32 0.0, %v1476
      %v1478 = vpop.f32.mrf.mxu0
      %v1479 = vpop.f32.mrf.mxu0
      %v1480 = vadd.f32 0.0, %v1479
      %v1481 = vpop.f32.mrf.mxu0
      %1482 = vmatprep.mubr.bf16.mxu0 0
      %1483 = vmatmul.mubr.bf16.gmra.mxu0 %v1144
      %v1484 = vpop.f32.mrf.mxu0
      %v1485 = vadd.f32 0.0, %v1484
      %v1486 = vpop.f32.mrf.mxu0
      %v1487 = vpop.f32.mrf.mxu0
      %v1488 = vadd.f32 0.0, %v1487
      %v1489 = vpop.f32.mrf.mxu0
      %1490 = vmatprep.mubr.bf16.mxu0 0
      %1491 = vmatmul.mubr.bf16.gmra.mxu0 %v1147
      %v1492 = vpop.f32.mrf.mxu0
      %v1493 = vadd.f32 0.0, %v1492
      %v1494 = vpop.f32.mrf.mxu0
      %v1495 = vpop.f32.mrf.mxu0
      %v1496 = vadd.f32 0.0, %v1495
      %v1497 = vpop.f32.mrf.mxu0
      %1498 = vmatprep.mubr.bf16.mxu0 0
      %1499 = vmatmul.mubr.bf16.gmra.mxu0 %v1150
      %v1500 = vpop.f32.mrf.mxu0
      %v1501 = vadd.f32 0.0, %v1500
      %v1502 = vpop.f32.mrf.mxu0
      %v1503 = vpop.f32.mrf.mxu0
      %v1504 = vadd.f32 0.0, %v1503
      %v1505 = vpop.f32.mrf.mxu0
      %1506 = vmatprep.mubr.bf16.mxu0 0
      %1507 = vmatmul.mubr.bf16.gmra.mxu0 %v1153
      %v1508 = vpop.f32.mrf.mxu0
      %v1509 = vadd.f32 0.0, %v1508
      %v1510 = vpop.f32.mrf.mxu0
      %v1511 = vpop.f32.mrf.mxu0
      %v1512 = vadd.f32 0.0, %v1511
      %v1513 = vpop.f32.mrf.mxu0
      %1514 = vmatprep.mubr.bf16.mxu0 0
      %1515 = vmatmul.mubr.bf16.gmra.mxu0 %v1424
      %v1516 = vpop.f32.mrf.mxu0
      %v1517 = vadd.f32 0.0, %v1516
      %v1518 = vpop.f32.mrf.mxu0
      %v1519 = vpop.f32.mrf.mxu0
      %v1520 = vadd.f32 0.0, %v1519
      %v1521 = vpop.f32.mrf.mxu0
      %1522 = vdwg.mxu0
      %v1523 = vadd.f32 %v1390, %v1461
      %v1524 = vadd.f32 %v1391, %v1464
      %v1525 = vadd.f32 %v1392, %v1469
      %v1526 = vadd.f32 %v1393, %v1472
      %v1527 = vadd.f32 %v1394, %v1477
      %v1528 = vadd.f32 %v1395, %v1480
      %v1529 = vadd.f32 %v1396, %v1485
      %v1530 = vadd.f32 %v1397, %v1488
      %v1531 = vadd.f32 %v1398, %v1493
      %v1532 = vadd.f32 %v1399, %v1496
      %v1533 = vadd.f32 %v1400, %v1501
      %v1534 = vadd.f32 %v1401, %v1504
      %v1535 = vadd.f32 %v1402, %v1509
      %v1536 = vadd.f32 %v1403, %v1512
      %v1537 = vadd.f32 %v1404, %v1517
      %v1538 = vadd.f32 %v1405, %v1520
      %s1539 = scalar_lea.vmem %s548, 64
      %v1540 = vld [vmem:[%s1539] sm:$0xf]
      %v1541 = vld [vmem:[%s1539 + $0x4] sm:$0xf]
      %v1542 = vld [vmem:[%s1539 + $0x8] sm:$0xf]
      %v1543 = vld [vmem:[%s1539 + $0xc] sm:$0xf]
      %v1548 = vunpack.c.l.b16 %v1540
      %v1549 = vunpack.c.l.b16 %v1541
      %v1550 = vunpack.c.l.b16 %v1542
      %v1551 = vunpack.c.l.b16 %v1543
      %v1552 = vpack.c.b16 %v1549, %v1548
      %v1553 = vpack.c.b16 %v1551, %v1550
      %v1557 = vsel %vm997, %v964, 0
      %1559 = vmatprep.subr.bf16.mxu0 0
      %1560 = vmatpush1.bf16.msra.mxu0 0
      %1561 = vmatprep.subr.bf16.mxu0 0
      %1562 = vmatpush1.bf16.msra.mxu0 0
      %1563 = vmatprep.subr.bf16.mxu0 0
      %1564 = vmatpush1.bf16.msra.mxu0 0
      %1565 = vmatprep.subr.bf16.mxu0 0
      %1566 = vmatpush1.bf16.msra.mxu0 0
      %1567 = vmatprep.subr.bf16.mxu0 0
      %1568 = vmatpush1.bf16.msra.mxu0 0
      %1569 = vmatprep.subr.bf16.mxu0 0
      %1570 = vmatpush1.bf16.msra.mxu0 0
      %1571 = vmatprep.subr.bf16.mxu0 0
      %1572 = vmatpush1.bf16.msra.mxu0 %v1553
      %1573 = vmatprep.subr.bf16.mxu0 0
      %1574 = vmatpush1.bf16.msra.mxu0 %v1552
      %1575 = vmatprep.subr.bf16.mxu0 0
      %1576 = vmatpush2.bf16.msra.mxu0 0
      %1577 = vmatprep.subr.bf16.mxu0 0
      %1578 = vmatpush2.bf16.msra.mxu0 0
      %1579 = vmatprep.subr.bf16.mxu0 0
      %1580 = vmatpush2.bf16.msra.mxu0 0
      %1581 = vmatprep.subr.bf16.mxu0 0
      %1582 = vmatpush2.bf16.msra.mxu0 0
      %1583 = vmatprep.subr.bf16.mxu0 0
      %1584 = vmatpush2.bf16.msra.mxu0 0
      %1585 = vmatprep.subr.bf16.mxu0 0
      %1586 = vmatpush2.bf16.msra.mxu0 0
      %1587 = vmatprep.subr.bf16.mxu0 0
      %1588 = vmatpush2.bf16.msra.mxu0 0
      %1589 = vmatprep.subr.bf16.mxu0 0
      %1590 = vmatpush2.bf16.msra.mxu0 0
      %1591 = vmatprep.mubr.bf16.mxu0 0
      %1592 = vmatmul.mubr.bf16.gmra.mxu0 %v1002
      %v1593 = vpop.f32.mrf.mxu0
      %v1594 = vadd.f32 0.0, %v1593
      %v1595 = vpop.f32.mrf.mxu0
      %v1596 = vpop.f32.mrf.mxu0
      %v1597 = vadd.f32 0.0, %v1596
      %v1598 = vpop.f32.mrf.mxu0
      %1599 = vmatprep.mubr.bf16.mxu0 0
      %1600 = vmatmul.mubr.bf16.gmra.mxu0 %v1005
      %v1601 = vpop.f32.mrf.mxu0
      %v1602 = vadd.f32 0.0, %v1601
      %v1603 = vpop.f32.mrf.mxu0
      %v1604 = vpop.f32.mrf.mxu0
      %v1605 = vadd.f32 0.0, %v1604
      %v1606 = vpop.f32.mrf.mxu0
      %1607 = vmatprep.mubr.bf16.mxu0 0
      %1608 = vmatmul.mubr.bf16.gmra.mxu0 %v1008
      %v1609 = vpop.f32.mrf.mxu0
      %v1610 = vadd.f32 0.0, %v1609
      %v1611 = vpop.f32.mrf.mxu0
      %v1612 = vpop.f32.mrf.mxu0
      %v1613 = vadd.f32 0.0, %v1612
      %v1614 = vpop.f32.mrf.mxu0
      %1615 = vmatprep.mubr.bf16.mxu0 0
      %1616 = vmatmul.mubr.bf16.gmra.mxu0 %v1011
      %v1617 = vpop.f32.mrf.mxu0
      %v1618 = vadd.f32 0.0, %v1617
      %v1619 = vpop.f32.mrf.mxu0
      %v1620 = vpop.f32.mrf.mxu0
      %v1621 = vadd.f32 0.0, %v1620
      %v1622 = vpop.f32.mrf.mxu0
      %1623 = vmatprep.mubr.bf16.mxu0 0
      %1624 = vmatmul.mubr.bf16.gmra.mxu0 %v1014
      %v1625 = vpop.f32.mrf.mxu0
      %v1626 = vadd.f32 0.0, %v1625
      %v1627 = vpop.f32.mrf.mxu0
      %v1628 = vpop.f32.mrf.mxu0
      %v1629 = vadd.f32 0.0, %v1628
      %v1630 = vpop.f32.mrf.mxu0
      %1631 = vmatprep.mubr.bf16.mxu0 0
      %1632 = vmatmul.mubr.bf16.gmra.mxu0 %v1017
      %v1633 = vpop.f32.mrf.mxu0
      %v1634 = vadd.f32 0.0, %v1633
      %v1635 = vpop.f32.mrf.mxu0
      %v1636 = vpop.f32.mrf.mxu0
      %v1637 = vadd.f32 0.0, %v1636
      %v1638 = vpop.f32.mrf.mxu0
      %1639 = vmatprep.mubr.bf16.mxu0 0
      %1640 = vmatmul.mubr.bf16.gmra.mxu0 %v1020
      %v1641 = vpop.f32.mrf.mxu0
      %v1642 = vadd.f32 0.0, %v1641
      %v1643 = vpop.f32.mrf.mxu0
      %v1644 = vpop.f32.mrf.mxu0
      %v1645 = vadd.f32 0.0, %v1644
      %v1646 = vpop.f32.mrf.mxu0
      %1647 = vmatprep.mubr.bf16.mxu0 0
      %1648 = vmatmul.mubr.bf16.gmra.mxu0 %v1557
      %v1649 = vpop.f32.mrf.mxu0
      %v1650 = vadd.f32 0.0, %v1649
      %v1651 = vpop.f32.mrf.mxu0
      %v1652 = vpop.f32.mrf.mxu0
      %v1653 = vadd.f32 0.0, %v1652
      %v1654 = vpop.f32.mrf.mxu0
      %1655 = vdwg.mxu0
      %v1656 = vadd.f32 %v1523, %v1594
      %v1657 = vadd.f32 %v1524, %v1597
      %v1658 = vadd.f32 %v1525, %v1602
      %v1659 = vadd.f32 %v1526, %v1605
      %v1660 = vadd.f32 %v1527, %v1610
      %v1661 = vadd.f32 %v1528, %v1613
      %v1662 = vadd.f32 %v1529, %v1618
      %v1663 = vadd.f32 %v1530, %v1621
      %v1664 = vadd.f32 %v1531, %v1626
      %v1665 = vadd.f32 %v1532, %v1629
      %v1666 = vadd.f32 %v1533, %v1634
      %v1667 = vadd.f32 %v1534, %v1637
      %v1668 = vadd.f32 %v1535, %v1642
      %v1669 = vadd.f32 %v1536, %v1645
      %v1670 = vadd.f32 %v1537, %v1650
      %v1671 = vadd.f32 %v1538, %v1653
      %s1672 = scalar_lea.vmem %s548, 80
      %v1673 = vld [vmem:[%s1672] sm:$0xf]
      %v1674 = vld [vmem:[%s1672 + $0x4] sm:$0xf]
      %v1675 = vld [vmem:[%s1672 + $0x8] sm:$0xf]
      %v1676 = vld [vmem:[%s1672 + $0xc] sm:$0xf]
      %v1681 = vunpack.c.l.b16 %v1673
      %v1682 = vunpack.c.l.b16 %v1674
      %v1683 = vunpack.c.l.b16 %v1675
      %v1684 = vunpack.c.l.b16 %v1676
      %v1685 = vpack.c.b16 %v1682, %v1681
      %v1686 = vpack.c.b16 %v1684, %v1683
      %v1690 = vsel %vm997, %v974, 0
      %1692 = vmatprep.subr.bf16.mxu0 0
      %1693 = vmatpush1.bf16.msra.mxu0 0
      %1694 = vmatprep.subr.bf16.mxu0 0
      %1695 = vmatpush1.bf16.msra.mxu0 0
      %1696 = vmatprep.subr.bf16.mxu0 0
      %1697 = vmatpush1.bf16.msra.mxu0 0
      %1698 = vmatprep.subr.bf16.mxu0 0
      %1699 = vmatpush1.bf16.msra.mxu0 0
      %1700 = vmatprep.subr.bf16.mxu0 0
      %1701 = vmatpush1.bf16.msra.mxu0 0
      %1702 = vmatprep.subr.bf16.mxu0 0
      %1703 = vmatpush1.bf16.msra.mxu0 0
      %1704 = vmatprep.subr.bf16.mxu0 0
      %1705 = vmatpush1.bf16.msra.mxu0 %v1686
      %1706 = vmatprep.subr.bf16.mxu0 0
      %1707 = vmatpush1.bf16.msra.mxu0 %v1685
      %1708 = vmatprep.subr.bf16.mxu0 0
      %1709 = vmatpush2.bf16.msra.mxu0 0
      %1710 = vmatprep.subr.bf16.mxu0 0
      %1711 = vmatpush2.bf16.msra.mxu0 0
      %1712 = vmatprep.subr.bf16.mxu0 0
      %1713 = vmatpush2.bf16.msra.mxu0 0
      %1714 = vmatprep.subr.bf16.mxu0 0
      %1715 = vmatpush2.bf16.msra.mxu0 0
      %1716 = vmatprep.subr.bf16.mxu0 0
      %1717 = vmatpush2.bf16.msra.mxu0 0
      %1718 = vmatprep.subr.bf16.mxu0 0
      %1719 = vmatpush2.bf16.msra.mxu0 0
      %1720 = vmatprep.subr.bf16.mxu0 0
      %1721 = vmatpush2.bf16.msra.mxu0 0
      %1722 = vmatprep.subr.bf16.mxu0 0
      %1723 = vmatpush2.bf16.msra.mxu0 0
      %1724 = vmatprep.mubr.bf16.mxu0 0
      %1725 = vmatmul.mubr.bf16.gmra.mxu0 %v1273
      %v1726 = vpop.f32.mrf.mxu0
      %v1727 = vadd.f32 0.0, %v1726
      %v1728 = vpop.f32.mrf.mxu0
      %v1729 = vpop.f32.mrf.mxu0
      %v1730 = vadd.f32 0.0, %v1729
      %v1731 = vpop.f32.mrf.mxu0
      %1732 = vmatprep.mubr.bf16.mxu0 0
      %1733 = vmatmul.mubr.bf16.gmra.mxu0 %v1276
      %v1734 = vpop.f32.mrf.mxu0
      %v1735 = vadd.f32 0.0, %v1734
      %v1736 = vpop.f32.mrf.mxu0
      %v1737 = vpop.f32.mrf.mxu0
      %v1738 = vadd.f32 0.0, %v1737
      %v1739 = vpop.f32.mrf.mxu0
      %1740 = vmatprep.mubr.bf16.mxu0 0
      %1741 = vmatmul.mubr.bf16.gmra.mxu0 %v1279
      %v1742 = vpop.f32.mrf.mxu0
      %v1743 = vadd.f32 0.0, %v1742
      %v1744 = vpop.f32.mrf.mxu0
      %v1745 = vpop.f32.mrf.mxu0
      %v1746 = vadd.f32 0.0, %v1745
      %v1747 = vpop.f32.mrf.mxu0
      %1748 = vmatprep.mubr.bf16.mxu0 0
      %1749 = vmatmul.mubr.bf16.gmra.mxu0 %v1282
      %v1750 = vpop.f32.mrf.mxu0
      %v1751 = vadd.f32 0.0, %v1750
      %v1752 = vpop.f32.mrf.mxu0
      %v1753 = vpop.f32.mrf.mxu0
      %v1754 = vadd.f32 0.0, %v1753
      %v1755 = vpop.f32.mrf.mxu0
      %1756 = vmatprep.mubr.bf16.mxu0 0
      %1757 = vmatmul.mubr.bf16.gmra.mxu0 %v1285
      %v1758 = vpop.f32.mrf.mxu0
      %v1759 = vadd.f32 0.0, %v1758
      %v1760 = vpop.f32.mrf.mxu0
      %v1761 = vpop.f32.mrf.mxu0
      %v1762 = vadd.f32 0.0, %v1761
      %v1763 = vpop.f32.mrf.mxu0
      %1764 = vmatprep.mubr.bf16.mxu0 0
      %1765 = vmatmul.mubr.bf16.gmra.mxu0 %v1288
      %v1766 = vpop.f32.mrf.mxu0
      %v1767 = vadd.f32 0.0, %v1766
      %v1768 = vpop.f32.mrf.mxu0
      %v1769 = vpop.f32.mrf.mxu0
      %v1770 = vadd.f32 0.0, %v1769
      %v1771 = vpop.f32.mrf.mxu0
      %1772 = vmatprep.mubr.bf16.mxu0 0
      %1773 = vmatmul.mubr.bf16.gmra.mxu0 %v1291
      %v1774 = vpop.f32.mrf.mxu0
      %v1775 = vadd.f32 0.0, %v1774
      %v1776 = vpop.f32.mrf.mxu0
      %v1777 = vpop.f32.mrf.mxu0
      %v1778 = vadd.f32 0.0, %v1777
      %v1779 = vpop.f32.mrf.mxu0
      %1780 = vmatprep.mubr.bf16.mxu0 0
      %1781 = vmatmul.mubr.bf16.gmra.mxu0 %v1690
      %v1782 = vpop.f32.mrf.mxu0
      %v1783 = vadd.f32 0.0, %v1782
      %v1784 = vpop.f32.mrf.mxu0
      %v1785 = vpop.f32.mrf.mxu0
      %v1786 = vadd.f32 0.0, %v1785
      %v1787 = vpop.f32.mrf.mxu0
      %1788 = vdwg.mxu0
      %v1789 = vadd.f32 %v1656, %v1727
      %v1790 = vadd.f32 %v1657, %v1730
      %v1791 = vadd.f32 %v1658, %v1735
      %v1792 = vadd.f32 %v1659, %v1738
      %v1793 = vadd.f32 %v1660, %v1743
      %v1794 = vadd.f32 %v1661, %v1746
      %v1795 = vadd.f32 %v1662, %v1751
      %v1796 = vadd.f32 %v1663, %v1754
      %v1797 = vadd.f32 %v1664, %v1759
      %v1798 = vadd.f32 %v1665, %v1762
      %v1799 = vadd.f32 %v1666, %v1767
      %v1800 = vadd.f32 %v1667, %v1770
      %v1801 = vadd.f32 %v1668, %v1775
      %v1802 = vadd.f32 %v1669, %v1778
      %v1803 = vadd.f32 %v1670, %v1783
      %v1804 = vadd.f32 %v1671, %v1786
      %s1805 = scalar_lea.vmem %s548, 96
      %v1806 = vld [vmem:[%s1805] sm:$0xf]
      %v1807 = vld [vmem:[%s1805 + $0x4] sm:$0xf]
      %v1808 = vld [vmem:[%s1805 + $0x8] sm:$0xf]
      %v1809 = vld [vmem:[%s1805 + $0xc] sm:$0xf]
      %v1814 = vunpack.c.l.b16 %v1806
      %v1815 = vunpack.c.l.b16 %v1807
      %v1816 = vunpack.c.l.b16 %v1808
      %v1817 = vunpack.c.l.b16 %v1809
      %v1818 = vpack.c.b16 %v1815, %v1814
      %v1819 = vpack.c.b16 %v1817, %v1816
      %v1823 = vsel %vm997, %v955, 0
      %1825 = vmatprep.subr.bf16.mxu0 0
      %1826 = vmatpush1.bf16.msra.mxu0 0
      %1827 = vmatprep.subr.bf16.mxu0 0
      %1828 = vmatpush1.bf16.msra.mxu0 0
      %1829 = vmatprep.subr.bf16.mxu0 0
      %1830 = vmatpush1.bf16.msra.mxu0 0
      %1831 = vmatprep.subr.bf16.mxu0 0
      %1832 = vmatpush1.bf16.msra.mxu0 0
      %1833 = vmatprep.subr.bf16.mxu0 0
      %1834 = vmatpush1.bf16.msra.mxu0 0
      %1835 = vmatprep.subr.bf16.mxu0 0
      %1836 = vmatpush1.bf16.msra.mxu0 0
      %1837 = vmatprep.subr.bf16.mxu0 0
      %1838 = vmatpush1.bf16.msra.mxu0 %v1819
      %1839 = vmatprep.subr.bf16.mxu0 0
      %1840 = vmatpush1.bf16.msra.mxu0 %v1818
      %1841 = vmatprep.subr.bf16.mxu0 0
      %1842 = vmatpush2.bf16.msra.mxu0 0
      %1843 = vmatprep.subr.bf16.mxu0 0
      %1844 = vmatpush2.bf16.msra.mxu0 0
      %1845 = vmatprep.subr.bf16.mxu0 0
      %1846 = vmatpush2.bf16.msra.mxu0 0
      %1847 = vmatprep.subr.bf16.mxu0 0
      %1848 = vmatpush2.bf16.msra.mxu0 0
      %1849 = vmatprep.subr.bf16.mxu0 0
      %1850 = vmatpush2.bf16.msra.mxu0 0
      %1851 = vmatprep.subr.bf16.mxu0 0
      %1852 = vmatpush2.bf16.msra.mxu0 0
      %1853 = vmatprep.subr.bf16.mxu0 0
      %1854 = vmatpush2.bf16.msra.mxu0 0
      %1855 = vmatprep.subr.bf16.mxu0 0
      %1856 = vmatpush2.bf16.msra.mxu0 0
      %1857 = vmatprep.mubr.bf16.mxu0 0
      %1858 = vmatmul.mubr.bf16.gmra.mxu0 %v1138
      %v1859 = vpop.f32.mrf.mxu0
      %v1860 = vadd.f32 0.0, %v1859
      %v1861 = vpop.f32.mrf.mxu0
      %v1862 = vpop.f32.mrf.mxu0
      %v1863 = vadd.f32 0.0, %v1862
      %v1864 = vpop.f32.mrf.mxu0
      %1865 = vmatprep.mubr.bf16.mxu0 0
      %1866 = vmatmul.mubr.bf16.gmra.mxu0 %v1141
      %v1867 = vpop.f32.mrf.mxu0
      %v1868 = vadd.f32 0.0, %v1867
      %v1869 = vpop.f32.mrf.mxu0
      %v1870 = vpop.f32.mrf.mxu0
      %v1871 = vadd.f32 0.0, %v1870
      %v1872 = vpop.f32.mrf.mxu0
      %1873 = vmatprep.mubr.bf16.mxu0 0
      %1874 = vmatmul.mubr.bf16.gmra.mxu0 %v1144
      %v1875 = vpop.f32.mrf.mxu0
      %v1876 = vadd.f32 0.0, %v1875
      %v1877 = vpop.f32.mrf.mxu0
      %v1878 = vpop.f32.mrf.mxu0
      %v1879 = vadd.f32 0.0, %v1878
      %v1880 = vpop.f32.mrf.mxu0
      %1881 = vmatprep.mubr.bf16.mxu0 0
      %1882 = vmatmul.mubr.bf16.gmra.mxu0 %v1147
      %v1883 = vpop.f32.mrf.mxu0
      %v1884 = vadd.f32 0.0, %v1883
      %v1885 = vpop.f32.mrf.mxu0
      %v1886 = vpop.f32.mrf.mxu0
      %v1887 = vadd.f32 0.0, %v1886
      %v1888 = vpop.f32.mrf.mxu0
      %1889 = vmatprep.mubr.bf16.mxu0 0
      %1890 = vmatmul.mubr.bf16.gmra.mxu0 %v1150
      %v1891 = vpop.f32.mrf.mxu0
      %v1892 = vadd.f32 0.0, %v1891
      %v1893 = vpop.f32.mrf.mxu0
      %v1894 = vpop.f32.mrf.mxu0
      %v1895 = vadd.f32 0.0, %v1894
      %v1896 = vpop.f32.mrf.mxu0
      %1897 = vmatprep.mubr.bf16.mxu0 0
      %1898 = vmatmul.mubr.bf16.gmra.mxu0 %v1153
      %v1899 = vpop.f32.mrf.mxu0
      %v1900 = vadd.f32 0.0, %v1899
      %v1901 = vpop.f32.mrf.mxu0
      %v1902 = vpop.f32.mrf.mxu0
      %v1903 = vadd.f32 0.0, %v1902
      %v1904 = vpop.f32.mrf.mxu0
      %1905 = vmatprep.mubr.bf16.mxu0 0
      %1906 = vmatmul.mubr.bf16.gmra.mxu0 %v1424
      %v1907 = vpop.f32.mrf.mxu0
      %v1908 = vadd.f32 0.0, %v1907
      %v1909 = vpop.f32.mrf.mxu0
      %v1910 = vpop.f32.mrf.mxu0
      %v1911 = vadd.f32 0.0, %v1910
      %v1912 = vpop.f32.mrf.mxu0
      %1913 = vmatprep.mubr.bf16.mxu0 0
      %1914 = vmatmul.mubr.bf16.gmra.mxu0 %v1823
      %v1915 = vpop.f32.mrf.mxu0
      %v1916 = vadd.f32 0.0, %v1915
      %v1917 = vpop.f32.mrf.mxu0
      %v1918 = vpop.f32.mrf.mxu0
      %v1919 = vadd.f32 0.0, %v1918
      %v1920 = vpop.f32.mrf.mxu0
      %1921 = vdwg.mxu0
      %v1922 = vadd.f32 %v1789, %v1860
      %v1923 = vadd.f32 %v1790, %v1863
      %v1924 = vadd.f32 %v1791, %v1868
      %v1925 = vadd.f32 %v1792, %v1871
      %v1926 = vadd.f32 %v1793, %v1876
      %v1927 = vadd.f32 %v1794, %v1879
      %v1928 = vadd.f32 %v1795, %v1884
      %v1929 = vadd.f32 %v1796, %v1887
      %v1930 = vadd.f32 %v1797, %v1892
      %v1931 = vadd.f32 %v1798, %v1895
      %v1932 = vadd.f32 %v1799, %v1900
      %v1933 = vadd.f32 %v1800, %v1903
      %v1934 = vadd.f32 %v1801, %v1908
      %v1935 = vadd.f32 %v1802, %v1911
      %v1936 = vadd.f32 %v1803, %v1916
      %v1937 = vadd.f32 %v1804, %v1919
      %s1938 = scalar_lea.vmem %s548, 112
      %v1939 = vld [vmem:[%s1938] sm:$0xf]
      %v1940 = vld [vmem:[%s1938 + $0x4] sm:$0xf]
      %v1941 = vld [vmem:[%s1938 + $0x8] sm:$0xf]
      %v1942 = vld [vmem:[%s1938 + $0xc] sm:$0xf]
      %v1947 = vunpack.c.l.b16 %v1939
      %v1948 = vunpack.c.l.b16 %v1940
      %v1949 = vunpack.c.l.b16 %v1941
      %v1950 = vunpack.c.l.b16 %v1942
      %v1951 = vpack.c.b16 %v1948, %v1947
      %v1952 = vpack.c.b16 %v1950, %v1949
      %v1956 = vsel %vm997, %v965, 0
      %1958 = vmatprep.subr.bf16.mxu0 0
      %1959 = vmatpush1.bf16.msra.mxu0 0
      %1960 = vmatprep.subr.bf16.mxu0 0
      %1961 = vmatpush1.bf16.msra.mxu0 0
      %1962 = vmatprep.subr.bf16.mxu0 0
      %1963 = vmatpush1.bf16.msra.mxu0 0
      %1964 = vmatprep.subr.bf16.mxu0 0
      %1965 = vmatpush1.bf16.msra.mxu0 0
      %1966 = vmatprep.subr.bf16.mxu0 0
      %1967 = vmatpush1.bf16.msra.mxu0 0
      %1968 = vmatprep.subr.bf16.mxu0 0
      %1969 = vmatpush1.bf16.msra.mxu0 0
      %1970 = vmatprep.subr.bf16.mxu0 0
      %1971 = vmatpush1.bf16.msra.mxu0 %v1952
      %1972 = vmatprep.subr.bf16.mxu0 0
      %1973 = vmatpush1.bf16.msra.mxu0 %v1951
      %1974 = vmatprep.subr.bf16.mxu0 0
      %1975 = vmatpush2.bf16.msra.mxu0 0
      %1976 = vmatprep.subr.bf16.mxu0 0
      %1977 = vmatpush2.bf16.msra.mxu0 0
      %1978 = vmatprep.subr.bf16.mxu0 0
      %1979 = vmatpush2.bf16.msra.mxu0 0
      %1980 = vmatprep.subr.bf16.mxu0 0
      %1981 = vmatpush2.bf16.msra.mxu0 0
      %1982 = vmatprep.subr.bf16.mxu0 0
      %1983 = vmatpush2.bf16.msra.mxu0 0
      %1984 = vmatprep.subr.bf16.mxu0 0
      %1985 = vmatpush2.bf16.msra.mxu0 0
      %1986 = vmatprep.subr.bf16.mxu0 0
      %1987 = vmatpush2.bf16.msra.mxu0 0
      %1988 = vmatprep.subr.bf16.mxu0 0
      %1989 = vmatpush2.bf16.msra.mxu0 0
      %1990 = vmatprep.mubr.bf16.mxu0 0
      %1991 = vmatmul.mubr.bf16.gmra.mxu0 %v1005
      %v1992 = vpop.f32.mrf.mxu0
      %v1993 = vadd.f32 0.0, %v1992
      %v1994 = vpop.f32.mrf.mxu0
      %v1995 = vpop.f32.mrf.mxu0
      %v1996 = vadd.f32 0.0, %v1995
      %v1997 = vpop.f32.mrf.mxu0
      %1998 = vmatprep.mubr.bf16.mxu0 0
      %1999 = vmatmul.mubr.bf16.gmra.mxu0 %v1008
      %v2000 = vpop.f32.mrf.mxu0
      %v2001 = vadd.f32 0.0, %v2000
      %v2002 = vpop.f32.mrf.mxu0
      %v2003 = vpop.f32.mrf.mxu0
      %v2004 = vadd.f32 0.0, %v2003
      %v2005 = vpop.f32.mrf.mxu0
      %2006 = vmatprep.mubr.bf16.mxu0 0
      %2007 = vmatmul.mubr.bf16.gmra.mxu0 %v1011
      %v2008 = vpop.f32.mrf.mxu0
      %v2009 = vadd.f32 0.0, %v2008
      %v2010 = vpop.f32.mrf.mxu0
      %v2011 = vpop.f32.mrf.mxu0
      %v2012 = vadd.f32 0.0, %v2011
      %v2013 = vpop.f32.mrf.mxu0
      %2014 = vmatprep.mubr.bf16.mxu0 0
      %2015 = vmatmul.mubr.bf16.gmra.mxu0 %v1014
      %v2016 = vpop.f32.mrf.mxu0
      %v2017 = vadd.f32 0.0, %v2016
      %v2018 = vpop.f32.mrf.mxu0
      %v2019 = vpop.f32.mrf.mxu0
      %v2020 = vadd.f32 0.0, %v2019
      %v2021 = vpop.f32.mrf.mxu0
      %2022 = vmatprep.mubr.bf16.mxu0 0
      %2023 = vmatmul.mubr.bf16.gmra.mxu0 %v1017
      %v2024 = vpop.f32.mrf.mxu0
      %v2025 = vadd.f32 0.0, %v2024
      %v2026 = vpop.f32.mrf.mxu0
      %v2027 = vpop.f32.mrf.mxu0
      %v2028 = vadd.f32 0.0, %v2027
      %v2029 = vpop.f32.mrf.mxu0
      %2030 = vmatprep.mubr.bf16.mxu0 0
      %2031 = vmatmul.mubr.bf16.gmra.mxu0 %v1020
      %v2032 = vpop.f32.mrf.mxu0
      %v2033 = vadd.f32 0.0, %v2032
      %v2034 = vpop.f32.mrf.mxu0
      %v2035 = vpop.f32.mrf.mxu0
      %v2036 = vadd.f32 0.0, %v2035
      %v2037 = vpop.f32.mrf.mxu0
      %2038 = vmatprep.mubr.bf16.mxu0 0
      %2039 = vmatmul.mubr.bf16.gmra.mxu0 %v1557
      %v2040 = vpop.f32.mrf.mxu0
      %v2041 = vadd.f32 0.0, %v2040
      %v2042 = vpop.f32.mrf.mxu0
      %v2043 = vpop.f32.mrf.mxu0
      %v2044 = vadd.f32 0.0, %v2043
      %v2045 = vpop.f32.mrf.mxu0
      %2046 = vmatprep.mubr.bf16.mxu0 0
      %2047 = vmatmul.mubr.bf16.gmra.mxu0 %v1956
      %v2048 = vpop.f32.mrf.mxu0
      %v2049 = vadd.f32 0.0, %v2048
      %v2050 = vpop.f32.mrf.mxu0
      %v2051 = vpop.f32.mrf.mxu0
      %v2052 = vadd.f32 0.0, %v2051
      %v2053 = vpop.f32.mrf.mxu0
      %2054 = vdwg.mxu0
      %v2055 = vadd.f32 %v1922, %v1993
      %v2056 = vadd.f32 %v1923, %v1996
      %v2057 = vadd.f32 %v1924, %v2001
      %v2058 = vadd.f32 %v1925, %v2004
      %v2059 = vadd.f32 %v1926, %v2009
      %v2060 = vadd.f32 %v1927, %v2012
      %v2061 = vadd.f32 %v1928, %v2017
      %v2062 = vadd.f32 %v1929, %v2020
      %v2063 = vadd.f32 %v1930, %v2025
      %v2064 = vadd.f32 %v1931, %v2028
      %v2065 = vadd.f32 %v1932, %v2033
      %v2066 = vadd.f32 %v1933, %v2036
      %v2067 = vadd.f32 %v1934, %v2041
      %v2068 = vadd.f32 %v1935, %v2044
      %v2069 = vadd.f32 %v1936, %v2049
      %v2070 = vadd.f32 %v1937, %v2052
      %s2071 = scalar_lea.vmem %s548, 128
      %v2072 = vld [vmem:[%s2071] sm:$0xf]
      %v2073 = vld [vmem:[%s2071 + $0x4] sm:$0xf]
      %v2074 = vld [vmem:[%s2071 + $0x8] sm:$0xf]
      %v2075 = vld [vmem:[%s2071 + $0xc] sm:$0xf]
      %v2080 = vunpack.c.l.b16 %v2072
      %v2081 = vunpack.c.l.b16 %v2073
      %v2082 = vunpack.c.l.b16 %v2074
      %v2083 = vunpack.c.l.b16 %v2075
      %v2084 = vpack.c.b16 %v2081, %v2080
      %v2085 = vpack.c.b16 %v2083, %v2082
      %v2089 = vsel %vm997, %v975, 0
      %2091 = vmatprep.subr.bf16.mxu0 0
      %2092 = vmatpush1.bf16.msra.mxu0 0
      %2093 = vmatprep.subr.bf16.mxu0 0
      %2094 = vmatpush1.bf16.msra.mxu0 0
      %2095 = vmatprep.subr.bf16.mxu0 0
      %2096 = vmatpush1.bf16.msra.mxu0 0
      %2097 = vmatprep.subr.bf16.mxu0 0
      %2098 = vmatpush1.bf16.msra.mxu0 0
      %2099 = vmatprep.subr.bf16.mxu0 0
      %2100 = vmatpush1.bf16.msra.mxu0 0
      %2101 = vmatprep.subr.bf16.mxu0 0
      %2102 = vmatpush1.bf16.msra.mxu0 0
      %2103 = vmatprep.subr.bf16.mxu0 0
      %2104 = vmatpush1.bf16.msra.mxu0 %v2085
      %2105 = vmatprep.subr.bf16.mxu0 0
      %2106 = vmatpush1.bf16.msra.mxu0 %v2084
      %2107 = vmatprep.subr.bf16.mxu0 0
      %2108 = vmatpush2.bf16.msra.mxu0 0
      %2109 = vmatprep.subr.bf16.mxu0 0
      %2110 = vmatpush2.bf16.msra.mxu0 0
      %2111 = vmatprep.subr.bf16.mxu0 0
      %2112 = vmatpush2.bf16.msra.mxu0 0
      %2113 = vmatprep.subr.bf16.mxu0 0
      %2114 = vmatpush2.bf16.msra.mxu0 0
      %2115 = vmatprep.subr.bf16.mxu0 0
      %2116 = vmatpush2.bf16.msra.mxu0 0
      %2117 = vmatprep.subr.bf16.mxu0 0
      %2118 = vmatpush2.bf16.msra.mxu0 0
      %2119 = vmatprep.subr.bf16.mxu0 0
      %2120 = vmatpush2.bf16.msra.mxu0 0
      %2121 = vmatprep.subr.bf16.mxu0 0
      %2122 = vmatpush2.bf16.msra.mxu0 0
      %2123 = vmatprep.mubr.bf16.mxu0 0
      %2124 = vmatmul.mubr.bf16.gmra.mxu0 %v1276
      %v2125 = vpop.f32.mrf.mxu0
      %v2126 = vadd.f32 0.0, %v2125
      %v2127 = vpop.f32.mrf.mxu0
      %v2128 = vpop.f32.mrf.mxu0
      %v2129 = vadd.f32 0.0, %v2128
      %v2130 = vpop.f32.mrf.mxu0
      %2131 = vmatprep.mubr.bf16.mxu0 0
      %2132 = vmatmul.mubr.bf16.gmra.mxu0 %v1279
      %v2133 = vpop.f32.mrf.mxu0
      %v2134 = vadd.f32 0.0, %v2133
      %v2135 = vpop.f32.mrf.mxu0
      %v2136 = vpop.f32.mrf.mxu0
      %v2137 = vadd.f32 0.0, %v2136
      %v2138 = vpop.f32.mrf.mxu0
      %2139 = vmatprep.mubr.bf16.mxu0 0
      %2140 = vmatmul.mubr.bf16.gmra.mxu0 %v1282
      %v2141 = vpop.f32.mrf.mxu0
      %v2142 = vadd.f32 0.0, %v2141
      %v2143 = vpop.f32.mrf.mxu0
      %v2144 = vpop.f32.mrf.mxu0
      %v2145 = vadd.f32 0.0, %v2144
      %v2146 = vpop.f32.mrf.mxu0
      %2147 = vmatprep.mubr.bf16.mxu0 0
      %2148 = vmatmul.mubr.bf16.gmra.mxu0 %v1285
      %v2149 = vpop.f32.mrf.mxu0
      %v2150 = vadd.f32 0.0, %v2149
      %v2151 = vpop.f32.mrf.mxu0
      %v2152 = vpop.f32.mrf.mxu0
      %v2153 = vadd.f32 0.0, %v2152
      %v2154 = vpop.f32.mrf.mxu0
      %2155 = vmatprep.mubr.bf16.mxu0 0
      %2156 = vmatmul.mubr.bf16.gmra.mxu0 %v1288
      %v2157 = vpop.f32.mrf.mxu0
      %v2158 = vadd.f32 0.0, %v2157
      %v2159 = vpop.f32.mrf.mxu0
      %v2160 = vpop.f32.mrf.mxu0
      %v2161 = vadd.f32 0.0, %v2160
      %v2162 = vpop.f32.mrf.mxu0
      %2163 = vmatprep.mubr.bf16.mxu0 0
      %2164 = vmatmul.mubr.bf16.gmra.mxu0 %v1291
      %v2165 = vpop.f32.mrf.mxu0
      %v2166 = vadd.f32 0.0, %v2165
      %v2167 = vpop.f32.mrf.mxu0
      %v2168 = vpop.f32.mrf.mxu0
      %v2169 = vadd.f32 0.0, %v2168
      %v2170 = vpop.f32.mrf.mxu0
      %2171 = vmatprep.mubr.bf16.mxu0 0
      %2172 = vmatmul.mubr.bf16.gmra.mxu0 %v1690
      %v2173 = vpop.f32.mrf.mxu0
      %v2174 = vadd.f32 0.0, %v2173
      %v2175 = vpop.f32.mrf.mxu0
      %v2176 = vpop.f32.mrf.mxu0
      %v2177 = vadd.f32 0.0, %v2176
      %v2178 = vpop.f32.mrf.mxu0
      %2179 = vmatprep.mubr.bf16.mxu0 0
      %2180 = vmatmul.mubr.bf16.gmra.mxu0 %v2089
      %v2181 = vpop.f32.mrf.mxu0
      %v2182 = vadd.f32 0.0, %v2181
      %v2183 = vpop.f32.mrf.mxu0
      %v2184 = vpop.f32.mrf.mxu0
      %v2185 = vadd.f32 0.0, %v2184
      %v2186 = vpop.f32.mrf.mxu0
      %2187 = vdwg.mxu0
      %v2188 = vadd.f32 %v2055, %v2126
      %v2189 = vadd.f32 %v2056, %v2129
      %v2190 = vadd.f32 %v2057, %v2134
      %v2191 = vadd.f32 %v2058, %v2137
      %v2192 = vadd.f32 %v2059, %v2142
      %v2193 = vadd.f32 %v2060, %v2145
      %v2194 = vadd.f32 %v2061, %v2150
      %v2195 = vadd.f32 %v2062, %v2153
      %v2196 = vadd.f32 %v2063, %v2158
      %v2197 = vadd.f32 %v2064, %v2161
      %v2198 = vadd.f32 %v2065, %v2166
      %v2199 = vadd.f32 %v2066, %v2169
      %v2200 = vadd.f32 %v2067, %v2174
      %v2201 = vadd.f32 %v2068, %v2177
      %v2202 = vadd.f32 %v2069, %v2182
      %v2203 = vadd.f32 %v2070, %v2185
      %v2204 = vld [vmem:[%s551] sm:$0x1]
      %v2206 = vlaneseq
      %v2207 = vshrl.u32 %v2206, 7
      %v2208 = vsub.s32 0, %v2207
      %v2209 = vrot.slane %v2204, %v2208
      %v2211 = vadd.f32 %v2188, %v2209
      %v2212 = vadd.f32 %v2189, %v2209
      %v2213 = vadd.f32 %v2190, %v2209
      %v2214 = vadd.f32 %v2191, %v2209
      %v2215 = vadd.f32 %v2192, %v2209
      %v2216 = vadd.f32 %v2193, %v2209
      %v2217 = vadd.f32 %v2194, %v2209
      %v2218 = vadd.f32 %v2195, %v2209
      %v2219 = vadd.f32 %v2196, %v2209
      %v2220 = vadd.f32 %v2197, %v2209
      %v2221 = vadd.f32 %v2198, %v2209
      %v2222 = vadd.f32 %v2199, %v2209
      %v2223 = vadd.f32 %v2200, %v2209
      %v2224 = vadd.f32 %v2201, %v2209
      %v2225 = vadd.f32 %v2202, %v2209
      %v2226 = vadd.f32 %v2203, %v2209
      %vm2227 = vcmask 523264
      %v2228 = vsel %vm2227, %v2211, 0.0
      %v2229 = vsel %vm2227, %v2212, 0.0
      %v2230 = vadd.f32 %v2228, %v2229
      %v2231 = vsel %vm2227, %v2213, 0.0
      %v2232 = vadd.f32 %v2230, %v2231
      %v2233 = vsel %vm2227, %v2214, 0.0
      %v2234 = vadd.f32 %v2232, %v2233
      %v2235 = vsel %vm2227, %v2215, 0.0
      %v2236 = vadd.f32 %v2234, %v2235
      %v2237 = vsel %vm2227, %v2216, 0.0
      %v2238 = vadd.f32 %v2236, %v2237
      %v2239 = vsel %vm2227, %v2217, 0.0
      %v2240 = vadd.f32 %v2238, %v2239
      %v2241 = vsel %vm2227, %v2218, 0.0
      %v2242 = vadd.f32 %v2240, %v2241
      %v2243 = vsel %vm2227, %v2219, 0.0
      %v2244 = vadd.f32 %v2242, %v2243
      %v2245 = vsel %vm2227, %v2220, 0.0
      %v2246 = vadd.f32 %v2244, %v2245
      %v2247 = vsel %vm2227, %v2221, 0.0
      %v2248 = vadd.f32 %v2246, %v2247
      %v2249 = vsel %vm2227, %v2222, 0.0
      %v2250 = vadd.f32 %v2248, %v2249
      %v2251 = vsel %vm2227, %v2223, 0.0
      %v2252 = vadd.f32 %v2250, %v2251
      %v2253 = vsel %vm2227, %v2224, 0.0
      %v2254 = vadd.f32 %v2252, %v2253
      %v2255 = vsel %vm2227, %v2225, 0.0
      %v2256 = vadd.f32 %v2254, %v2255
      %v2257 = vsel %vm2227, %v2226, 0.0
      %v2258 = vadd.f32 %v2256, %v2257
      %v2259 = vrot.slane %v2258, 4
      %v2260 = vadd.f32 %v2258, %v2259
      %v2261 = vrot.slane %v2260, 2
      %v2262 = vadd.f32 %v2260, %v2261
      %v2263 = vrot.slane %v2262, 1
      %v2264 = vadd.f32 %v2262, %v2263
      %v2265 = vmul.f32 %v2264, 0.0078125
      %v2266 = vsub.f32 %v2211, %v2265
      %v2267 = vsub.f32 %v2212, %v2265
      %v2268 = vsub.f32 %v2213, %v2265
      %v2269 = vsub.f32 %v2214, %v2265
      %v2270 = vsub.f32 %v2215, %v2265
      %v2271 = vsub.f32 %v2216, %v2265
      %v2272 = vsub.f32 %v2217, %v2265
      %v2273 = vsub.f32 %v2218, %v2265
      %v2274 = vsub.f32 %v2219, %v2265
      %v2275 = vsub.f32 %v2220, %v2265
      %v2276 = vsub.f32 %v2221, %v2265
      %v2277 = vsub.f32 %v2222, %v2265
      %v2278 = vsub.f32 %v2223, %v2265
      %v2279 = vsub.f32 %v2224, %v2265
      %v2280 = vsub.f32 %v2225, %v2265
      %v2281 = vsub.f32 %v2226, %v2265
      %v2282 = vmul.f32 %v2266, %v2266
      %v2283 = vmul.f32 %v2267, %v2267
      %v2284 = vmul.f32 %v2268, %v2268
      %v2285 = vmul.f32 %v2269, %v2269
      %v2286 = vmul.f32 %v2270, %v2270
      %v2287 = vmul.f32 %v2271, %v2271
      %v2288 = vmul.f32 %v2272, %v2272
      %v2289 = vmul.f32 %v2273, %v2273
      %v2290 = vmul.f32 %v2274, %v2274
      %v2291 = vmul.f32 %v2275, %v2275
      %v2292 = vmul.f32 %v2276, %v2276
      %v2293 = vmul.f32 %v2277, %v2277
      %v2294 = vmul.f32 %v2278, %v2278
      %v2295 = vmul.f32 %v2279, %v2279
      %v2296 = vmul.f32 %v2280, %v2280
      %v2297 = vmul.f32 %v2281, %v2281
      %v2298 = vsel %vm2227, %v2282, 0.0
      %v2299 = vsel %vm2227, %v2283, 0.0
      %v2300 = vadd.f32 %v2298, %v2299
      %v2301 = vsel %vm2227, %v2284, 0.0
      %v2302 = vadd.f32 %v2300, %v2301
      %v2303 = vsel %vm2227, %v2285, 0.0
      %v2304 = vadd.f32 %v2302, %v2303
      %v2305 = vsel %vm2227, %v2286, 0.0
      %v2306 = vadd.f32 %v2304, %v2305
      %v2307 = vsel %vm2227, %v2287, 0.0
      %v2308 = vadd.f32 %v2306, %v2307
      %v2309 = vsel %vm2227, %v2288, 0.0
      %v2310 = vadd.f32 %v2308, %v2309
      %v2311 = vsel %vm2227, %v2289, 0.0
      %v2312 = vadd.f32 %v2310, %v2311
      %v2313 = vsel %vm2227, %v2290, 0.0
      %v2314 = vadd.f32 %v2312, %v2313
      %v2315 = vsel %vm2227, %v2291, 0.0
      %v2316 = vadd.f32 %v2314, %v2315
      %v2317 = vsel %vm2227, %v2292, 0.0
      %v2318 = vadd.f32 %v2316, %v2317
      %v2319 = vsel %vm2227, %v2293, 0.0
      %v2320 = vadd.f32 %v2318, %v2319
      %v2321 = vsel %vm2227, %v2294, 0.0
      %v2322 = vadd.f32 %v2320, %v2321
      %v2323 = vsel %vm2227, %v2295, 0.0
      %v2324 = vadd.f32 %v2322, %v2323
      %v2325 = vsel %vm2227, %v2296, 0.0
      %v2326 = vadd.f32 %v2324, %v2325
      %v2327 = vsel %vm2227, %v2297, 0.0
      %v2328 = vadd.f32 %v2326, %v2327
      %v2329 = vrot.slane %v2328, 4
      %v2330 = vadd.f32 %v2328, %v2329
      %v2331 = vrot.slane %v2330, 2
      %v2332 = vadd.f32 %v2330, %v2331
      %v2333 = vrot.slane %v2332, 1
      %v2334 = vadd.f32 %v2332, %v2333
      %v2335 = vsel %vm824, %v2264, %v2334
      %vm2336 = vcmask 517120
      %2337 = vst.msk [vmem:[%s576] sm:$0x3] %vm2336, %v2335
      %v2338 = vpack.c.bf16 %v2212, %v2211
      %v2339 = vpack.c.bf16 %v2214, %v2213
      %v2340 = vpack.c.bf16 %v2216, %v2215
      %v2341 = vpack.c.bf16 %v2218, %v2217
      %v2342 = vpack.c.bf16 %v2220, %v2219
      %v2343 = vpack.c.bf16 %v2222, %v2221
      %v2344 = vpack.c.bf16 %v2224, %v2223
      %v2345 = vpack.c.bf16 %v2226, %v2225
      %v2354 = vunpack.c.l.b16 %v2338
      %v2355 = vunpack.c.h.b16 %v2338
      %v2356 = vunpack.c.l.b16 %v2339
      %v2357 = vunpack.c.h.b16 %v2339
      %v2358 = vunpack.c.l.b16 %v2340
      %v2359 = vunpack.c.h.b16 %v2340
      %v2360 = vunpack.c.l.b16 %v2341
      %v2361 = vunpack.c.h.b16 %v2341
      %v2362 = vunpack.c.l.b16 %v2342
      %v2363 = vunpack.c.h.b16 %v2342
      %v2364 = vunpack.c.l.b16 %v2343
      %v2365 = vunpack.c.h.b16 %v2343
      %v2366 = vunpack.c.l.b16 %v2344
      %v2367 = vunpack.c.h.b16 %v2344
      %v2368 = vunpack.c.l.b16 %v2345
      %v2369 = vunpack.c.h.b16 %v2345
      %v2370 = vpack.c.b16 %v2354, %v2354
      %v2371 = vpack.c.b16 %v2355, %v2355
      %v2372 = vpack.c.b16 %v2356, %v2356
      %v2373 = vpack.c.b16 %v2357, %v2357
      %v2374 = vpack.c.b16 %v2358, %v2358
      %v2375 = vpack.c.b16 %v2359, %v2359
      %v2376 = vpack.c.b16 %v2360, %v2360
      %v2377 = vpack.c.b16 %v2361, %v2361
      %v2378 = vpack.c.b16 %v2362, %v2362
      %v2379 = vpack.c.b16 %v2363, %v2363
      %v2380 = vpack.c.b16 %v2364, %v2364
      %v2381 = vpack.c.b16 %v2365, %v2365
      %v2382 = vpack.c.b16 %v2366, %v2366
      %v2383 = vpack.c.b16 %v2367, %v2367
      %v2384 = vpack.c.b16 %v2368, %v2368
      %v2385 = vpack.c.b16 %v2369, %v2369
      %vm2402 = vcmask 519168
      %2403 = vst.msk [vmem:[%s564] sm:$0xf] %vm2402, %v2370
      %2404 = vst.msk [vmem:[%s564 + $0x4] sm:$0xf] %vm2402, %v2371
      %2405 = vst.msk [vmem:[%s564 + $0x8] sm:$0xf] %vm2402, %v2372
      %2406 = vst.msk [vmem:[%s564 + $0xc] sm:$0xf] %vm2402, %v2373
      %2407 = vst.msk [vmem:[%s564 + $0x10] sm:$0xf] %vm2402, %v2374
      %2408 = vst.msk [vmem:[%s564 + $0x14] sm:$0xf] %vm2402, %v2375
      %2409 = vst.msk [vmem:[%s564 + $0x18] sm:$0xf] %vm2402, %v2376
      %2410 = vst.msk [vmem:[%s564 + $0x1c] sm:$0xf] %vm2402, %v2377
      %2411 = vst.msk [vmem:[%s564 + $0x20] sm:$0xf] %vm2402, %v2378
      %2412 = vst.msk [vmem:[%s564 + $0x24] sm:$0xf] %vm2402, %v2379
      %2413 = vst.msk [vmem:[%s564 + $0x28] sm:$0xf] %vm2402, %v2380
      %2414 = vst.msk [vmem:[%s564 + $0x2c] sm:$0xf] %vm2402, %v2381
      %2415 = vst.msk [vmem:[%s564 + $0x30] sm:$0xf] %vm2402, %v2382
      %2416 = vst.msk [vmem:[%s564 + $0x34] sm:$0xf] %vm2402, %v2383
      %2417 = vst.msk [vmem:[%s564 + $0x38] sm:$0xf] %vm2402, %v2384
      %2418 = vst.msk [vmem:[%s564 + $0x3c] sm:$0xf] %vm2402, %v2385
      %s2419 = smul.u32 8, %s27
      %p2420 = scmp.lt.s32.totalorder %s25, 1
      %s2421 = scalar_select %p2420, %s25, 1
      %p2422 = scmp.lt.s32.totalorder %s2419, 15
      %s2423 = scalar_select %p2422, %s2419, 15
      %p2424 = scmp.lt.s32.totalorder %s26, 0
      %s2425 = scalar_select %p2424, %s26, 0
      %s2426 = smul.addr %s2423, 2
      %s2427 = sadd.s32 %s2425, %s2426
      %s2428 = smul.addr %s2421, 32
      %s2429 = sadd.s32 %s2427, %s2428
      %s2430 = smul.addr %s2429, 4
      %s2431 = scalar_lea.vmem %s7, %s2430
      %p2432 = scmp.lt.s32.totalorder %s25, 1
      %s2433 = scalar_select %p2432, %s25, 1
      %p2434 = scmp.lt.s32.totalorder %s27, 1
      %s2435 = scalar_select %p2434, %s27, 1
      %p2436 = scmp.lt.s32.totalorder %s26, 0
      %s2437 = scalar_select %p2436, %s26, 0
      %s2438 = sadd.s32 %s2437, %s2435
      %s2439 = smul.addr %s2433, 2
      %s2440 = sadd.s32 %s2438, %s2439
      %s2441 = smul.addr %s2440, 2
      %s2442 = scalar_lea.vmem %s8, %s2441
      // Predicated region
      $region49: #{unet_residual_block.4} parent=47 // pred_check
        %p2443 = pneg %p265
      $region50: #{unet_residual_block.4} parent=47 // pred_check_branch
        %2445 = sbr.rel (%p2443) target = $region52
      $region51: #{unet_residual_block.4} parent=47 // pred_region
        %s2446 = smul.u32 8, %s27
      $region52: #{unet_residual_block.4} parent=47 // pred_fallthru
        _
      // Predicated region
      $region53: #{unet_residual_block.4} parent=47 // pred_check
        %p2447 = pneg %p295
      $region54: #{unet_residual_block.4} parent=47 // pred_check_branch
        %2449 = sbr.rel (%p2447) target = $region56
      $region55: #{unet_residual_block.4} parent=47 // pred_region
        _
      $region56: #{unet_residual_block.4} parent=47 // pred_fallthru
        _
    $region48: #{unet_residual_block.4} parent=5 // pred_fallthru
      _
    %p2450 = scmp.le.s32.totalorder 2, %s15
    // Predicated region
    $region57: #{unet_residual_block.4} parent=5 // pred_check
      %p2451 = pneg %p2450
    $region58: #{unet_residual_block.4} parent=5 // pred_check_branch
      %2453 = sbr.rel (%p2451) target = $region60
    $region59: #{unet_residual_block.4} parent=5 // pred_region
      %s2454 = ssub.s32 %s15, 2
      // Predicated region
      $region61: #{unet_residual_block.4} parent=59 // pred_check
        %p2455 = pneg %p271
      $region62: #{unet_residual_block.4} parent=59 // pred_check_branch
        %2457 = sbr.rel (%p2455) target = $region64
      $region63: #{unet_residual_block.4} parent=59 // pred_region
        %s2458 = smul.u32 8, %s30
        %p2459 = scmp.lt.s32.totalorder %s28, 1
        %s2460 = scalar_select %p2459, %s28, 1
        %p2461 = scmp.lt.s32.totalorder %s2458, 15
        %s2462 = scalar_select %p2461, %s2458, 15
        %p2463 = scmp.lt.s32.totalorder %s29, 0
        %s2464 = scalar_select %p2463, %s29, 0
        %s2465 = smul.addr %s2462, 2
        %s2466 = sadd.s32 %s2464, %s2465
        %s2467 = smul.addr %s2460, 32
        %s2468 = sadd.s32 %s2466, %s2467
        %s2469 = smul.addr %s2468, 4
        %s2470 = scalar_lea.vmem %s7, %s2469
      $region64: #{unet_residual_block.4} parent=59 // pred_fallthru
        _
      // Predicated region
      $region65: #{unet_residual_block.4} parent=59 // pred_check
        %p2471 = pneg %p301
      $region66: #{unet_residual_block.4} parent=59 // pred_check_branch
        %2473 = sbr.rel (%p2471) target = $region68
      $region67: #{unet_residual_block.4} parent=59 // pred_region
        %p2474 = scmp.lt.s32.totalorder %s28, 1
        %s2475 = scalar_select %p2474, %s28, 1
        %p2476 = scmp.lt.s32.totalorder %s30, 1
        %s2477 = scalar_select %p2476, %s30, 1
        %p2478 = scmp.lt.s32.totalorder %s29, 0
        %s2479 = scalar_select %p2478, %s29, 0
        %s2480 = sadd.s32 %s2479, %s2477
        %s2481 = smul.addr %s2475, 2
        %s2482 = sadd.s32 %s2480, %s2481
        %s2483 = smul.addr %s2482, 2
        %s2484 = scalar_lea.vmem %s8, %s2483
      $region68: #{unet_residual_block.4} parent=59 // pred_fallthru
        _
    $region60: #{unet_residual_block.4} parent=5 // pred_fallthru
      _
  $region6: #{unet_residual_block.4} parent=0 // loop_footer
    %s19 = sadd.s32 1, %s15
  $region7: #{unet_residual_block.4} parent=0 // loop_footer_branch
    %14 = sbr.rel target = $region3
  $region8: #{unet_residual_block.4} parent=0 // loop_exit
    _

// kernel: unet_residual_block.5
$region0: #{unet_residual_block.5}
  #allocation0 [shape = 'u32[]', space=smem, size = 0x4, offset = 0x4, fixed_abs, tag = 'smem constant byte address 0x4 - core index']
  #allocation1 [shape = 'u32[144,128]{1,0:T(1,128)}', space=vmem, size = 0x12000, scoped, tag = 'internal scratch']
  %s0 = inlined_call_operand.vmem [shape: bf16[2,16,16,64], index: 0, kind: input, shape index: {}, may-alias: {0,1,2}]
  %s1 = inlined_call_operand.vmem [shape: bf16[2,16,16,64], index: 1, kind: input, shape index: {}, may-alias: {0,1,2}]
  %s2 = inlined_call_operand.vmem [shape: bf16[2,16,16,64], index: 2, kind: input, shape index: {}, may-alias: {0,1,2}]
  %s3 = inlined_call_operand.vmem [shape: f32[2,1,64], index: 3, kind: input, shape index: {}]
  %s4 = inlined_call_operand.vmem [shape: f32[2,1,64], index: 4, kind: input, shape index: {}]
  %s5 = inlined_call_operand.vmem [shape: bf16[9,64,64], index: 5, kind: input, shape index: {}]
  %s6 = inlined_call_operand.vmem [shape: f32[1,64], index: 6, kind: input, shape index: {}]
  %s7 = inlined_call_operand.vmem [shape: f32[2,16,16,32], index: 7, kind: input, shape index: {}]
  %s8 = inlined_call_operand.vmem [shape: bf16[32,64], index: 8, kind: input, shape index: {}]
  %s9 = inlined_call_operand.hbm [shape: f32[2,16,16,64], index: 9, kind: output, shape index: {}]
  %s10 = sld [smem:[#allocation0]]
  $region69: #{unet_residual_block.5} parent=0
    _
  %s12 = ssub.s32 1, %s10
  %s13 = scalar_select 0, %s12, %s10
  $region1: #{unet_residual_block.5} parent=0
    #allocation2 [shape = 'u8[131072]{0}', space=vmem, size = 0x20000, scoped, tag = 'output window, operand 0']
    #allocation3 [shape = 's32[2]{0}', space=sflag, size = 0x8, scoped, tag = 'scoped memory for unet_residual_block.5']
    %14 = vsyncpa [#allocation3], 0
    %s15 = scalar_lea.sflag [#allocation3], 1
    %16 = vsyncpa %s15, 0
    loop: start=0, step=1, limit=6
    $region2: #{unet_residual_block.5} parent=1 // loop_pre_header
      _
    $region3: #{unet_residual_block.5} parent=1 // loop_header
      %s18 = sphi 0, %s22
      %p19 = scmp.ge.s32.totalorder %s18, 6
      %s25 = sphi 0, %s44
      %s26 = sphi 0, %s40
      %s27 = sphi 0, %s36
      %s28 = sphi 0, %s25
      %s29 = sphi 0, %s26
      %s30 = sphi 0, %s27
      %s31 = sphi 0, %s28
      %s32 = sphi 0, %s29
      %s33 = sphi 0, %s30
      %s49 = sphi 0, %s51
      %s52 = sphi 0, %s49
      %s53 = sphi 0, %s52
      %s69 = sphi 0, %s53
      %s85 = sphi 0, %s87
      %s88 = sphi 0, %s85
      %s89 = sphi 0, %s88
      %s105 = sphi 0, %s89
      %s121 = sphi 0, %s123
      %s124 = sphi 0, %s121
      %s125 = sphi 0, %s124
      %s141 = sphi 0, %s125
      %s147 = sphi 0, %s149
      %s150 = sphi 0, %s147
      %s151 = sphi 0, %s150
      %s167 = sphi 0, %s151
      %s173 = sphi 0, %s175
      %s176 = sphi 0, %s173
      %s177 = sphi 0, %s176
      %s193 = sphi 0, %s177
      %s199 = sphi 0, %s201
      %s202 = sphi 0, %s199
      %s203 = sphi 0, %s202
      %s219 = sphi 0, %s203
      %s225 = sphi 0, %s227
      %s228 = sphi 0, %s225
      %s229 = sphi 0, %s228
      %s245 = sphi 0, %s229
      %s253 = sphi 0, %s255
      %s256 = sphi 0, %s253
      %s257 = sphi 0, %s256
      %s273 = sphi 0, %s257
      %s279 = sphi 0, %s281
      %s282 = sphi 0, %s279
      %s283 = sphi 0, %s282
      %s299 = sphi 0, %s283
      %s309 = sphi 0, %s311
      %s312 = sphi 0, %s309
      %s313 = sphi 0, %s312
      %s329 = sphi 0, %s313
    $region4: #{unet_residual_block.5} parent=1 // loop_header_branch
      %21 = sbr.rel (%p19) target = $region8
    $region5: #{unet_residual_block.5} parent=1 // loop_body
      %s23 = ssub.s32 %s18, 1
      %s24 = ssub.s32 %s18, 2
      %s34 = sadd.s32 1, %s27
      %p35 = scmp.ge.s32.totalorder %s34, 2
      %s36 = scalar_select %p35, 0, %s34
      %s37 = sadd.s32 1, %s26
      %s38 = scalar_select %p35, %s37, %s26
      %p39 = scmp.ge.s32.totalorder %s38, 1
      %s40 = scalar_select %p39, 0, %s38
      %s41 = sadd.s32 1, %s25
      %s42 = scalar_select %p39, %s41, %s25
      %p43 = scmp.ge.s32.totalorder %s42, 2
      %s44 = scalar_select %p43, 0, %s42
      %s45 = ssub.s32 %s25, %s44
      %s46 = ssub.s32 %s27, %s36
      %s47 = sor.u32 %s45, %s46
      %p48 = scmp.eq.s32.totalorder %s47, 0
      %s50 = sadd.s32 %s49, 1
      %s51 = scalar_select %p48, %s49, %s50
      %p54 = pneg %p48
      %p55 = scmp.eq.s32.totalorder %s18, 3
      %p56 = por %p54, %p55
      %p57 = scmp.ne.s32.totalorder %s49, %s52
      %p58 = scmp.eq.s32.totalorder %s18, 0
      %p59 = por %p57, %p58
      %p60 = scmp.ne.s32.totalorder %s49, %s52
      %p61 = scmp.eq.s32.totalorder %s23, 3
      %p62 = por %p60, %p61
      %p63 = scmp.ne.s32.totalorder %s52, %s53
      %p64 = scmp.eq.s32.totalorder %s23, 0
      %p65 = por %p63, %p64
      %p66 = scmp.ne.s32.totalorder %s52, %s53
      %p67 = scmp.eq.s32.totalorder %s24, 3
      %p68 = por %p66, %p67
      %p70 = scmp.ne.s32.totalorder %s53, %s69
      %p71 = scmp.eq.s32.totalorder %s24, 0
      %p72 = por %p70, %p71
      %s73 = smul.u32 %s27, 8
      %s74 = ssub.s32 %s73, 1
      %p75 = scmp.gt.s32.totalorder %s74, 0
      %s76 = scalar_select %p75, %s74, 0
      %s77 = smul.u32 %s36, 8
      %s78 = ssub.s32 %s77, 1
      %p79 = scmp.gt.s32.totalorder %s78, 0
      %s80 = scalar_select %p79, %s78, 0
      %s81 = ssub.s32 %s25, %s44
      %s82 = ssub.s32 %s76, %s80
      %s83 = sor.u32 %s81, %s82
      %p84 = scmp.eq.s32.totalorder %s83, 0
      %s86 = sadd.s32 %s85, 1
      %s87 = scalar_select %p84, %s85, %s86
      %p90 = pneg %p84
      %p91 = scmp.eq.s32.totalorder %s18, 3
      %p92 = por %p90, %p91
      %p93 = scmp.ne.s32.totalorder %s85, %s88
      %p94 = scmp.eq.s32.totalorder %s18, 0
      %p95 = por %p93, %p94
      %p96 = scmp.ne.s32.totalorder %s85, %s88
      %p97 = scmp.eq.s32.totalorder %s23, 3
      %p98 = por %p96, %p97
      %p99 = scmp.ne.s32.totalorder %s88, %s89
      %p100 = scmp.eq.s32.totalorder %s23, 0
      %p101 = por %p99, %p100
      %p102 = scmp.ne.s32.totalorder %s88, %s89
      %p103 = scmp.eq.s32.totalorder %s24, 3
      %p104 = por %p102, %p103
      %p106 = scmp.ne.s32.totalorder %s89, %s105
      %p107 = scmp.eq.s32.totalorder %s24, 0
      %p108 = por %p106, %p107
      %s109 = smul.u32 %s27, 8
      %s110 = sadd.s32 %s109, 8
      %p111 = scmp.lt.s32.totalorder %s110, 15
      %s112 = scalar_select %p111, %s110, 15
      %s113 = smul.u32 %s36, 8
      %s114 = sadd.s32 %s113, 8
      %p115 = scmp.lt.s32.totalorder %s114, 15
      %s116 = scalar_select %p115, %s114, 15
      %s117 = ssub.s32 %s25, %s44
      %s118 = ssub.s32 %s112, %s116
      %s119 = sor.u32 %s117, %s118
      %p120 = scmp.eq.s32.totalorder %s119, 0
      %s122 = sadd.s32 %s121, 1
      %s123 = scalar_select %p120, %s121, %s122
      %p126 = pneg %p120
      %p127 = scmp.eq.s32.totalorder %s18, 3
      %p128 = por %p126, %p127
      %p129 = scmp.ne.s32.totalorder %s121, %s124
      %p130 = scmp.eq.s32.totalorder %s18, 0
      %p131 = por %p129, %p130
      %p132 = scmp.ne.s32.totalorder %s121, %s124
      %p133 = scmp.eq.s32.totalorder %s23, 3
      %p134 = por %p132, %p133
      %p135 = scmp.ne.s32.totalorder %s124, %s125
      %p136 = scmp.eq.s32.totalorder %s23, 0
      %p137 = por %p135, %p136
      %p138 = scmp.ne.s32.totalorder %s124, %s125
      %p139 = scmp.eq.s32.totalorder %s24, 3
      %p140 = por %p138, %p139
      %p142 = scmp.ne.s32.totalorder %s125, %s141
      %p143 = scmp.eq.s32.totalorder %s24, 0
      %p144 = por %p142, %p143
      %s145 = ssub.s32 %s25, %s44
      %p146 = scmp.eq.s32.totalorder %s145, 0
      %s148 = sadd.s32 %s147, 1
      %s149 = scalar_select %p146, %s147, %s148
      %p152 = pneg %p146
      %p153 = scmp.eq.s32.totalorder %s18, 3
      %p154 = por %p152, %p153
      %p155 = scmp.ne.s32.totalorder %s147, %s150
      %p156 = scmp.eq.s32.totalorder %s18, 0
      %p157 = por %p155, %p156
      %p158 = scmp.ne.s32.totalorder %s147, %s150
      %p159 = scmp.eq.s32.totalorder %s23, 3
      %p160 = por %p158, %p159
      %p161 = scmp.ne.s32.totalorder %s150, %s151
      %p162 = scmp.eq.s32.totalorder %s23, 0
      %p163 = por %p161, %p162
      %p164 = scmp.ne.s32.totalorder %s150, %s151
      %p165 = scmp.eq.s32.totalorder %s24, 3
      %p166 = por %p164, %p165
      %p168 = scmp.ne.s32.totalorder %s151, %s167
      %p169 = scmp.eq.s32.totalorder %s24, 0
      %p170 = por %p168, %p169
      %s171 = ssub.s32 %s25, %s44
      %p172 = scmp.eq.s32.totalorder %s171, 0
      %s174 = sadd.s32 %s173, 1
      %s175 = scalar_select %p172, %s173, %s174
      %p178 = pneg %p172
      %p179 = scmp.eq.s32.totalorder %s18, 3
      %p180 = por %p178, %p179
      %p181 = scmp.ne.s32.totalorder %s173, %s176
      %p182 = scmp.eq.s32.totalorder %s18, 0
      %p183 = por %p181, %p182
      %p184 = scmp.ne.s32.totalorder %s173, %s176
      %p185 = scmp.eq.s32.totalorder %s23, 3
      %p186 = por %p184, %p185
      %p187 = scmp.ne.s32.totalorder %s176, %s177
      %p188 = scmp.eq.s32.totalorder %s23, 0
      %p189 = por %p187, %p188
      %p190 = scmp.ne.s32.totalorder %s176, %s177
      %p191 = scmp.eq.s32.totalorder %s24, 3
      %p192 = por %p190, %p191
      %p194 = scmp.ne.s32.totalorder %s177, %s193
      %p195 = scmp.eq.s32.totalorder %s24, 0
      %p196 = por %p194, %p195
      %s197 = ssub.s32 %s26, %s40
      %p198 = scmp.eq.s32.totalorder %s197, 0
      %s200 = sadd.s32 %s199, 1
      %s201 = scalar_select %p198, %s199, %s200
      %p204 = pneg %p198
      %p205 = scmp.eq.s32.totalorder %s18, 3
      %p206 = por %p204, %p205
      %p207 = scmp.ne.s32.totalorder %s199, %s202
      %p208 = scmp.eq.s32.totalorder %s18, 0
      %p209 = por %p207, %p208
      %p210 = scmp.ne.s32.totalorder %s199, %s202
      %p211 = scmp.eq.s32.totalorder %s23, 3
      %p212 = por %p210, %p211
      %p213 = scmp.ne.s32.totalorder %s202, %s203
      %p214 = scmp.eq.s32.totalorder %s23, 0
      %p215 = por %p213, %p214
      %p216 = scmp.ne.s32.totalorder %s202, %s203
      %p217 = scmp.eq.s32.totalorder %s24, 3
      %p218 = por %p216, %p217
      %p220 = scmp.ne.s32.totalorder %s203, %s219
      %p221 = scmp.eq.s32.totalorder %s24, 0
      %p222 = por %p220, %p221
      %s223 = ssub.s32 %s26, %s40
      %p224 = scmp.eq.s32.totalorder %s223, 0
      %s226 = sadd.s32 %s225, 1
      %s227 = scalar_select %p224, %s225, %s226
      %p230 = pneg %p224
      %p231 = scmp.eq.s32.totalorder %s18, 3
      %p232 = por %p230, %p231
      %p233 = scmp.ne.s32.totalorder %s225, %s228
      %p234 = scmp.eq.s32.totalorder %s18, 0
      %p235 = por %p233, %p234
      %p236 = scmp.ne.s32.totalorder %s225, %s228
      %p237 = scmp.eq.s32.totalorder %s23, 3
      %p238 = por %p236, %p237
      %p239 = scmp.ne.s32.totalorder %s228, %s229
      %p240 = scmp.eq.s32.totalorder %s23, 0
      %p241 = por %p239, %p240
      %p242 = scmp.ne.s32.totalorder %s228, %s229
      %p243 = scmp.eq.s32.totalorder %s24, 3
      %p244 = por %p242, %p243
      %p246 = scmp.ne.s32.totalorder %s229, %s245
      %p247 = scmp.eq.s32.totalorder %s24, 0
      %p248 = por %p246, %p247
      %s249 = ssub.s32 %s25, %s44
      %s250 = ssub.s32 %s27, %s36
      %s251 = sor.u32 %s249, %s250
      %p252 = scmp.eq.s32.totalorder %s251, 0
      %s254 = sadd.s32 %s253, 1
      %s255 = scalar_select %p252, %s253, %s254
      %p258 = pneg %p252
      %p259 = scmp.eq.s32.totalorder %s18, 3
      %p260 = por %p258, %p259
      %p261 = scmp.ne.s32.totalorder %s253, %s256
      %p262 = scmp.eq.s32.totalorder %s18, 0
      %p263 = por %p261, %p262
      %p264 = scmp.ne.s32.totalorder %s253, %s256
      %p265 = scmp.eq.s32.totalorder %s23, 3
      %p266 = por %p264, %p265
      %p267 = scmp.ne.s32.totalorder %s256, %s257
      %p268 = scmp.eq.s32.totalorder %s23, 0
      %p269 = por %p267, %p268
      %p270 = scmp.ne.s32.totalorder %s256, %s257
      %p271 = scmp.eq.s32.totalorder %s24, 3
      %p272 = por %p270, %p271
      %p274 = scmp.ne.s32.totalorder %s257, %s273
      %p275 = scmp.eq.s32.totalorder %s24, 0
      %p276 = por %p274, %p275
      %s277 = ssub.s32 %s26, %s40
      %p278 = scmp.eq.s32.totalorder %s277, 0
      %s280 = sadd.s32 %s279, 1
      %s281 = scalar_select %p278, %s279, %s280
      %p284 = pneg %p278
      %p285 = scmp.eq.s32.totalorder %s18, 3
      %p286 = por %p284, %p285
      %p287 = scmp.ne.s32.totalorder %s279, %s282
      %p288 = scmp.eq.s32.totalorder %s18, 0
      %p289 = por %p287, %p288
      %p290 = scmp.ne.s32.totalorder %s279, %s282
      %p291 = scmp.eq.s32.totalorder %s23, 3
      %p292 = por %p290, %p291
      %p293 = scmp.ne.s32.totalorder %s282, %s283
      %p294 = scmp.eq.s32.totalorder %s23, 0
      %p295 = por %p293, %p294
      %p296 = scmp.ne.s32.totalorder %s282, %s283
      %p297 = scmp.eq.s32.totalorder %s24, 3
      %p298 = por %p296, %p297
      %p300 = scmp.ne.s32.totalorder %s283, %s299
      %p301 = scmp.eq.s32.totalorder %s24, 0
      %p302 = por %p300, %p301
      %s303 = ssub.s32 %s25, %s44
      %s304 = ssub.s32 %s27, %s36
      %s305 = sor.u32 %s303, %s304
      %s306 = ssub.s32 %s26, %s40
      %s307 = sor.u32 %s305, %s306
      %p308 = scmp.eq.s32.totalorder %s307, 0
      %s310 = sadd.s32 %s309, 1
      %s311 = scalar_select %p308, %s309, %s310
      %p314 = pneg %p308
      %p315 = scmp.eq.s32.totalorder %s18, 3
      %p316 = por %p314, %p315
      %p317 = scmp.ne.s32.totalorder %s309, %s312
      %p318 = scmp.eq.s32.totalorder %s18, 0
      %p319 = por %p317, %p318
      %p320 = scmp.ne.s32.totalorder %s309, %s312
      %p321 = scmp.eq.s32.totalorder %s23, 3
      %p322 = por %p320, %p321
      %p323 = scmp.ne.s32.totalorder %s312, %s313
      %p324 = scmp.eq.s32.totalorder %s23, 0
      %p325 = por %p323, %p324
      %p326 = scmp.ne.s32.totalorder %s312, %s313
      %p327 = scmp.eq.s32.totalorder %s24, 3
      %p328 = por %p326, %p327
      %p330 = scmp.ne.s32.totalorder %s313, %s329
      %p331 = scmp.eq.s32.totalorder %s24, 0
      %p332 = por %p330, %p331
      %p333 = scmp.le.s32.totalorder 1, %s18
      %p334 = scmp.lt.s32.totalorder %s18, 5
      %p335 = pnand %p333, %p334
      %p336 = pneg %p335
      // Predicated region
      $region9: #{unet_residual_block.5} parent=5 // pred_check
        _
      $region10: #{unet_residual_block.5} parent=5 // pred_check_branch
        %338 = sbr.rel (%p335) target = $region12
      $region11: #{unet_residual_block.5} parent=5 // pred_region
        %s339 = ssub.s32 %s18, 1
        // Predicated region
        $region13: #{unet_residual_block.5} parent=11 // pred_check
          %p340 = pneg %p215
        $region14: #{unet_residual_block.5} parent=11 // pred_check_branch
          %342 = sbr.rel (%p340) target = $region16
        $region15: #{unet_residual_block.5} parent=11 // pred_region
          %p343 = scmp.lt.s32.totalorder %s29, 0
          %s344 = scalar_select %p343, %s29, 0
          %s345 = smul.addr %s344, 4
          %s346 = scalar_lea.vmem %s5, %s345
        $region16: #{unet_residual_block.5} parent=11 // pred_fallthru
          _
        // Predicated region
        $region17: #{unet_residual_block.5} parent=11 // pred_check
          %p347 = pneg %p241
        $region18: #{unet_residual_block.5} parent=11 // pred_check_branch
          %349 = sbr.rel (%p347) target = $region20
        $region19: #{unet_residual_block.5} parent=11 // pred_region
          %p350 = scmp.lt.s32.totalorder %s29, 0
          %s351 = scalar_select %p350, %s29, 0
          %s352 = scalar_lea.vmem %s6, %s351
        $region20: #{unet_residual_block.5} parent=11 // pred_fallthru
          _
        // Predicated region
        $region21: #{unet_residual_block.5} parent=11 // pred_check
          %p353 = pneg %p295
        $region22: #{unet_residual_block.5} parent=11 // pred_check_branch
          %355 = sbr.rel (%p353) target = $region24
        $region23: #{unet_residual_block.5} parent=11 // pred_region
          %p356 = scmp.lt.s32.totalorder %s29, 0
          %s357 = scalar_select %p356, %s29, 0
          %s358 = smul.addr %s357, 4
          %s359 = scalar_lea.vmem %s8, %s358
        $region24: #{unet_residual_block.5} parent=11 // pred_fallthru
          _
      $region12: #{unet_residual_block.5} parent=5 // pred_fallthru
        _
      %p360 = scmp.lt.s32.totalorder %s18, 4
      // Predicated region
      $region25: #{unet_residual_block.5} parent=5 // pred_check
        %p361 = pneg %p360
      $region26: #{unet_residual_block.5} parent=5 // pred_check_branch
        %363 = sbr.rel (%p361) target = $region28
      $region27: #{unet_residual_block.5} parent=5 // pred_region
        // Predicated region
        $region29: #{unet_residual_block.5} parent=27 // pred_check
          %p364 = pneg %p59
        $region30: #{unet_residual_block.5} parent=27 // pred_check_branch
          %366 = sbr.rel (%p364) target = $region32
        $region31: #{unet_residual_block.5} parent=27 // pred_region
          %s367 = smul.u32 8, %s27
          %p368 = scmp.lt.s32.totalorder %s25, 1
          %s369 = scalar_select %p368, %s25, 1
          %p370 = scmp.lt.s32.totalorder %s367, 15
          %s371 = scalar_select %p370, %s367, 15
          %s372 = smul.addr %s371, 2
          %s373 = smul.addr %s369, 32
          %s374 = sadd.s32 %s372, %s373
          %s375 = smul.addr %s374, 4
          %s376 = scalar_lea.vmem %s0, %s375
          %s377 = smul.u32 8, %s27
        $region32: #{unet_residual_block.5} parent=27 // pred_fallthru
          _
        // Predicated region
        $region33: #{unet_residual_block.5} parent=27 // pred_check
          %p378 = pneg %p95
        $region34: #{unet_residual_block.5} parent=27 // pred_check_branch
          %380 = sbr.rel (%p378) target = $region36
        $region35: #{unet_residual_block.5} parent=27 // pred_region
          %s381 = smul.u32 %s27, 8
          %s382 = ssub.s32 %s381, 1
          %p383 = scmp.gt.s32.totalorder %s382, 0
          %s384 = scalar_select %p383, %s382, 0
          %p385 = scmp.lt.s32.totalorder %s25, 1
          %s386 = scalar_select %p385, %s25, 1
          %p387 = scmp.lt.s32.totalorder %s384, 15
          %s388 = scalar_select %p387, %s384, 15
          %s389 = smul.addr %s388, 2
          %s390 = smul.addr %s386, 32
          %s391 = sadd.s32 %s389, %s390
          %s392 = smul.addr %s391, 4
          %s393 = scalar_lea.vmem %s1, %s392
          %s394 = smul.u32 %s27, 8
          %s395 = ssub.s32 %s394, 1
          %p396 = scmp.gt.s32.totalorder %s395, 0
          %s397 = scalar_select %p396, %s395, 0
        $region36: #{unet_residual_block.5} parent=27 // pred_fallthru
          _
        // Predicated region
        $region37: #{unet_residual_block.5} parent=27 // pred_check
          %p398 = pneg %p131
        $region38: #{unet_residual_block.5} parent=27 // pred_check_branch
          %400 = sbr.rel (%p398) target = $region40
        $region39: #{unet_residual_block.5} parent=27 // pred_region
          %s401 = smul.u32 %s27, 8
          %s402 = sadd.s32 %s401, 8
          %p403 = scmp.lt.s32.totalorder %s402, 15
          %s404 = scalar_select %p403, %s402, 15
          %p405 = scmp.lt.s32.totalorder %s25, 1
          %s406 = scalar_select %p405, %s25, 1
          %p407 = scmp.lt.s32.totalorder %s404, 15
          %s408 = scalar_select %p407, %s404, 15
          %s409 = smul.addr %s408, 2
          %s410 = smul.addr %s406, 32
          %s411 = sadd.s32 %s409, %s410
          %s412 = smul.addr %s411, 4
          %s413 = scalar_lea.vmem %s2, %s412
          %s414 = smul.u32 %s27, 8
          %s415 = sadd.s32 %s414, 8
          %p416 = scmp.lt.s32.totalorder %s415, 15
          %s417 = scalar_select %p416, %s415, 15
        $region40: #{unet_residual_block.5} parent=27 // pred_fallthru
          _
        // Predicated region
        $region41: #{unet_residual_block.5} parent=27 // pred_check
          %p418 = pneg %p157
        $region42: #{unet_residual_block.5} parent=27 // pred_check_branch
          %420 = sbr.rel (%p418) target = $region44
        $region43: #{unet_residual_block.5} parent=27 // pred_region
          %p421 = scmp.lt.s32.totalorder %s25, 1
          %s422 = scalar_select %p421, %s25, 1
          %s423 = scalar_lea.vmem %s3, %s422
        $region44: #{unet_residual_block.5} parent=27 // pred_fallthru
          _
        // Predicated region
        $region45: #{unet_residual_block.5} parent=27 // pred_check
          %p424 = pneg %p183
        $region46: #{unet_residual_block.5} parent=27 // pred_check_branch
          %426 = sbr.rel (%p424) target = $region48
        $region47: #{unet_residual_block.5} parent=27 // pred_region
          %p427 = scmp.lt.s32.totalorder %s25, 1
          %s428 = scalar_select %p427, %s25, 1
          %s429 = scalar_lea.vmem %s4, %s428
        $region48: #{unet_residual_block.5} parent=27 // pred_fallthru
          _
        // Predicated region
        $region49: #{unet_residual_block.5} parent=27 // pred_check
          %p430 = pneg %p263
        $region50: #{unet_residual_block.5} parent=27 // pred_check_branch
          %432 = sbr.rel (%p430) target = $region52
        $region51: #{unet_residual_block.5} parent=27 // pred_region
          %s433 = smul.u32 8, %s27
          %p434 = scmp.lt.s32.totalorder %s25, 1
          %s435 = scalar_select %p434, %s25, 1
          %p436 = scmp.lt.s32.totalorder %s433, 15
          %s437 = scalar_select %p436, %s433, 15
          %s438 = smul.addr %s437, 2
          %s439 = smul.addr %s435, 32
          %s440 = sadd.s32 %s438, %s439
          %s441 = smul.addr %s440, 8
          %s442 = scalar_lea.vmem %s7, %s441
          %s443 = smul.u32 8, %s27
        $region52: #{unet_residual_block.5} parent=27 // pred_fallthru
          _
      $region28: #{unet_residual_block.5} parent=5 // pred_fallthru
        _
      %p444 = scmp.le.s32.totalorder 1, %s18
      %p445 = scmp.lt.s32.totalorder %s18, 5
      %p446 = pnand %p444, %p445
      %p447 = pneg %p446
      // Predicated region
      $region53: #{unet_residual_block.5} parent=5 // pred_check
        _
      $region54: #{unet_residual_block.5} parent=5 // pred_check_branch
        %449 = sbr.rel (%p446) target = $region56
      $region55: #{unet_residual_block.5} parent=5 // pred_region
        %s450 = ssub.s32 %s18, 1
        %s451 = smul.u32 8, %s30
        %p452 = scmp.lt.s32.totalorder %s28, 1
        %s453 = scalar_select %p452, %s28, 1
        %p454 = scmp.lt.s32.totalorder %s451, 15
        %s455 = scalar_select %p454, %s451, 15
        %s456 = smul.addr %s455, 2
        %s457 = smul.addr %s453, 32
        %s458 = sadd.s32 %s456, %s457
        %s459 = smul.addr %s458, 4
        %s460 = scalar_lea.vmem %s0, %s459
        %p461 = pneg %p65
        %p462 = pneg %p62
        %s463 = smul.u32 %s30, 8
        %s464 = ssub.s32 %s463, 1
        %p465 = scmp.gt.s32.totalorder %s464, 0
        %s466 = scalar_select %p465, %s464, 0
        %p467 = scmp.lt.s32.totalorder %s28, 1
        %s468 = scalar_select %p467, %s28, 1
        %p469 = scmp.lt.s32.totalorder %s466, 15
        %s470 = scalar_select %p469, %s466, 15
        %s471 = smul.addr %s470, 2
        %s472 = smul.addr %s468, 32
        %s473 = sadd.s32 %s471, %s472
        %s474 = smul.addr %s473, 4
        %s475 = scalar_lea.vmem %s1, %s474
        %p476 = pneg %p101
        %p477 = pneg %p98
        %s478 = smul.u32 %s30, 8
        %s479 = sadd.s32 %s478, 8
        %p480 = scmp.lt.s32.totalorder %s479, 15
        %s481 = scalar_select %p480, %s479, 15
        %p482 = scmp.lt.s32.totalorder %s28, 1
        %s483 = scalar_select %p482, %s28, 1
        %p484 = scmp.lt.s32.totalorder %s481, 15
        %s485 = scalar_select %p484, %s481, 15
        %s486 = smul.addr %s485, 2
        %s487 = smul.addr %s483, 32
        %s488 = sadd.s32 %s486, %s487
        %s489 = smul.addr %s488, 4
        %s490 = scalar_lea.vmem %s2, %s489
        %p491 = pneg %p137
        %p492 = pneg %p134
        %p493 = scmp.lt.s32.totalorder %s28, 1
        %s494 = scalar_select %p493, %s28, 1
        %s495 = scalar_lea.vmem %s3, %s494
        %p496 = pneg %p163
        %p497 = pneg %p160
        %p498 = scmp.lt.s32.totalorder %s28, 1
        %s499 = scalar_select %p498, %s28, 1
        %s500 = scalar_lea.vmem %s4, %s499
        %p501 = pneg %p189
        %p502 = pneg %p186
        %p503 = scmp.lt.s32.totalorder %s29, 0
        %s504 = scalar_select %p503, %s29, 0
        %s505 = smul.addr %s504, 4
        %s506 = scalar_lea.vmem %s5, %s505
        %p507 = pneg %p215
        %p508 = pneg %p212
        %p509 = scmp.lt.s32.totalorder %s29, 0
        %s510 = scalar_select %p509, %s29, 0
        %s511 = scalar_lea.vmem %s6, %s510
        %p512 = pneg %p241
        %p513 = pneg %p238
        %s514 = smul.u32 8, %s30
        %p515 = scmp.lt.s32.totalorder %s28, 1
        %s516 = scalar_select %p515, %s28, 1
        %p517 = scmp.lt.s32.totalorder %s514, 15
        %s518 = scalar_select %p517, %s514, 15
        %s519 = smul.addr %s518, 2
        %s520 = smul.addr %s516, 32
        %s521 = sadd.s32 %s519, %s520
        %s522 = smul.addr %s521, 8
        %s523 = scalar_lea.vmem %s7, %s522
        %p524 = pneg %p269
        %p525 = pneg %p266
        %p526 = scmp.lt.s32.totalorder %s29, 0
        %s527 = scalar_select %p526, %s29, 0
        %s528 = smul.addr %s527, 4
        %s529 = scalar_lea.vmem %s8, %s528
        %p530 = pneg %p295
        %p531 = pneg %p292
        %p532 = pneg %p325
        %p533 = pneg %p322
        %s534 = sand.u32 %s312, 1
        %s535 = scalar_lea.sflag [#allocation3], %s534
        %s536 = sand.u32 %s312, 1
        %s537 = smul.addr %s536, 128
        %s538 = scalar_lea.vmem [#allocation2], %s537
        %s539 = smul.u32 8, %s30
        %p540 = scmp.lt.s32.totalorder %s28, 1
        %s541 = scalar_select %p540, %s28, 1
        %p542 = scmp.lt.s32.totalorder %s539, 15
        %s543 = scalar_select %p542, %s539, 15
        %s544 = smul.addr %s543, 2
        %s545 = smul.addr %s541, 32
        %s546 = sadd.s32 %s544, %s545
        %s547 = smul.addr %s546, 4
        %s548 = scalar_lea.vmem %s0, %s547
        %s549 = smul.u32 8, %s30
        %s550 = smul.u32 %s30, 8
        %s551 = ssub.s32 %s550, 1
        %p552 = scmp.gt.s32.totalorder %s551, 0
        %s553 = scalar_select %p552, %s551, 0
        %p554 = scmp.lt.s32.totalorder %s28, 1
        %s555 = scalar_select %p554, %s28, 1
        %p556 = scmp.lt.s32.totalorder %s553, 15
        %s557 = scalar_select %p556, %s553, 15
        %s558 = smul.addr %s557, 2
        %s559 = smul.addr %s555, 32
        %s560 = sadd.s32 %s558, %s559
        %s561 = smul.addr %s560, 4
        %s562 = scalar_lea.vmem %s1, %s561
        %s563 = smul.u32 %s30, 8
        %s564 = ssub.s32 %s563, 1
        %p565 = scmp.gt.s32.totalorder %s564, 0
        %s566 = scalar_select %p565, %s564, 0
        %s567 = smul.u32 %s30, 8
        %s568 = sadd.s32 %s567, 8
        %p569 = scmp.lt.s32.totalorder %s568, 15
        %s570 = scalar_select %p569, %s568, 15
        %p571 = scmp.lt.s32.totalorder %s28, 1
        %s572 = scalar_select %p571, %s28, 1
        %p573 = scmp.lt.s32.totalorder %s570, 15
        %s574 = scalar_select %p573, %s570, 15
        %s575 = smul.addr %s574, 2
        %s576 = smul.addr %s572, 32
        %s577 = sadd.s32 %s575, %s576
        %s578 = smul.addr %s577, 4
        %s579 = scalar_lea.vmem %s2, %s578
        %s580 = smul.u32 %s30, 8
        %s581 = sadd.s32 %s580, 8
        %p582 = scmp.lt.s32.totalorder %s581, 15
        %s583 = scalar_select %p582, %s581, 15
        %p584 = scmp.lt.s32.totalorder %s28, 1
        %s585 = scalar_select %p584, %s28, 1
        %s586 = scalar_lea.vmem %s3, %s585
        %p587 = scmp.lt.s32.totalorder %s28, 1
        %s588 = scalar_select %p587, %s28, 1
        %s589 = scalar_lea.vmem %s4, %s588
        %p590 = scmp.lt.s32.totalorder %s29, 0
        %s591 = scalar_select %p590, %s29, 0
        %s592 = smul.addr %s591, 4
        %s593 = scalar_lea.vmem %s5, %s592
        %p594 = scmp.lt.s32.totalorder %s29, 0
        %s595 = scalar_select %p594, %s29, 0
        %s596 = scalar_lea.vmem %s6, %s595
        %s597 = smul.u32 8, %s30
        %p598 = scmp.lt.s32.totalorder %s28, 1
        %s599 = scalar_select %p598, %s28, 1
        %p600 = scmp.lt.s32.totalorder %s597, 15
        %s601 = scalar_select %p600, %s597, 15
        %s602 = smul.addr %s601, 2
        %s603 = smul.addr %s599, 32
        %s604 = sadd.s32 %s602, %s603
        %s605 = smul.addr %s604, 8
        %s606 = scalar_lea.vmem %s7, %s605
        %s607 = smul.u32 8, %s30
        %p608 = scmp.lt.s32.totalorder %s29, 0
        %s609 = scalar_select %p608, %s29, 0
        %s610 = smul.addr %s609, 4
        %s611 = scalar_lea.vmem %s8, %s610
        %s612 = smul.u32 8, %s30
        %v614 = vld [vmem:[%s586] sm:$0x1]
        %v615 = vld [vmem:[%s589] sm:$0x1]
        %v616 = vld [vmem:[%s548] sm:$0xf]
        %v617 = vld [vmem:[%s548 + $0x4] sm:$0xf]
        %v618 = vld [vmem:[%s548 + $0x8] sm:$0xf]
        %v619 = vld [vmem:[%s548 + $0xc] sm:$0xf]
        %v620 = vld [vmem:[%s548 + $0x10] sm:$0xf]
        %v621 = vld [vmem:[%s548 + $0x14] sm:$0xf]
        %v622 = vld [vmem:[%s548 + $0x18] sm:$0xf]
        %v623 = vld [vmem:[%s548 + $0x1c] sm:$0xf]
        %v624 = vld [vmem:[%s548 + $0x20] sm:$0xf]
        %v625 = vld [vmem:[%s548 + $0x24] sm:$0xf]
        %v626 = vld [vmem:[%s548 + $0x28] sm:$0xf]
        %v627 = vld [vmem:[%s548 + $0x2c] sm:$0xf]
        %v628 = vld [vmem:[%s548 + $0x30] sm:$0xf]
        %v629 = vld [vmem:[%s548 + $0x34] sm:$0xf]
        %v630 = vld [vmem:[%s548 + $0x38] sm:$0xf]
        %v631 = vld [vmem:[%s548 + $0x3c] sm:$0xf]
        %v632 = vunpack.c.l.bf16 %v616
        %v633 = vunpack.c.l.bf16 %v617
        %v634 = vunpack.c.l.bf16 %v618
        %v635 = vunpack.c.l.bf16 %v619
        %v636 = vunpack.c.l.bf16 %v620
        %v637 = vunpack.c.l.bf16 %v621
        %v638 = vunpack.c.l.bf16 %v622
        %v639 = vunpack.c.l.bf16 %v623
        %v640 = vunpack.c.l.bf16 %v624
        %v641 = vunpack.c.l.bf16 %v625
        %v642 = vunpack.c.l.bf16 %v626
        %v643 = vunpack.c.l.bf16 %v627
        %v644 = vunpack.c.l.bf16 %v628
        %v645 = vunpack.c.l.bf16 %v629
        %v646 = vunpack.c.l.bf16 %v630
        %v647 = vunpack.c.l.bf16 %v631
        %v649 = vlaneseq
        %v650 = vshrl.u32 %v649, 7
        %v651 = vsub.s32 0, %v650
        %v652 = vrot.slane %v614, %v651
        %v654 = vmul.f32 %v632, %v652
        %v655 = vmul.f32 %v633, %v652
        %v656 = vmul.f32 %v634, %v652
        %v657 = vmul.f32 %v635, %v652
        %v658 = vmul.f32 %v636, %v652
        %v659 = vmul.f32 %v637, %v652
        %v660 = vmul.f32 %v638, %v652
        %v661 = vmul.f32 %v639, %v652
        %v662 = vmul.f32 %v640, %v652
        %v663 = vmul.f32 %v641, %v652
        %v664 = vmul.f32 %v642, %v652
        %v665 = vmul.f32 %v643, %v652
        %v666 = vmul.f32 %v644, %v652
        %v667 = vmul.f32 %v645, %v652
        %v668 = vmul.f32 %v646, %v652
        %v669 = vmul.f32 %v647, %v652
        %v671 = vlaneseq
        %v672 = vshrl.u32 %v671, 7
        %v673 = vsub.s32 0, %v672
        %v674 = vrot.slane %v615, %v673
        %v676 = vadd.f32 %v654, %v674
        %v677 = vadd.f32 %v655, %v674
        %v678 = vadd.f32 %v656, %v674
        %v679 = vadd.f32 %v657, %v674
        %v680 = vadd.f32 %v658, %v674
        %v681 = vadd.f32 %v659, %v674
        %v682 = vadd.f32 %v660, %v674
        %v683 = vadd.f32 %v661, %v674
        %v684 = vadd.f32 %v662, %v674
        %v685 = vadd.f32 %v663, %v674
        %v686 = vadd.f32 %v664, %v674
        %v687 = vadd.f32 %v665, %v674
        %v688 = vadd.f32 %v666, %v674
        %v689 = vadd.f32 %v667, %v674
        %v690 = vadd.f32 %v668, %v674
        %v691 = vadd.f32 %v669, %v674
        %v692 = vxor.u32 %v676, 2147483648
        %v693 = vxor.u32 %v677, 2147483648
        %v694 = vxor.u32 %v678, 2147483648
        %v695 = vxor.u32 %v679, 2147483648
        %v696 = vxor.u32 %v680, 2147483648
        %v697 = vxor.u32 %v681, 2147483648
        %v698 = vxor.u32 %v682, 2147483648
        %v699 = vxor.u32 %v683, 2147483648
        %v700 = vxor.u32 %v684, 2147483648
        %v701 = vxor.u32 %v685, 2147483648
        %v702 = vxor.u32 %v686, 2147483648
        %v703 = vxor.u32 %v687, 2147483648
        %v704 = vxor.u32 %v688, 2147483648
        %v705 = vxor.u32 %v689, 2147483648
        %v706 = vxor.u32 %v690, 2147483648
        %v707 = vxor.u32 %v691, 2147483648
        %v708 = vmul.f32 %v692, 1.442695
        %v709 = vpow.pop %v708
        %v710 = vmul.f32 %v693, 1.442695
        %v711 = vpow.pop %v710
        %v712 = vmul.f32 %v694, 1.442695
        %v713 = vpow.pop %v712
        %v714 = vmul.f32 %v695, 1.442695
        %v715 = vpow.pop %v714
        %v716 = vmul.f32 %v696, 1.442695
        %v717 = vpow.pop %v716
        %v718 = vmul.f32 %v697, 1.442695
        %v719 = vpow.pop %v718
        %v720 = vmul.f32 %v698, 1.442695
        %v721 = vpow.pop %v720
        %v722 = vmul.f32 %v699, 1.442695
        %v723 = vpow.pop %v722
        %v724 = vmul.f32 %v700, 1.442695
        %v725 = vpow.pop %v724
        %v726 = vmul.f32 %v701, 1.442695
        %v727 = vpow.pop %v726
        %v728 = vmul.f32 %v702, 1.442695
        %v729 = vpow.pop %v728
        %v730 = vmul.f32 %v703, 1.442695
        %v731 = vpow.pop %v730
        %v732 = vmul.f32 %v704, 1.442695
        %v733 = vpow.pop %v732
        %v734 = vmul.f32 %v705, 1.442695
        %v735 = vpow.pop %v734
        %v736 = vmul.f32 %v706, 1.442695
        %v737 = vpow.pop %v736
        %v738 = vmul.f32 %v707, 1.442695
        %v739 = vpow.pop %v738
        %v740 = vadd.f32 %v709, 1.0
        %v741 = vadd.f32 %v711, 1.0
        %v742 = vadd.f32 %v713, 1.0
        %v743 = vadd.f32 %v715, 1.0
        %v744 = vadd.f32 %v717, 1.0
        %v745 = vadd.f32 %v719, 1.0
        %v746 = vadd.f32 %v721, 1.0
        %v747 = vadd.f32 %v723, 1.0
        %v748 = vadd.f32 %v725, 1.0
        %v749 = vadd.f32 %v727, 1.0
        %v750 = vadd.f32 %v729, 1.0
        %v751 = vadd.f32 %v731, 1.0
        %v752 = vadd.f32 %v733, 1.0
        %v753 = vadd.f32 %v735, 1.0
        %v754 = vadd.f32 %v737, 1.0
        %v755 = vadd.f32 %v739, 1.0
        %v756 = vrcp.pop %v740
        %v757 = vmul.f32 1.0, %v756
        %v758 = vrcp.pop %v741
        %v759 = vmul.f32 1.0, %v758
        %v760 = vrcp.pop %v742
        %v761 = vmul.f32 1.0, %v760
        %v762 = vrcp.pop %v743
        %v763 = vmul.f32 1.0, %v762
        %v764 = vrcp.pop %v744
        %v765 = vmul.f32 1.0, %v764
        %v766 = vrcp.pop %v745
        %v767 = vmul.f32 1.0, %v766
        %v768 = vrcp.pop %v746
        %v769 = vmul.f32 1.0, %v768
        %v770 = vrcp.pop %v747
        %v771 = vmul.f32 1.0, %v770
        %v772 = vrcp.pop %v748
        %v773 = vmul.f32 1.0, %v772
        %v774 = vrcp.pop %v749
        %v775 = vmul.f32 1.0, %v774
        %v776 = vrcp.pop %v750
        %v777 = vmul.f32 1.0, %v776
        %v778 = vrcp.pop %v751
        %v779 = vmul.f32 1.0, %v778
        %v780 = vrcp.pop %v752
        %v781 = vmul.f32 1.0, %v780
        %v782 = vrcp.pop %v753
        %v783 = vmul.f32 1.0, %v782
        %v784 = vrcp.pop %v754
        %v785 = vmul.f32 1.0, %v784
        %v786 = vrcp.pop %v755
        %v787 = vmul.f32 1.0, %v786
        %v788 = vmul.f32 %v676, %v757
        %v789 = vmul.f32 %v677, %v759
        %v790 = vmul.f32 %v678, %v761
        %v791 = vmul.f32 %v679, %v763
        %v792 = vmul.f32 %v680, %v765
        %v793 = vmul.f32 %v681, %v767
        %v794 = vmul.f32 %v682, %v769
        %v795 = vmul.f32 %v683, %v771
        %v796 = vmul.f32 %v684, %v773
        %v797 = vmul.f32 %v685, %v775
        %v798 = vmul.f32 %v686, %v777
        %v799 = vmul.f32 %v687, %v779
        %v800 = vmul.f32 %v688, %v781
        %v801 = vmul.f32 %v689, %v783
        %v802 = vmul.f32 %v690, %v785
        %v803 = vmul.f32 %v691, %v787
        %v804 = vld [vmem:[%s562] sm:$0xf]
        %v805 = vld [vmem:[%s562 + $0x4] sm:$0xf]
        %v806 = vunpack.c.l.bf16 %v804
        %v807 = vunpack.c.l.bf16 %v805
        %v808 = vmul.f32 %v806, %v652
        %v809 = vmul.f32 %v807, %v652
        %v810 = vadd.f32 %v808, %v674
        %v811 = vadd.f32 %v809, %v674
        %v812 = vxor.u32 %v810, 2147483648
        %v813 = vxor.u32 %v811, 2147483648
        %v814 = vmul.f32 %v812, 1.442695
        %v815 = vpow.pop %v814
        %v816 = vmul.f32 %v813, 1.442695
        %v817 = vpow.pop %v816
        %v818 = vadd.f32 %v815, 1.0
        %v819 = vadd.f32 %v817, 1.0
        %v820 = vrcp.pop %v818
        %v821 = vmul.f32 1.0, %v820
        %v822 = vrcp.pop %v819
        %v823 = vmul.f32 1.0, %v822
        %v824 = vmul.f32 %v810, %v821
        %v825 = vmul.f32 %v811, %v823
        %p826 = scmp.gt.s32.totalorder %s30, 0
        %s827 = scalar_select %p826, 1, 0
        %s828 = scvt.s32.f32 %s827
        %v829 = vstv %s828
        %v830 = vmul.f32 %v824, %v829
        %v831 = vmul.f32 %v825, %v829
        %v832 = vld [vmem:[%s579] sm:$0xf]
        %v833 = vld [vmem:[%s579 + $0x4] sm:$0xf]
        %v834 = vunpack.c.l.bf16 %v832
        %v835 = vunpack.c.l.bf16 %v833
        %v836 = vmul.f32 %v834, %v652
        %v837 = vmul.f32 %v835, %v652
        %v838 = vadd.f32 %v836, %v674
        %v839 = vadd.f32 %v837, %v674
        %v840 = vxor.u32 %v838, 2147483648
        %v841 = vxor.u32 %v839, 2147483648
        %v842 = vmul.f32 %v840, 1.442695
        %v843 = vpow.pop %v842
        %v844 = vmul.f32 %v841, 1.442695
        %v845 = vpow.pop %v844
        %v846 = vadd.f32 %v843, 1.0
        %v847 = vadd.f32 %v845, 1.0
        %v848 = vrcp.pop %v846
        %v849 = vmul.f32 1.0, %v848
        %v850 = vrcp.pop %v847
        %v851 = vmul.f32 1.0, %v850
        %v852 = vmul.f32 %v838, %v849
        %v853 = vmul.f32 %v839, %v851
        %p854 = scmp.lt.s32.totalorder %s30, 1
        %s855 = scalar_select %p854, 1, 0
        %s856 = scvt.s32.f32 %s855
        %v857 = vstv %s856
        %v858 = vmul.f32 %v852, %v857
        %v859 = vmul.f32 %v853, %v857
        %vm880 = vcmask 1040384
        %v881 = vrot.slane %v830, 7
        %v882 = vrot.slane %v831, 7
        %v883 = vsel %vm880, %v881, %v882
        %v884 = vrot.slane %v788, 7
        %v885 = vrot.slane %v789, 7
        %v886 = vsel %vm880, %v884, %v885
        %v887 = vrot.slane %v790, 7
        %v888 = vrot.slane %v791, 7
        %v889 = vsel %vm880, %v887, %v888
        %v890 = vrot.slane %v792, 7
        %v891 = vrot.slane %v793, 7
        %v892 = vsel %vm880, %v890, %v891
        %v893 = vrot.slane %v794, 7
        %v894 = vrot.slane %v795, 7
        %v895 = vsel %vm880, %v893, %v894
        %v896 = vrot.slane %v796, 7
        %v897 = vrot.slane %v797, 7
        %v898 = vsel %vm880, %v896, %v897
        %v899 = vrot.slane %v798, 7
        %v900 = vrot.slane %v799, 7
        %v901 = vsel %vm880, %v899, %v900
        %v902 = vrot.slane %v800, 7
        %v903 = vrot.slane %v801, 7
        %v904 = vsel %vm880, %v902, %v903
        %v905 = vrot.slane %v802, 7
        %v906 = vrot.slane %v803, 7
        %v907 = vsel %vm880, %v905, %v906
        %v908 = vrot.slane %v858, 7
        %v909 = vrot.slane %v859, 7
        %v910 = vsel %vm880, %v908, %v909
        %v931 = vsel %vm880, 0.0, %v881
        %v932 = vsel %vm880, 0.0, %v884
        %v933 = vsel %vm880, 0.0, %v887
        %v934 = vsel %vm880, 0.0, %v890
        %v935 = vsel %vm880, 0.0, %v893
        %v936 = vsel %vm880, 0.0, %v896
        %v937 = vsel %vm880, 0.0, %v899
        %v938 = vsel %vm880, 0.0, %v902
        %v939 = vsel %vm880, 0.0, %v905
        %v940 = vsel %vm880, 0.0, %v908
        %vm941 = vcmask 1046528
        %v942 = vrot.slane %v830, 1
        %v943 = vrot.slane %v831, 1
        %v944 = vsel %vm941, %v942, %v943
        %v945 = vrot.slane %v788, 1
        %v946 = vrot.slane %v789, 1
        %v947 = vsel %vm941, %v945, %v946
        %v948 = vrot.slane %v790, 1
        %v949 = vrot.slane %v791, 1
        %v950 = vsel %vm941, %v948, %v949
        %v951 = vrot.slane %v792, 1
        %v952 = vrot.slane %v793, 1
        %v953 = vsel %vm941, %v951, %v952
        %v954 = vrot.slane %v794, 1
        %v955 = vrot.slane %v795, 1
        %v956 = vsel %vm941, %v954, %v955
        %v957 = vrot.slane %v796, 1
        %v958 = vrot.slane %v797, 1
        %v959 = vsel %vm941, %v957, %v958
        %v960 = vrot.slane %v798, 1
        %v961 = vrot.slane %v799, 1
        %v962 = vsel %vm941, %v960, %v961
        %v963 = vrot.slane %v800, 1
        %v964 = vrot.slane %v801, 1
        %v965 = vsel %vm941, %v963, %v964
        %v966 = vrot.slane %v802, 1
        %v967 = vrot.slane %v803, 1
        %v968 = vsel %vm941, %v966, %v967
        %v969 = vrot.slane %v858, 1
        %v970 = vrot.slane %v859, 1
        %v971 = vsel %vm941, %v969, %v970
        %v992 = vsel %vm941, %v943, 0.0
        %v993 = vsel %vm941, %v946, 0.0
        %v994 = vsel %vm941, %v949, 0.0
        %v995 = vsel %vm941, %v952, 0.0
        %v996 = vsel %vm941, %v955, 0.0
        %v997 = vsel %vm941, %v958, 0.0
        %v998 = vsel %vm941, %v961, 0.0
        %v999 = vsel %vm941, %v964, 0.0
        %v1000 = vsel %vm941, %v967, 0.0
        %v1001 = vsel %vm941, %v970, 0.0
        %v1002 = vpack.c.bf16 %v883, %v931
        %v1003 = vpack.c.bf16 %v886, %v932
        %v1004 = vpack.c.bf16 %v889, %v933
        %v1005 = vpack.c.bf16 %v892, %v934
        %v1006 = vpack.c.bf16 %v895, %v935
        %v1007 = vpack.c.bf16 %v898, %v936
        %v1008 = vpack.c.bf16 %v901, %v937
        %v1009 = vpack.c.bf16 %v904, %v938
        %v1010 = vpack.c.bf16 %v907, %v939
        %v1011 = vpack.c.bf16 %v910, %v940
        %v1012 = vpack.c.bf16 %v831, %v830
        %v1013 = vpack.c.bf16 %v789, %v788
        %v1014 = vpack.c.bf16 %v791, %v790
        %v1015 = vpack.c.bf16 %v793, %v792
        %v1016 = vpack.c.bf16 %v795, %v794
        %v1017 = vpack.c.bf16 %v797, %v796
        %v1018 = vpack.c.bf16 %v799, %v798
        %v1019 = vpack.c.bf16 %v801, %v800
        %v1020 = vpack.c.bf16 %v803, %v802
        %v1021 = vpack.c.bf16 %v859, %v858
        %v1022 = vpack.c.bf16 %v992, %v944
        %v1023 = vpack.c.bf16 %v993, %v947
        %v1024 = vpack.c.bf16 %v994, %v950
        %v1025 = vpack.c.bf16 %v995, %v953
        %v1026 = vpack.c.bf16 %v996, %v956
        %v1027 = vpack.c.bf16 %v997, %v959
        %v1028 = vpack.c.bf16 %v998, %v962
        %v1029 = vpack.c.bf16 %v999, %v965
        %v1030 = vpack.c.bf16 %v1000, %v968
        %v1031 = vpack.c.bf16 %v1001, %v971
        %v1032 = vld [vmem:[%s593] sm:$0xf]
        %v1033 = vld [vmem:[%s593 + $0x4] sm:$0xf]
        %v1034 = vld [vmem:[%s593 + $0x8] sm:$0xf]
        %v1035 = vld [vmem:[%s593 + $0xc] sm:$0xf]
        %v1036 = vld [vmem:[%s593 + $0x10] sm:$0xf]
        %v1037 = vld [vmem:[%s593 + $0x14] sm:$0xf]
        %v1038 = vld [vmem:[%s593 + $0x18] sm:$0xf]
        %v1039 = vld [vmem:[%s593 + $0x1c] sm:$0xf]
        %s1040 = scalar_lea.vmem %s593, 32
        %v1041 = vld [vmem:[%s1040] sm:$0xf]
        %v1042 = vld [vmem:[%s1040 + $0x4] sm:$0xf]
        %v1043 = vld [vmem:[%s1040 + $0x8] sm:$0xf]
        %v1044 = vld [vmem:[%s1040 + $0xc] sm:$0xf]
        %v1045 = vld [vmem:[%s1040 + $0x10] sm:$0xf]
        %v1046 = vld [vmem:[%s1040 + $0x14] sm:$0xf]
        %v1047 = vld [vmem:[%s1040 + $0x18] sm:$0xf]
        %v1048 = vld [vmem:[%s1040 + $0x1c] sm:$0xf]
        %v1057 = vunpack.c.l.b16 %v1041
        %v1058 = vunpack.c.l.b16 %v1042
        %v1059 = vunpack.c.l.b16 %v1043
        %v1060 = vunpack.c.l.b16 %v1044
        %v1061 = vunpack.c.l.b16 %v1045
        %v1062 = vunpack.c.l.b16 %v1046
        %v1063 = vunpack.c.l.b16 %v1047
        %v1064 = vunpack.c.l.b16 %v1048
        %v1065 = vpack.c.b16 %v1058, %v1057
        %v1066 = vpack.c.b16 %v1060, %v1059
        %v1067 = vpack.c.b16 %v1062, %v1061
        %v1068 = vpack.c.b16 %v1064, %v1063
        %vm1073 = vcmask 523264
        %v1075 = vsel %vm1073, %v1012, 0
        %v1078 = vsel %vm1073, %v1013, 0
        %v1081 = vsel %vm1073, %v1014, 0
        %v1084 = vsel %vm1073, %v1015, 0
        %v1087 = vsel %vm1073, %v1016, 0
        %v1090 = vsel %vm1073, %v1017, 0
        %v1093 = vsel %vm1073, %v1018, 0
        %v1096 = vsel %vm1073, %v1019, 0
        %1098 = vmatprep.subr.bf16.mxu0 0
        %1099 = vmatpush1.bf16.msra.mxu0 0
        %1100 = vmatprep.subr.bf16.mxu0 0
        %1101 = vmatpush1.bf16.msra.mxu0 0
        %1102 = vmatprep.subr.bf16.mxu0 0
        %1103 = vmatpush1.bf16.msra.mxu0 0
        %1104 = vmatprep.subr.bf16.mxu0 0
        %1105 = vmatpush1.bf16.msra.mxu0 0
        %1106 = vmatprep.subr.bf16.mxu0 0
        %1107 = vmatpush1.bf16.msra.mxu0 %v1068
        %1108 = vmatprep.subr.bf16.mxu0 0
        %1109 = vmatpush1.bf16.msra.mxu0 %v1067
        %1110 = vmatprep.subr.bf16.mxu0 0
        %1111 = vmatpush1.bf16.msra.mxu0 %v1066
        %1112 = vmatprep.subr.bf16.mxu0 0
        %1113 = vmatpush1.bf16.msra.mxu0 %v1065
        %1114 = vmatprep.subr.bf16.mxu0 0
        %1115 = vmatpush2.bf16.msra.mxu0 0
        %1116 = vmatprep.subr.bf16.mxu0 0
        %1117 = vmatpush2.bf16.msra.mxu0 0
        %1118 = vmatprep.subr.bf16.mxu0 0
        %1119 = vmatpush2.bf16.msra.mxu0 0
        %1120 = vmatprep.subr.bf16.mxu0 0
        %1121 = vmatpush2.bf16.msra.mxu0 0
        %1122 = vmatprep.subr.bf16.mxu0 0
        %1123 = vmatpush2.bf16.msra.mxu0 0
        %1124 = vmatprep.subr.bf16.mxu0 0
        %1125 = vmatpush2.bf16.msra.mxu0 0
        %1126 = vmatprep.subr.bf16.mxu0 0
        %1127 = vmatpush2.bf16.msra.mxu0 0
        %1128 = vmatprep.subr.bf16.mxu0 0
        %1129 = vmatpush2.bf16.msra.mxu0 0
        %1130 = vmatprep.mubr.bf16.mxu0 0
        %1131 = vmatmul.mubr.bf16.gmra.mxu0 %v1075
        %v1132 = vpop.f32.mrf.mxu0
        %v1133 = vadd.f32 0.0, %v1132
        %v1134 = vpop.f32.mrf.mxu0
        %v1135 = vpop.f32.mrf.mxu0
        %v1136 = vadd.f32 0.0, %v1135
        %v1137 = vpop.f32.mrf.mxu0
        %1138 = vmatprep.mubr.bf16.mxu0 0
        %1139 = vmatmul.mubr.bf16.gmra.mxu0 %v1078
        %v1140 = vpop.f32.mrf.mxu0
        %v1141 = vadd.f32 0.0, %v1140
        %v1142 = vpop.f32.mrf.mxu0
        %v1143 = vpop.f32.mrf.mxu0
        %v1144 = vadd.f32 0.0, %v1143
        %v1145 = vpop.f32.mrf.mxu0
        %1146 = vmatprep.mubr.bf16.mxu0 0
        %1147 = vmatmul.mubr.bf16.gmra.mxu0 %v1081
        %v1148 = vpop.f32.mrf.mxu0
        %v1149 = vadd.f32 0.0, %v1148
        %v1150 = vpop.f32.mrf.mxu0
        %v1151 = vpop.f32.mrf.mxu0
        %v1152 = vadd.f32 0.0, %v1151
        %v1153 = vpop.f32.mrf.mxu0
        %1154 = vmatprep.mubr.bf16.mxu0 0
        %1155 = vmatmul.mubr.bf16.gmra.mxu0 %v1084
        %v1156 = vpop.f32.mrf.mxu0
        %v1157 = vadd.f32 0.0, %v1156
        %v1158 = vpop.f32.mrf.mxu0
        %v1159 = vpop.f32.mrf.mxu0
        %v1160 = vadd.f32 0.0, %v1159
        %v1161 = vpop.f32.mrf.mxu0
        %1162 = vmatprep.mubr.bf16.mxu0 0
        %1163 = vmatmul.mubr.bf16.gmra.mxu0 %v1087
        %v1164 = vpop.f32.mrf.mxu0
        %v1165 = vadd.f32 0.0, %v1164
        %v1166 = vpop.f32.mrf.mxu0
        %v1167 = vpop.f32.mrf.mxu0
        %v1168 = vadd.f32 0.0, %v1167
        %v1169 = vpop.f32.mrf.mxu0
        %1170 = vmatprep.mubr.bf16.mxu0 0
        %1171 = vmatmul.mubr.bf16.gmra.mxu0 %v1090
        %v1172 = vpop.f32.mrf.mxu0
        %v1173 = vadd.f32 0.0, %v1172
        %v1174 = vpop.f32.mrf.mxu0
        %v1175 = vpop.f32.mrf.mxu0
        %v1176 = vadd.f32 0.0, %v1175
        %v1177 = vpop.f32.mrf.mxu0
        %1178 = vmatprep.mubr.bf16.mxu0 0
        %1179 = vmatmul.mubr.bf16.gmra.mxu0 %v1093
        %v1180 = vpop.f32.mrf.mxu0
        %v1181 = vadd.f32 0.0, %v1180
        %v1182 = vpop.f32.mrf.mxu0
        %v1183 = vpop.f32.mrf.mxu0
        %v1184 = vadd.f32 0.0, %v1183
        %v1185 = vpop.f32.mrf.mxu0
        %1186 = vmatprep.mubr.bf16.mxu0 0
        %1187 = vmatmul.mubr.bf16.gmra.mxu0 %v1096
        %v1188 = vpop.f32.mrf.mxu0
        %v1189 = vadd.f32 0.0, %v1188
        %v1190 = vpop.f32.mrf.mxu0
        %v1191 = vpop.f32.mrf.mxu0
        %v1192 = vadd.f32 0.0, %v1191
        %v1193 = vpop.f32.mrf.mxu0
        %1194 = vdwg.mxu0
        %v1203 = vunpack.c.l.b16 %v1032
        %v1204 = vunpack.c.l.b16 %v1033
        %v1205 = vunpack.c.l.b16 %v1034
        %v1206 = vunpack.c.l.b16 %v1035
        %v1207 = vunpack.c.l.b16 %v1036
        %v1208 = vunpack.c.l.b16 %v1037
        %v1209 = vunpack.c.l.b16 %v1038
        %v1210 = vunpack.c.l.b16 %v1039
        %v1211 = vpack.c.b16 %v1204, %v1203
        %v1212 = vpack.c.b16 %v1206, %v1205
        %v1213 = vpack.c.b16 %v1208, %v1207
        %v1214 = vpack.c.b16 %v1210, %v1209
        %v1220 = vsel %vm1073, %v1002, 0
        %v1223 = vsel %vm1073, %v1003, 0
        %v1226 = vsel %vm1073, %v1004, 0
        %v1229 = vsel %vm1073, %v1005, 0
        %v1232 = vsel %vm1073, %v1006, 0
        %v1235 = vsel %vm1073, %v1007, 0
        %v1238 = vsel %vm1073, %v1008, 0
        %v1241 = vsel %vm1073, %v1009, 0
        %1243 = vmatprep.subr.bf16.mxu0 0
        %1244 = vmatpush1.bf16.msra.mxu0 0
        %1245 = vmatprep.subr.bf16.mxu0 0
        %1246 = vmatpush1.bf16.msra.mxu0 0
        %1247 = vmatprep.subr.bf16.mxu0 0
        %1248 = vmatpush1.bf16.msra.mxu0 0
        %1249 = vmatprep.subr.bf16.mxu0 0
        %1250 = vmatpush1.bf16.msra.mxu0 0
        %1251 = vmatprep.subr.bf16.mxu0 0
        %1252 = vmatpush1.bf16.msra.mxu0 %v1214
        %1253 = vmatprep.subr.bf16.mxu0 0
        %1254 = vmatpush1.bf16.msra.mxu0 %v1213
        %1255 = vmatprep.subr.bf16.mxu0 0
        %1256 = vmatpush1.bf16.msra.mxu0 %v1212
        %1257 = vmatprep.subr.bf16.mxu0 0
        %1258 = vmatpush1.bf16.msra.mxu0 %v1211
        %1259 = vmatprep.subr.bf16.mxu0 0
        %1260 = vmatpush2.bf16.msra.mxu0 0
        %1261 = vmatprep.subr.bf16.mxu0 0
        %1262 = vmatpush2.bf16.msra.mxu0 0
        %1263 = vmatprep.subr.bf16.mxu0 0
        %1264 = vmatpush2.bf16.msra.mxu0 0
        %1265 = vmatprep.subr.bf16.mxu0 0
        %1266 = vmatpush2.bf16.msra.mxu0 0
        %1267 = vmatprep.subr.bf16.mxu0 0
        %1268 = vmatpush2.bf16.msra.mxu0 0
        %1269 = vmatprep.subr.bf16.mxu0 0
        %1270 = vmatpush2.bf16.msra.mxu0 0
        %1271 = vmatprep.subr.bf16.mxu0 0
        %1272 = vmatpush2.bf16.msra.mxu0 0
        %1273 = vmatprep.subr.bf16.mxu0 0
        %1274 = vmatpush2.bf16.msra.mxu0 0
        %1275 = vmatprep.mubr.bf16.mxu0 0
        %1276 = vmatmul.mubr.bf16.gmra.mxu0 %v1220
        %v1277 = vpop.f32.mrf.mxu0
        %v1278 = vadd.f32 %v1133, %v1277
        %v1279 = vpop.f32.mrf.mxu0
        %v1280 = vpop.f32.mrf.mxu0
        %v1281 = vadd.f32 %v1136, %v1280
        %v1282 = vpop.f32.mrf.mxu0
        %1283 = vmatprep.mubr.bf16.mxu0 0
        %1284 = vmatmul.mubr.bf16.gmra.mxu0 %v1223
        %v1285 = vpop.f32.mrf.mxu0
        %v1286 = vadd.f32 %v1141, %v1285
        %v1287 = vpop.f32.mrf.mxu0
        %v1288 = vpop.f32.mrf.mxu0
        %v1289 = vadd.f32 %v1144, %v1288
        %v1290 = vpop.f32.mrf.mxu0
        %1291 = vmatprep.mubr.bf16.mxu0 0
        %1292 = vmatmul.mubr.bf16.gmra.mxu0 %v1226
        %v1293 = vpop.f32.mrf.mxu0
        %v1294 = vadd.f32 %v1149, %v1293
        %v1295 = vpop.f32.mrf.mxu0
        %v1296 = vpop.f32.mrf.mxu0
        %v1297 = vadd.f32 %v1152, %v1296
        %v1298 = vpop.f32.mrf.mxu0
        %1299 = vmatprep.mubr.bf16.mxu0 0
        %1300 = vmatmul.mubr.bf16.gmra.mxu0 %v1229
        %v1301 = vpop.f32.mrf.mxu0
        %v1302 = vadd.f32 %v1157, %v1301
        %v1303 = vpop.f32.mrf.mxu0
        %v1304 = vpop.f32.mrf.mxu0
        %v1305 = vadd.f32 %v1160, %v1304
        %v1306 = vpop.f32.mrf.mxu0
        %1307 = vmatprep.mubr.bf16.mxu0 0
        %1308 = vmatmul.mubr.bf16.gmra.mxu0 %v1232
        %v1309 = vpop.f32.mrf.mxu0
        %v1310 = vadd.f32 %v1165, %v1309
        %v1311 = vpop.f32.mrf.mxu0
        %v1312 = vpop.f32.mrf.mxu0
        %v1313 = vadd.f32 %v1168, %v1312
        %v1314 = vpop.f32.mrf.mxu0
        %1315 = vmatprep.mubr.bf16.mxu0 0
        %1316 = vmatmul.mubr.bf16.gmra.mxu0 %v1235
        %v1317 = vpop.f32.mrf.mxu0
        %v1318 = vadd.f32 %v1173, %v1317
        %v1319 = vpop.f32.mrf.mxu0
        %v1320 = vpop.f32.mrf.mxu0
        %v1321 = vadd.f32 %v1176, %v1320
        %v1322 = vpop.f32.mrf.mxu0
        %1323 = vmatprep.mubr.bf16.mxu0 0
        %1324 = vmatmul.mubr.bf16.gmra.mxu0 %v1238
        %v1325 = vpop.f32.mrf.mxu0
        %v1326 = vadd.f32 %v1181, %v1325
        %v1327 = vpop.f32.mrf.mxu0
        %v1328 = vpop.f32.mrf.mxu0
        %v1329 = vadd.f32 %v1184, %v1328
        %v1330 = vpop.f32.mrf.mxu0
        %1331 = vmatprep.mubr.bf16.mxu0 0
        %1332 = vmatmul.mubr.bf16.gmra.mxu0 %v1241
        %v1333 = vpop.f32.mrf.mxu0
        %v1334 = vadd.f32 %v1189, %v1333
        %v1335 = vpop.f32.mrf.mxu0
        %v1336 = vpop.f32.mrf.mxu0
        %v1337 = vadd.f32 %v1192, %v1336
        %v1338 = vpop.f32.mrf.mxu0
        %1339 = vdwg.mxu0
        %s1340 = scalar_lea.vmem %s593, 64
        %v1341 = vld [vmem:[%s1340] sm:$0xf]
        %v1342 = vld [vmem:[%s1340 + $0x4] sm:$0xf]
        %v1343 = vld [vmem:[%s1340 + $0x8] sm:$0xf]
        %v1344 = vld [vmem:[%s1340 + $0xc] sm:$0xf]
        %v1345 = vld [vmem:[%s1340 + $0x10] sm:$0xf]
        %v1346 = vld [vmem:[%s1340 + $0x14] sm:$0xf]
        %v1347 = vld [vmem:[%s1340 + $0x18] sm:$0xf]
        %v1348 = vld [vmem:[%s1340 + $0x1c] sm:$0xf]
        %v1357 = vunpack.c.l.b16 %v1341
        %v1358 = vunpack.c.l.b16 %v1342
        %v1359 = vunpack.c.l.b16 %v1343
        %v1360 = vunpack.c.l.b16 %v1344
        %v1361 = vunpack.c.l.b16 %v1345
        %v1362 = vunpack.c.l.b16 %v1346
        %v1363 = vunpack.c.l.b16 %v1347
        %v1364 = vunpack.c.l.b16 %v1348
        %v1365 = vpack.c.b16 %v1358, %v1357
        %v1366 = vpack.c.b16 %v1360, %v1359
        %v1367 = vpack.c.b16 %v1362, %v1361
        %v1368 = vpack.c.b16 %v1364, %v1363
        %v1374 = vsel %vm1073, %v1022, 0
        %v1377 = vsel %vm1073, %v1023, 0
        %v1380 = vsel %vm1073, %v1024, 0
        %v1383 = vsel %vm1073, %v1025, 0
        %v1386 = vsel %vm1073, %v1026, 0
        %v1389 = vsel %vm1073, %v1027, 0
        %v1392 = vsel %vm1073, %v1028, 0
        %v1395 = vsel %vm1073, %v1029, 0
        %1397 = vmatprep.subr.bf16.mxu0 0
        %1398 = vmatpush1.bf16.msra.mxu0 0
        %1399 = vmatprep.subr.bf16.mxu0 0
        %1400 = vmatpush1.bf16.msra.mxu0 0
        %1401 = vmatprep.subr.bf16.mxu0 0
        %1402 = vmatpush1.bf16.msra.mxu0 0
        %1403 = vmatprep.subr.bf16.mxu0 0
        %1404 = vmatpush1.bf16.msra.mxu0 0
        %1405 = vmatprep.subr.bf16.mxu0 0
        %1406 = vmatpush1.bf16.msra.mxu0 %v1368
        %1407 = vmatprep.subr.bf16.mxu0 0
        %1408 = vmatpush1.bf16.msra.mxu0 %v1367
        %1409 = vmatprep.subr.bf16.mxu0 0
        %1410 = vmatpush1.bf16.msra.mxu0 %v1366
        %1411 = vmatprep.subr.bf16.mxu0 0
        %1412 = vmatpush1.bf16.msra.mxu0 %v1365
        %1413 = vmatprep.subr.bf16.mxu0 0
        %1414 = vmatpush2.bf16.msra.mxu0 0
        %1415 = vmatprep.subr.bf16.mxu0 0
        %1416 = vmatpush2.bf16.msra.mxu0 0
        %1417 = vmatprep.subr.bf16.mxu0 0
        %1418 = vmatpush2.bf16.msra.mxu0 0
        %1419 = vmatprep.subr.bf16.mxu0 0
        %1420 = vmatpush2.bf16.msra.mxu0 0
        %1421 = vmatprep.subr.bf16.mxu0 0
        %1422 = vmatpush2.bf16.msra.mxu0 0
        %1423 = vmatprep.subr.bf16.mxu0 0
        %1424 = vmatpush2.bf16.msra.mxu0 0
        %1425 = vmatprep.subr.bf16.mxu0 0
        %1426 = vmatpush2.bf16.msra.mxu0 0
        %1427 = vmatprep.subr.bf16.mxu0 0
        %1428 = vmatpush2.bf16.msra.mxu0 0
        %1429 = vmatprep.mubr.bf16.mxu0 0
        %1430 = vmatmul.mubr.bf16.gmra.mxu0 %v1374
        %v1431 = vpop.f32.mrf.mxu0
        %v1432 = vadd.f32 0.0, %v1431
        %v1433 = vpop.f32.mrf.mxu0
        %v1434 = vpop.f32.mrf.mxu0
        %v1435 = vadd.f32 0.0, %v1434
        %v1436 = vpop.f32.mrf.mxu0
        %1437 = vmatprep.mubr.bf16.mxu0 0
        %1438 = vmatmul.mubr.bf16.gmra.mxu0 %v1377
        %v1439 = vpop.f32.mrf.mxu0
        %v1440 = vadd.f32 0.0, %v1439
        %v1441 = vpop.f32.mrf.mxu0
        %v1442 = vpop.f32.mrf.mxu0
        %v1443 = vadd.f32 0.0, %v1442
        %v1444 = vpop.f32.mrf.mxu0
        %1445 = vmatprep.mubr.bf16.mxu0 0
        %1446 = vmatmul.mubr.bf16.gmra.mxu0 %v1380
        %v1447 = vpop.f32.mrf.mxu0
        %v1448 = vadd.f32 0.0, %v1447
        %v1449 = vpop.f32.mrf.mxu0
        %v1450 = vpop.f32.mrf.mxu0
        %v1451 = vadd.f32 0.0, %v1450
        %v1452 = vpop.f32.mrf.mxu0
        %1453 = vmatprep.mubr.bf16.mxu0 0
        %1454 = vmatmul.mubr.bf16.gmra.mxu0 %v1383
        %v1455 = vpop.f32.mrf.mxu0
        %v1456 = vadd.f32 0.0, %v1455
        %v1457 = vpop.f32.mrf.mxu0
        %v1458 = vpop.f32.mrf.mxu0
        %v1459 = vadd.f32 0.0, %v1458
        %v1460 = vpop.f32.mrf.mxu0
        %1461 = vmatprep.mubr.bf16.mxu0 0
        %1462 = vmatmul.mubr.bf16.gmra.mxu0 %v1386
        %v1463 = vpop.f32.mrf.mxu0
        %v1464 = vadd.f32 0.0, %v1463
        %v1465 = vpop.f32.mrf.mxu0
        %v1466 = vpop.f32.mrf.mxu0
        %v1467 = vadd.f32 0.0, %v1466
        %v1468 = vpop.f32.mrf.mxu0
        %1469 = vmatprep.mubr.bf16.mxu0 0
        %1470 = vmatmul.mubr.bf16.gmra.mxu0 %v1389
        %v1471 = vpop.f32.mrf.mxu0
        %v1472 = vadd.f32 0.0, %v1471
        %v1473 = vpop.f32.mrf.mxu0
        %v1474 = vpop.f32.mrf.mxu0
        %v1475 = vadd.f32 0.0, %v1474
        %v1476 = vpop.f32.mrf.mxu0
        %1477 = vmatprep.mubr.bf16.mxu0 0
        %1478 = vmatmul.mubr.bf16.gmra.mxu0 %v1392
        %v1479 = vpop.f32.mrf.mxu0
        %v1480 = vadd.f32 0.0, %v1479
        %v1481 = vpop.f32.mrf.mxu0
        %v1482 = vpop.f32.mrf.mxu0
        %v1483 = vadd.f32 0.0, %v1482
        %v1484 = vpop.f32.mrf.mxu0
        %1485 = vmatprep.mubr.bf16.mxu0 0
        %1486 = vmatmul.mubr.bf16.gmra.mxu0 %v1395
        %v1487 = vpop.f32.mrf.mxu0
        %v1488 = vadd.f32 0.0, %v1487
        %v1489 = vpop.f32.mrf.mxu0
        %v1490 = vpop.f32.mrf.mxu0
        %v1491 = vadd.f32 0.0, %v1490
        %v1492 = vpop.f32.mrf.mxu0
        %1493 = vdwg.mxu0
        %v1494 = vadd.f32 %v1278, %v1432
        %v1495 = vadd.f32 %v1281, %v1435
        %v1496 = vadd.f32 %v1286, %v1440
        %v1497 = vadd.f32 %v1289, %v1443
        %v1498 = vadd.f32 %v1294, %v1448
        %v1499 = vadd.f32 %v1297, %v1451
        %v1500 = vadd.f32 %v1302, %v1456
        %v1501 = vadd.f32 %v1305, %v1459
        %v1502 = vadd.f32 %v1310, %v1464
        %v1503 = vadd.f32 %v1313, %v1467
        %v1504 = vadd.f32 %v1318, %v1472
        %v1505 = vadd.f32 %v1321, %v1475
        %v1506 = vadd.f32 %v1326, %v1480
        %v1507 = vadd.f32 %v1329, %v1483
        %v1508 = vadd.f32 %v1334, %v1488
        %v1509 = vadd.f32 %v1337, %v1491
        %s1510 = scalar_lea.vmem %s593, 96
        %v1511 = vld [vmem:[%s1510] sm:$0xf]
        %v1512 = vld [vmem:[%s1510 + $0x4] sm:$0xf]
        %v1513 = vld [vmem:[%s1510 + $0x8] sm:$0xf]
        %v1514 = vld [vmem:[%s1510 + $0xc] sm:$0xf]
        %v1515 = vld [vmem:[%s1510 + $0x10] sm:$0xf]
        %v1516 = vld [vmem:[%s1510 + $0x14] sm:$0xf]
        %v1517 = vld [vmem:[%s1510 + $0x18] sm:$0xf]
        %v1518 = vld [vmem:[%s1510 + $0x1c] sm:$0xf]
        %v1527 = vunpack.c.l.b16 %v1511
        %v1528 = vunpack.c.l.b16 %v1512
        %v1529 = vunpack.c.l.b16 %v1513
        %v1530 = vunpack.c.l.b16 %v1514
        %v1531 = vunpack.c.l.b16 %v1515
        %v1532 = vunpack.c.l.b16 %v1516
        %v1533 = vunpack.c.l.b16 %v1517
        %v1534 = vunpack.c.l.b16 %v1518
        %v1535 = vpack.c.b16 %v1528, %v1527
        %v1536 = vpack.c.b16 %v1530, %v1529
        %v1537 = vpack.c.b16 %v1532, %v1531
        %v1538 = vpack.c.b16 %v1534, %v1533
        %v1544 = vsel %vm1073, %v1010, 0
        %1546 = vmatprep.subr.bf16.mxu0 0
        %1547 = vmatpush1.bf16.msra.mxu0 0
        %1548 = vmatprep.subr.bf16.mxu0 0
        %1549 = vmatpush1.bf16.msra.mxu0 0
        %1550 = vmatprep.subr.bf16.mxu0 0
        %1551 = vmatpush1.bf16.msra.mxu0 0
        %1552 = vmatprep.subr.bf16.mxu0 0
        %1553 = vmatpush1.bf16.msra.mxu0 0
        %1554 = vmatprep.subr.bf16.mxu0 0
        %1555 = vmatpush1.bf16.msra.mxu0 %v1538
        %1556 = vmatprep.subr.bf16.mxu0 0
        %1557 = vmatpush1.bf16.msra.mxu0 %v1537
        %1558 = vmatprep.subr.bf16.mxu0 0
        %1559 = vmatpush1.bf16.msra.mxu0 %v1536
        %1560 = vmatprep.subr.bf16.mxu0 0
        %1561 = vmatpush1.bf16.msra.mxu0 %v1535
        %1562 = vmatprep.subr.bf16.mxu0 0
        %1563 = vmatpush2.bf16.msra.mxu0 0
        %1564 = vmatprep.subr.bf16.mxu0 0
        %1565 = vmatpush2.bf16.msra.mxu0 0
        %1566 = vmatprep.subr.bf16.mxu0 0
        %1567 = vmatpush2.bf16.msra.mxu0 0
        %1568 = vmatprep.subr.bf16.mxu0 0
        %1569 = vmatpush2.bf16.msra.mxu0 0
        %1570 = vmatprep.subr.bf16.mxu0 0
        %1571 = vmatpush2.bf16.msra.mxu0 0
        %1572 = vmatprep.subr.bf16.mxu0 0
        %1573 = vmatpush2.bf16.msra.mxu0 0
        %1574 = vmatprep.subr.bf16.mxu0 0
        %1575 = vmatpush2.bf16.msra.mxu0 0
        %1576 = vmatprep.subr.bf16.mxu0 0
        %1577 = vmatpush2.bf16.msra.mxu0 0
        %1578 = vmatprep.mubr.bf16.mxu0 0
        %1579 = vmatmul.mubr.bf16.gmra.mxu0 %v1223
        %v1580 = vpop.f32.mrf.mxu0
        %v1581 = vadd.f32 0.0, %v1580
        %v1582 = vpop.f32.mrf.mxu0
        %v1583 = vpop.f32.mrf.mxu0
        %v1584 = vadd.f32 0.0, %v1583
        %v1585 = vpop.f32.mrf.mxu0
        %1586 = vmatprep.mubr.bf16.mxu0 0
        %1587 = vmatmul.mubr.bf16.gmra.mxu0 %v1226
        %v1588 = vpop.f32.mrf.mxu0
        %v1589 = vadd.f32 0.0, %v1588
        %v1590 = vpop.f32.mrf.mxu0
        %v1591 = vpop.f32.mrf.mxu0
        %v1592 = vadd.f32 0.0, %v1591
        %v1593 = vpop.f32.mrf.mxu0
        %1594 = vmatprep.mubr.bf16.mxu0 0
        %1595 = vmatmul.mubr.bf16.gmra.mxu0 %v1229
        %v1596 = vpop.f32.mrf.mxu0
        %v1597 = vadd.f32 0.0, %v1596
        %v1598 = vpop.f32.mrf.mxu0
        %v1599 = vpop.f32.mrf.mxu0
        %v1600 = vadd.f32 0.0, %v1599
        %v1601 = vpop.f32.mrf.mxu0
        %1602 = vmatprep.mubr.bf16.mxu0 0
        %1603 = vmatmul.mubr.bf16.gmra.mxu0 %v1232
        %v1604 = vpop.f32.mrf.mxu0
        %v1605 = vadd.f32 0.0, %v1604
        %v1606 = vpop.f32.mrf.mxu0
        %v1607 = vpop.f32.mrf.mxu0
        %v1608 = vadd.f32 0.0, %v1607
        %v1609 = vpop.f32.mrf.mxu0
        %1610 = vmatprep.mubr.bf16.mxu0 0
        %1611 = vmatmul.mubr.bf16.gmra.mxu0 %v1235
        %v1612 = vpop.f32.mrf.mxu0
        %v1613 = vadd.f32 0.0, %v1612
        %v1614 = vpop.f32.mrf.mxu0
        %v1615 = vpop.f32.mrf.mxu0
        %v1616 = vadd.f32 0.0, %v1615
        %v1617 = vpop.f32.mrf.mxu0
        %1618 = vmatprep.mubr.bf16.mxu0 0
        %1619 = vmatmul.mubr.bf16.gmra.mxu0 %v1238
        %v1620 = vpop.f32.mrf.mxu0
        %v1621 = vadd.f32 0.0, %v1620
        %v1622 = vpop.f32.mrf.mxu0
        %v1623 = vpop.f32.mrf.mxu0
        %v1624 = vadd.f32 0.0, %v1623
        %v1625 = vpop.f32.mrf.mxu0
        %1626 = vmatprep.mubr.bf16.mxu0 0
        %1627 = vmatmul.mubr.bf16.gmra.mxu0 %v1241
        %v1628 = vpop.f32.mrf.mxu0
        %v1629 = vadd.f32 0.0, %v1628
        %v1630 = vpop.f32.mrf.mxu0
        %v1631 = vpop.f32.mrf.mxu0
        %v1632 = vadd.f32 0.0, %v1631
        %v1633 = vpop.f32.mrf.mxu0
        %1634 = vmatprep.mubr.bf16.mxu0 0
        %1635 = vmatmul.mubr.bf16.gmra.mxu0 %v1544
        %v1636 = vpop.f32.mrf.mxu0
        %v1637 = vadd.f32 0.0, %v1636
        %v1638 = vpop.f32.mrf.mxu0
        %v1639 = vpop.f32.mrf.mxu0
        %v1640 = vadd.f32 0.0, %v1639
        %v1641 = vpop.f32.mrf.mxu0
        %1642 = vdwg.mxu0
        %v1643 = vadd.f32 %v1494, %v1581
        %v1644 = vadd.f32 %v1495, %v1584
        %v1645 = vadd.f32 %v1496, %v1589
        %v1646 = vadd.f32 %v1497, %v1592
        %v1647 = vadd.f32 %v1498, %v1597
        %v1648 = vadd.f32 %v1499, %v1600
        %v1649 = vadd.f32 %v1500, %v1605
        %v1650 = vadd.f32 %v1501, %v1608
        %v1651 = vadd.f32 %v1502, %v1613
        %v1652 = vadd.f32 %v1503, %v1616
        %v1653 = vadd.f32 %v1504, %v1621
        %v1654 = vadd.f32 %v1505, %v1624
        %v1655 = vadd.f32 %v1506, %v1629
        %v1656 = vadd.f32 %v1507, %v1632
        %v1657 = vadd.f32 %v1508, %v1637
        %v1658 = vadd.f32 %v1509, %v1640
        %s1659 = scalar_lea.vmem %s593, 128
        %v1660 = vld [vmem:[%s1659] sm:$0xf]
        %v1661 = vld [vmem:[%s1659 + $0x4] sm:$0xf]
        %v1662 = vld [vmem:[%s1659 + $0x8] sm:$0xf]
        %v1663 = vld [vmem:[%s1659 + $0xc] sm:$0xf]
        %v1664 = vld [vmem:[%s1659 + $0x10] sm:$0xf]
        %v1665 = vld [vmem:[%s1659 + $0x14] sm:$0xf]
        %v1666 = vld [vmem:[%s1659 + $0x18] sm:$0xf]
        %v1667 = vld [vmem:[%s1659 + $0x1c] sm:$0xf]
        %v1676 = vunpack.c.l.b16 %v1660
        %v1677 = vunpack.c.l.b16 %v1661
        %v1678 = vunpack.c.l.b16 %v1662
        %v1679 = vunpack.c.l.b16 %v1663
        %v1680 = vunpack.c.l.b16 %v1664
        %v1681 = vunpack.c.l.b16 %v1665
        %v1682 = vunpack.c.l.b16 %v1666
        %v1683 = vunpack.c.l.b16 %v1667
        %v1684 = vpack.c.b16 %v1677, %v1676
        %v1685 = vpack.c.b16 %v1679, %v1678
        %v1686 = vpack.c.b16 %v1681, %v1680
        %v1687 = vpack.c.b16 %v1683, %v1682
        %v1693 = vsel %vm1073, %v1020, 0
        %1695 = vmatprep.subr.bf16.mxu0 0
        %1696 = vmatpush1.bf16.msra.mxu0 0
        %1697 = vmatprep.subr.bf16.mxu0 0
        %1698 = vmatpush1.bf16.msra.mxu0 0
        %1699 = vmatprep.subr.bf16.mxu0 0
        %1700 = vmatpush1.bf16.msra.mxu0 0
        %1701 = vmatprep.subr.bf16.mxu0 0
        %1702 = vmatpush1.bf16.msra.mxu0 0
        %1703 = vmatprep.subr.bf16.mxu0 0
        %1704 = vmatpush1.bf16.msra.mxu0 %v1687
        %1705 = vmatprep.subr.bf16.mxu0 0
        %1706 = vmatpush1.bf16.msra.mxu0 %v1686
        %1707 = vmatprep.subr.bf16.mxu0 0
        %1708 = vmatpush1.bf16.msra.mxu0 %v1685
        %1709 = vmatprep.subr.bf16.mxu0 0
        %1710 = vmatpush1.bf16.msra.mxu0 %v1684
        %1711 = vmatprep.subr.bf16.mxu0 0
        %1712 = vmatpush2.bf16.msra.mxu0 0
        %1713 = vmatprep.subr.bf16.mxu0 0
        %1714 = vmatpush2.bf16.msra.mxu0 0
        %1715 = vmatprep.subr.bf16.mxu0 0
        %1716 = vmatpush2.bf16.msra.mxu0 0
        %1717 = vmatprep.subr.bf16.mxu0 0
        %1718 = vmatpush2.bf16.msra.mxu0 0
        %1719 = vmatprep.subr.bf16.mxu0 0
        %1720 = vmatpush2.bf16.msra.mxu0 0
        %1721 = vmatprep.subr.bf16.mxu0 0
        %1722 = vmatpush2.bf16.msra.mxu0 0
        %1723 = vmatprep.subr.bf16.mxu0 0
        %1724 = vmatpush2.bf16.msra.mxu0 0
        %1725 = vmatprep.subr.bf16.mxu0 0
        %1726 = vmatpush2.bf16.msra.mxu0 0
        %1727 = vmatprep.mubr.bf16.mxu0 0
        %1728 = vmatmul.mubr.bf16.gmra.mxu0 %v1078
        %v1729 = vpop.f32.mrf.mxu0
        %v1730 = vadd.f32 0.0, %v1729
        %v1731 = vpop.f32.mrf.mxu0
        %v1732 = vpop.f32.mrf.mxu0
        %v1733 = vadd.f32 0.0, %v1732
        %v1734 = vpop.f32.mrf.mxu0
        %1735 = vmatprep.mubr.bf16.mxu0 0
        %1736 = vmatmul.mubr.bf16.gmra.mxu0 %v1081
        %v1737 = vpop.f32.mrf.mxu0
        %v1738 = vadd.f32 0.0, %v1737
        %v1739 = vpop.f32.mrf.mxu0
        %v1740 = vpop.f32.mrf.mxu0
        %v1741 = vadd.f32 0.0, %v1740
        %v1742 = vpop.f32.mrf.mxu0
        %1743 = vmatprep.mubr.bf16.mxu0 0
        %1744 = vmatmul.mubr.bf16.gmra.mxu0 %v1084
        %v1745 = vpop.f32.mrf.mxu0
        %v1746 = vadd.f32 0.0, %v1745
        %v1747 = vpop.f32.mrf.mxu0
        %v1748 = vpop.f32.mrf.mxu0
        %v1749 = vadd.f32 0.0, %v1748
        %v1750 = vpop.f32.mrf.mxu0
        %1751 = vmatprep.mubr.bf16.mxu0 0
        %1752 = vmatmul.mubr.bf16.gmra.mxu0 %v1087
        %v1753 = vpop.f32.mrf.mxu0
        %v1754 = vadd.f32 0.0, %v1753
        %v1755 = vpop.f32.mrf.mxu0
        %v1756 = vpop.f32.mrf.mxu0
        %v1757 = vadd.f32 0.0, %v1756
        %v1758 = vpop.f32.mrf.mxu0
        %1759 = vmatprep.mubr.bf16.mxu0 0
        %1760 = vmatmul.mubr.bf16.gmra.mxu0 %v1090
        %v1761 = vpop.f32.mrf.mxu0
        %v1762 = vadd.f32 0.0, %v1761
        %v1763 = vpop.f32.mrf.mxu0
        %v1764 = vpop.f32.mrf.mxu0
        %v1765 = vadd.f32 0.0, %v1764
        %v1766 = vpop.f32.mrf.mxu0
        %1767 = vmatprep.mubr.bf16.mxu0 0
        %1768 = vmatmul.mubr.bf16.gmra.mxu0 %v1093
        %v1769 = vpop.f32.mrf.mxu0
        %v1770 = vadd.f32 0.0, %v1769
        %v1771 = vpop.f32.mrf.mxu0
        %v1772 = vpop.f32.mrf.mxu0
        %v1773 = vadd.f32 0.0, %v1772
        %v1774 = vpop.f32.mrf.mxu0
        %1775 = vmatprep.mubr.bf16.mxu0 0
        %1776 = vmatmul.mubr.bf16.gmra.mxu0 %v1096
        %v1777 = vpop.f32.mrf.mxu0
        %v1778 = vadd.f32 0.0, %v1777
        %v1779 = vpop.f32.mrf.mxu0
        %v1780 = vpop.f32.mrf.mxu0
        %v1781 = vadd.f32 0.0, %v1780
        %v1782 = vpop.f32.mrf.mxu0
        %1783 = vmatprep.mubr.bf16.mxu0 0
        %1784 = vmatmul.mubr.bf16.gmra.mxu0 %v1693
        %v1785 = vpop.f32.mrf.mxu0
        %v1786 = vadd.f32 0.0, %v1785
        %v1787 = vpop.f32.mrf.mxu0
        %v1788 = vpop.f32.mrf.mxu0
        %v1789 = vadd.f32 0.0, %v1788
        %v1790 = vpop.f32.mrf.mxu0
        %1791 = vdwg.mxu0
        %v1792 = vadd.f32 %v1643, %v1730
        %v1793 = vadd.f32 %v1644, %v1733
        %v1794 = vadd.f32 %v1645, %v1738
        %v1795 = vadd.f32 %v1646, %v1741
        %v1796 = vadd.f32 %v1647, %v1746
        %v1797 = vadd.f32 %v1648, %v1749
        %v1798 = vadd.f32 %v1649, %v1754
        %v1799 = vadd.f32 %v1650, %v1757
        %v1800 = vadd.f32 %v1651, %v1762
        %v1801 = vadd.f32 %v1652, %v1765
        %v1802 = vadd.f32 %v1653, %v1770
        %v1803 = vadd.f32 %v1654, %v1773
        %v1804 = vadd.f32 %v1655, %v1778
        %v1805 = vadd.f32 %v1656, %v1781
        %v1806 = vadd.f32 %v1657, %v1786
        %v1807 = vadd.f32 %v1658, %v1789
        %s1808 = scalar_lea.vmem %s593, 160
        %v1809 = vld [vmem:[%s1808] sm:$0xf]
        %v1810 = vld [vmem:[%s1808 + $0x4] sm:$0xf]
        %v1811 = vld [vmem:[%s1808 + $0x8] sm:$0xf]
        %v1812 = vld [vmem:[%s1808 + $0xc] sm:$0xf]
        %v1813 = vld [vmem:[%s1808 + $0x10] sm:$0xf]
        %v1814 = vld [vmem:[%s1808 + $0x14] sm:$0xf]
        %v1815 = vld [vmem:[%s1808 + $0x18] sm:$0xf]
        %v1816 = vld [vmem:[%s1808 + $0x1c] sm:$0xf]
        %v1825 = vunpack.c.l.b16 %v1809
        %v1826 = vunpack.c.l.b16 %v1810
        %v1827 = vunpack.c.l.b16 %v1811
        %v1828 = vunpack.c.l.b16 %v1812
        %v1829 = vunpack.c.l.b16 %v1813
        %v1830 = vunpack.c.l.b16 %v1814
        %v1831 = vunpack.c.l.b16 %v1815
        %v1832 = vunpack.c.l.b16 %v1816
        %v1833 = vpack.c.b16 %v1826, %v1825
        %v1834 = vpack.c.b16 %v1828, %v1827
        %v1835 = vpack.c.b16 %v1830, %v1829
        %v1836 = vpack.c.b16 %v1832, %v1831
        %v1842 = vsel %vm1073, %v1030, 0
        %1844 = vmatprep.subr.bf16.mxu0 0
        %1845 = vmatpush1.bf16.msra.mxu0 0
        %1846 = vmatprep.subr.bf16.mxu0 0
        %1847 = vmatpush1.bf16.msra.mxu0 0
        %1848 = vmatprep.subr.bf16.mxu0 0
        %1849 = vmatpush1.bf16.msra.mxu0 0
        %1850 = vmatprep.subr.bf16.mxu0 0
        %1851 = vmatpush1.bf16.msra.mxu0 0
        %1852 = vmatprep.subr.bf16.mxu0 0
        %1853 = vmatpush1.bf16.msra.mxu0 %v1836
        %1854 = vmatprep.subr.bf16.mxu0 0
        %1855 = vmatpush1.bf16.msra.mxu0 %v1835
        %1856 = vmatprep.subr.bf16.mxu0 0
        %1857 = vmatpush1.bf16.msra.mxu0 %v1834
        %1858 = vmatprep.subr.bf16.mxu0 0
        %1859 = vmatpush1.bf16.msra.mxu0 %v1833
        %1860 = vmatprep.subr.bf16.mxu0 0
        %1861 = vmatpush2.bf16.msra.mxu0 0
        %1862 = vmatprep.subr.bf16.mxu0 0
        %1863 = vmatpush2.bf16.msra.mxu0 0
        %1864 = vmatprep.subr.bf16.mxu0 0
        %1865 = vmatpush2.bf16.msra.mxu0 0
        %1866 = vmatprep.subr.bf16.mxu0 0
        %1867 = vmatpush2.bf16.msra.mxu0 0
        %1868 = vmatprep.subr.bf16.mxu0 0
        %1869 = vmatpush2.bf16.msra.mxu0 0
        %1870 = vmatprep.subr.bf16.mxu0 0
        %1871 = vmatpush2.bf16.msra.mxu0 0
        %1872 = vmatprep.subr.bf16.mxu0 0
        %1873 = vmatpush2.bf16.msra.mxu0 0
        %1874 = vmatprep.subr.bf16.mxu0 0
        %1875 = vmatpush2.bf16.msra.mxu0 0
        %1876 = vmatprep.mubr.bf16.mxu0 0
        %1877 = vmatmul.mubr.bf16.gmra.mxu0 %v1377
        %v1878 = vpop.f32.mrf.mxu0
        %v1879 = vadd.f32 0.0, %v1878
        %v1880 = vpop.f32.mrf.mxu0
        %v1881 = vpop.f32.mrf.mxu0
        %v1882 = vadd.f32 0.0, %v1881
        %v1883 = vpop.f32.mrf.mxu0
        %1884 = vmatprep.mubr.bf16.mxu0 0
        %1885 = vmatmul.mubr.bf16.gmra.mxu0 %v1380
        %v1886 = vpop.f32.mrf.mxu0
        %v1887 = vadd.f32 0.0, %v1886
        %v1888 = vpop.f32.mrf.mxu0
        %v1889 = vpop.f32.mrf.mxu0
        %v1890 = vadd.f32 0.0, %v1889
        %v1891 = vpop.f32.mrf.mxu0
        %1892 = vmatprep.mubr.bf16.mxu0 0
        %1893 = vmatmul.mubr.bf16.gmra.mxu0 %v1383
        %v1894 = vpop.f32.mrf.mxu0
        %v1895 = vadd.f32 0.0, %v1894
        %v1896 = vpop.f32.mrf.mxu0
        %v1897 = vpop.f32.mrf.mxu0
        %v1898 = vadd.f32 0.0, %v1897
        %v1899 = vpop.f32.mrf.mxu0
        %1900 = vmatprep.mubr.bf16.mxu0 0
        %1901 = vmatmul.mubr.bf16.gmra.mxu0 %v1386
        %v1902 = vpop.f32.mrf.mxu0
        %v1903 = vadd.f32 0.0, %v1902
        %v1904 = vpop.f32.mrf.mxu0
        %v1905 = vpop.f32.mrf.mxu0
        %v1906 = vadd.f32 0.0, %v1905
        %v1907 = vpop.f32.mrf.mxu0
        %1908 = vmatprep.mubr.bf16.mxu0 0
        %1909 = vmatmul.mubr.bf16.gmra.mxu0 %v1389
        %v1910 = vpop.f32.mrf.mxu0
        %v1911 = vadd.f32 0.0, %v1910
        %v1912 = vpop.f32.mrf.mxu0
        %v1913 = vpop.f32.mrf.mxu0
        %v1914 = vadd.f32 0.0, %v1913
        %v1915 = vpop.f32.mrf.mxu0
        %1916 = vmatprep.mubr.bf16.mxu0 0
        %1917 = vmatmul.mubr.bf16.gmra.mxu0 %v1392
        %v1918 = vpop.f32.mrf.mxu0
        %v1919 = vadd.f32 0.0, %v1918
        %v1920 = vpop.f32.mrf.mxu0
        %v1921 = vpop.f32.mrf.mxu0
        %v1922 = vadd.f32 0.0, %v1921
        %v1923 = vpop.f32.mrf.mxu0
        %1924 = vmatprep.mubr.bf16.mxu0 0
        %1925 = vmatmul.mubr.bf16.gmra.mxu0 %v1395
        %v1926 = vpop.f32.mrf.mxu0
        %v1927 = vadd.f32 0.0, %v1926
        %v1928 = vpop.f32.mrf.mxu0
        %v1929 = vpop.f32.mrf.mxu0
        %v1930 = vadd.f32 0.0, %v1929
        %v1931 = vpop.f32.mrf.mxu0
        %1932 = vmatprep.mubr.bf16.mxu0 0
        %1933 = vmatmul.mubr.bf16.gmra.mxu0 %v1842
        %v1934 = vpop.f32.mrf.mxu0
        %v1935 = vadd.f32 0.0, %v1934
        %v1936 = vpop.f32.mrf.mxu0
        %v1937 = vpop.f32.mrf.mxu0
        %v1938 = vadd.f32 0.0, %v1937
        %v1939 = vpop.f32.mrf.mxu0
        %1940 = vdwg.mxu0
        %v1941 = vadd.f32 %v1792, %v1879
        %v1942 = vadd.f32 %v1793, %v1882
        %v1943 = vadd.f32 %v1794, %v1887
        %v1944 = vadd.f32 %v1795, %v1890
        %v1945 = vadd.f32 %v1796, %v1895
        %v1946 = vadd.f32 %v1797, %v1898
        %v1947 = vadd.f32 %v1798, %v1903
        %v1948 = vadd.f32 %v1799, %v1906
        %v1949 = vadd.f32 %v1800, %v1911
        %v1950 = vadd.f32 %v1801, %v1914
        %v1951 = vadd.f32 %v1802, %v1919
        %v1952 = vadd.f32 %v1803, %v1922
        %v1953 = vadd.f32 %v1804, %v1927
        %v1954 = vadd.f32 %v1805, %v1930
        %v1955 = vadd.f32 %v1806, %v1935
        %v1956 = vadd.f32 %v1807, %v1938
        %s1957 = scalar_lea.vmem %s593, 192
        %v1958 = vld [vmem:[%s1957] sm:$0xf]
        %v1959 = vld [vmem:[%s1957 + $0x4] sm:$0xf]
        %v1960 = vld [vmem:[%s1957 + $0x8] sm:$0xf]
        %v1961 = vld [vmem:[%s1957 + $0xc] sm:$0xf]
        %v1962 = vld [vmem:[%s1957 + $0x10] sm:$0xf]
        %v1963 = vld [vmem:[%s1957 + $0x14] sm:$0xf]
        %v1964 = vld [vmem:[%s1957 + $0x18] sm:$0xf]
        %v1965 = vld [vmem:[%s1957 + $0x1c] sm:$0xf]
        %v1974 = vunpack.c.l.b16 %v1958
        %v1975 = vunpack.c.l.b16 %v1959
        %v1976 = vunpack.c.l.b16 %v1960
        %v1977 = vunpack.c.l.b16 %v1961
        %v1978 = vunpack.c.l.b16 %v1962
        %v1979 = vunpack.c.l.b16 %v1963
        %v1980 = vunpack.c.l.b16 %v1964
        %v1981 = vunpack.c.l.b16 %v1965
        %v1982 = vpack.c.b16 %v1975, %v1974
        %v1983 = vpack.c.b16 %v1977, %v1976
        %v1984 = vpack.c.b16 %v1979, %v1978
        %v1985 = vpack.c.b16 %v1981, %v1980
        %v1991 = vsel %vm1073, %v1011, 0
        %1993 = vmatprep.subr.bf16.mxu0 0
        %1994 = vmatpush1.bf16.msra.mxu0 0
        %1995 = vmatprep.subr.bf16.mxu0 0
        %1996 = vmatpush1.bf16.msra.mxu0 0
        %1997 = vmatprep.subr.bf16.mxu0 0
        %1998 = vmatpush1.bf16.msra.mxu0 0
        %1999 = vmatprep.subr.bf16.mxu0 0
        %2000 = vmatpush1.bf16.msra.mxu0 0
        %2001 = vmatprep.subr.bf16.mxu0 0
        %2002 = vmatpush1.bf16.msra.mxu0 %v1985
        %2003 = vmatprep.subr.bf16.mxu0 0
        %2004 = vmatpush1.bf16.msra.mxu0 %v1984
        %2005 = vmatprep.subr.bf16.mxu0 0
        %2006 = vmatpush1.bf16.msra.mxu0 %v1983
        %2007 = vmatprep.subr.bf16.mxu0 0
        %2008 = vmatpush1.bf16.msra.mxu0 %v1982
        %2009 = vmatprep.subr.bf16.mxu0 0
        %2010 = vmatpush2.bf16.msra.mxu0 0
        %2011 = vmatprep.subr.bf16.mxu0 0
        %2012 = vmatpush2.bf16.msra.mxu0 0
        %2013 = vmatprep.subr.bf16.mxu0 0
        %2014 = vmatpush2.bf16.msra.mxu0 0
        %2015 = vmatprep.subr.bf16.mxu0 0
        %2016 = vmatpush2.bf16.msra.mxu0 0
        %2017 = vmatprep.subr.bf16.mxu0 0
        %2018 = vmatpush2.bf16.msra.mxu0 0
        %2019 = vmatprep.subr.bf16.mxu0 0
        %2020 = vmatpush2.bf16.msra.mxu0 0
        %2021 = vmatprep.subr.bf16.mxu0 0
        %2022 = vmatpush2.bf16.msra.mxu0 0
        %2023 = vmatprep.subr.bf16.mxu0 0
        %2024 = vmatpush2.bf16.msra.mxu0 0
        %2025 = vmatprep.mubr.bf16.mxu0 0
        %2026 = vmatmul.mubr.bf16.gmra.mxu0 %v1226
        %v2027 = vpop.f32.mrf.mxu0
        %v2028 = vadd.f32 0.0, %v2027
        %v2029 = vpop.f32.mrf.mxu0
        %v2030 = vpop.f32.mrf.mxu0
        %v2031 = vadd.f32 0.0, %v2030
        %v2032 = vpop.f32.mrf.mxu0
        %2033 = vmatprep.mubr.bf16.mxu0 0
        %2034 = vmatmul.mubr.bf16.gmra.mxu0 %v1229
        %v2035 = vpop.f32.mrf.mxu0
        %v2036 = vadd.f32 0.0, %v2035
        %v2037 = vpop.f32.mrf.mxu0
        %v2038 = vpop.f32.mrf.mxu0
        %v2039 = vadd.f32 0.0, %v2038
        %v2040 = vpop.f32.mrf.mxu0
        %2041 = vmatprep.mubr.bf16.mxu0 0
        %2042 = vmatmul.mubr.bf16.gmra.mxu0 %v1232
        %v2043 = vpop.f32.mrf.mxu0
        %v2044 = vadd.f32 0.0, %v2043
        %v2045 = vpop.f32.mrf.mxu0
        %v2046 = vpop.f32.mrf.mxu0
        %v2047 = vadd.f32 0.0, %v2046
        %v2048 = vpop.f32.mrf.mxu0
        %2049 = vmatprep.mubr.bf16.mxu0 0
        %2050 = vmatmul.mubr.bf16.gmra.mxu0 %v1235
        %v2051 = vpop.f32.mrf.mxu0
        %v2052 = vadd.f32 0.0, %v2051
        %v2053 = vpop.f32.mrf.mxu0
        %v2054 = vpop.f32.mrf.mxu0
        %v2055 = vadd.f32 0.0, %v2054
        %v2056 = vpop.f32.mrf.mxu0
        %2057 = vmatprep.mubr.bf16.mxu0 0
        %2058 = vmatmul.mubr.bf16.gmra.mxu0 %v1238
        %v2059 = vpop.f32.mrf.mxu0
        %v2060 = vadd.f32 0.0, %v2059
        %v2061 = vpop.f32.mrf.mxu0
        %v2062 = vpop.f32.mrf.mxu0
        %v2063 = vadd.f32 0.0, %v2062
        %v2064 = vpop.f32.mrf.mxu0
        %2065 = vmatprep.mubr.bf16.mxu0 0
        %2066 = vmatmul.mubr.bf16.gmra.mxu0 %v1241
        %v2067 = vpop.f32.mrf.mxu0
        %v2068 = vadd.f32 0.0, %v2067
        %v2069 = vpop.f32.mrf.mxu0
        %v2070 = vpop.f32.mrf.mxu0
        %v2071 = vadd.f32 0.0, %v2070
        %v2072 = vpop.f32.mrf.mxu0
        %2073 = vmatprep.mubr.bf16.mxu0 0
        %2074 = vmatmul.mubr.bf16.gmra.mxu0 %v1544
        %v2075 = vpop.f32.mrf.mxu0
        %v2076 = vadd.f32 0.0, %v2075
        %v2077 = vpop.f32.mrf.mxu0
        %v2078 = vpop.f32.mrf.mxu0
        %v2079 = vadd.f32 0.0, %v2078
        %v2080 = vpop.f32.mrf.mxu0
        %2081 = vmatprep.mubr.bf16.mxu0 0
        %2082 = vmatmul.mubr.bf16.gmra.mxu0 %v1991
        %v2083 = vpop.f32.mrf.mxu0
        %v2084 = vadd.f32 0.0, %v2083
        %v2085 = vpop.f32.mrf.mxu0
        %v2086 = vpop.f32.mrf.mxu0
        %v2087 = vadd.f32 0.0, %v2086
        %v2088 = vpop.f32.mrf.mxu0
        %2089 = vdwg.mxu0
        %v2090 = vadd.f32 %v1941, %v2028
        %v2091 = vadd.f32 %v1942, %v2031
        %v2092 = vadd.f32 %v1943, %v2036
        %v2093 = vadd.f32 %v1944, %v2039
        %v2094 = vadd.f32 %v1945, %v2044
        %v2095 = vadd.f32 %v1946, %v2047
        %v2096 = vadd.f32 %v1947, %v2052
        %v2097 = vadd.f32 %v1948, %v2055
        %v2098 = vadd.f32 %v1949, %v2060
        %v2099 = vadd.f32 %v1950, %v2063
        %v2100 = vadd.f32 %v1951, %v2068
        %v2101 = vadd.f32 %v1952, %v2071
        %v2102 = vadd.f32 %v1953, %v2076
        %v2103 = vadd.f32 %v1954, %v2079
        %v2104 = vadd.f32 %v1955, %v2084
        %v2105 = vadd.f32 %v1956, %v2087
        %s2106 = scalar_lea.vmem %s593, 224
        %v2107 = vld [vmem:[%s2106] sm:$0xf]
        %v2108 = vld [vmem:[%s2106 + $0x4] sm:$0xf]
        %v2109 = vld [vmem:[%s2106 + $0x8] sm:$0xf]
        %v2110 = vld [vmem:[%s2106 + $0xc] sm:$0xf]
        %v2111 = vld [vmem:[%s2106 + $0x10] sm:$0xf]
        %v2112 = vld [vmem:[%s2106 + $0x14] sm:$0xf]
        %v2113 = vld [vmem:[%s2106 + $0x18] sm:$0xf]
        %v2114 = vld [vmem:[%s2106 + $0x1c] sm:$0xf]
        %v2123 = vunpack.c.l.b16 %v2107
        %v2124 = vunpack.c.l.b16 %v2108
        %v2125 = vunpack.c.l.b16 %v2109
        %v2126 = vunpack.c.l.b16 %v2110
        %v2127 = vunpack.c.l.b16 %v2111
        %v2128 = vunpack.c.l.b16 %v2112
        %v2129 = vunpack.c.l.b16 %v2113
        %v2130 = vunpack.c.l.b16 %v2114
        %v2131 = vpack.c.b16 %v2124, %v2123
        %v2132 = vpack.c.b16 %v2126, %v2125
        %v2133 = vpack.c.b16 %v2128, %v2127
        %v2134 = vpack.c.b16 %v2130, %v2129
        %v2140 = vsel %vm1073, %v1021, 0
        %2142 = vmatprep.subr.bf16.mxu0 0
        %2143 = vmatpush1.bf16.msra.mxu0 0
        %2144 = vmatprep.subr.bf16.mxu0 0
        %2145 = vmatpush1.bf16.msra.mxu0 0
        %2146 = vmatprep.subr.bf16.mxu0 0
        %2147 = vmatpush1.bf16.msra.mxu0 0
        %2148 = vmatprep.subr.bf16.mxu0 0
        %2149 = vmatpush1.bf16.msra.mxu0 0
        %2150 = vmatprep.subr.bf16.mxu0 0
        %2151 = vmatpush1.bf16.msra.mxu0 %v2134
        %2152 = vmatprep.subr.bf16.mxu0 0
        %2153 = vmatpush1.bf16.msra.mxu0 %v2133
        %2154 = vmatprep.subr.bf16.mxu0 0
        %2155 = vmatpush1.bf16.msra.mxu0 %v2132
        %2156 = vmatprep.subr.bf16.mxu0 0
        %2157 = vmatpush1.bf16.msra.mxu0 %v2131
        %2158 = vmatprep.subr.bf16.mxu0 0
        %2159 = vmatpush2.bf16.msra.mxu0 0
        %2160 = vmatprep.subr.bf16.mxu0 0
        %2161 = vmatpush2.bf16.msra.mxu0 0
        %2162 = vmatprep.subr.bf16.mxu0 0
        %2163 = vmatpush2.bf16.msra.mxu0 0
        %2164 = vmatprep.subr.bf16.mxu0 0
        %2165 = vmatpush2.bf16.msra.mxu0 0
        %2166 = vmatprep.subr.bf16.mxu0 0
        %2167 = vmatpush2.bf16.msra.mxu0 0
        %2168 = vmatprep.subr.bf16.mxu0 0
        %2169 = vmatpush2.bf16.msra.mxu0 0
        %2170 = vmatprep.subr.bf16.mxu0 0
        %2171 = vmatpush2.bf16.msra.mxu0 0
        %2172 = vmatprep.subr.bf16.mxu0 0
        %2173 = vmatpush2.bf16.msra.mxu0 0
        %2174 = vmatprep.mubr.bf16.mxu0 0
        %2175 = vmatmul.mubr.bf16.gmra.mxu0 %v1081
        %v2176 = vpop.f32.mrf.mxu0
        %v2177 = vadd.f32 0.0, %v2176
        %v2178 = vpop.f32.mrf.mxu0
        %v2179 = vpop.f32.mrf.mxu0
        %v2180 = vadd.f32 0.0, %v2179
        %v2181 = vpop.f32.mrf.mxu0
        %2182 = vmatprep.mubr.bf16.mxu0 0
        %2183 = vmatmul.mubr.bf16.gmra.mxu0 %v1084
        %v2184 = vpop.f32.mrf.mxu0
        %v2185 = vadd.f32 0.0, %v2184
        %v2186 = vpop.f32.mrf.mxu0
        %v2187 = vpop.f32.mrf.mxu0
        %v2188 = vadd.f32 0.0, %v2187
        %v2189 = vpop.f32.mrf.mxu0
        %2190 = vmatprep.mubr.bf16.mxu0 0
        %2191 = vmatmul.mubr.bf16.gmra.mxu0 %v1087
        %v2192 = vpop.f32.mrf.mxu0
        %v2193 = vadd.f32 0.0, %v2192
        %v2194 = vpop.f32.mrf.mxu0
        %v2195 = vpop.f32.mrf.mxu0
        %v2196 = vadd.f32 0.0, %v2195
        %v2197 = vpop.f32.mrf.mxu0
        %2198 = vmatprep.mubr.bf16.mxu0 0
        %2199 = vmatmul.mubr.bf16.gmra.mxu0 %v1090
        %v2200 = vpop.f32.mrf.mxu0
        %v2201 = vadd.f32 0.0, %v2200
        %v2202 = vpop.f32.mrf.mxu0
        %v2203 = vpop.f32.mrf.mxu0
        %v2204 = vadd.f32 0.0, %v2203
        %v2205 = vpop.f32.mrf.mxu0
        %2206 = vmatprep.mubr.bf16.mxu0 0
        %2207 = vmatmul.mubr.bf16.gmra.mxu0 %v1093
        %v2208 = vpop.f32.mrf.mxu0
        %v2209 = vadd.f32 0.0, %v2208
        %v2210 = vpop.f32.mrf.mxu0
        %v2211 = vpop.f32.mrf.mxu0
        %v2212 = vadd.f32 0.0, %v2211
        %v2213 = vpop.f32.mrf.mxu0
        %2214 = vmatprep.mubr.bf16.mxu0 0
        %2215 = vmatmul.mubr.bf16.gmra.mxu0 %v1096
        %v2216 = vpop.f32.mrf.mxu0
        %v2217 = vadd.f32 0.0, %v2216
        %v2218 = vpop.f32.mrf.mxu0
        %v2219 = vpop.f32.mrf.mxu0
        %v2220 = vadd.f32 0.0, %v2219
        %v2221 = vpop.f32.mrf.mxu0
        %2222 = vmatprep.mubr.bf16.mxu0 0
        %2223 = vmatmul.mubr.bf16.gmra.mxu0 %v1693
        %v2224 = vpop.f32.mrf.mxu0
        %v2225 = vadd.f32 0.0, %v2224
        %v2226 = vpop.f32.mrf.mxu0
        %v2227 = vpop.f32.mrf.mxu0
        %v2228 = vadd.f32 0.0, %v2227
        %v2229 = vpop.f32.mrf.mxu0
        %2230 = vmatprep.mubr.bf16.mxu0 0
        %2231 = vmatmul.mubr.bf16.gmra.mxu0 %v2140
        %v2232 = vpop.f32.mrf.mxu0
        %v2233 = vadd.f32 0.0, %v2232
        %v2234 = vpop.f32.mrf.mxu0
        %v2235 = vpop.f32.mrf.mxu0
        %v2236 = vadd.f32 0.0, %v2235
        %v2237 = vpop.f32.mrf.mxu0
        %2238 = vdwg.mxu0
        %v2239 = vadd.f32 %v2090, %v2177
        %v2240 = vadd.f32 %v2091, %v2180
        %v2241 = vadd.f32 %v2092, %v2185
        %v2242 = vadd.f32 %v2093, %v2188
        %v2243 = vadd.f32 %v2094, %v2193
        %v2244 = vadd.f32 %v2095, %v2196
        %v2245 = vadd.f32 %v2096, %v2201
        %v2246 = vadd.f32 %v2097, %v2204
        %v2247 = vadd.f32 %v2098, %v2209
        %v2248 = vadd.f32 %v2099, %v2212
        %v2249 = vadd.f32 %v2100, %v2217
        %v2250 = vadd.f32 %v2101, %v2220
        %v2251 = vadd.f32 %v2102, %v2225
        %v2252 = vadd.f32 %v2103, %v2228
        %v2253 = vadd.f32 %v2104, %v2233
        %v2254 = vadd.f32 %v2105, %v2236
        %s2255 = scalar_lea.vmem %s593, 256
        %v2256 = vld [vmem:[%s2255] sm:$0xf]
        %v2257 = vld [vmem:[%s2255 + $0x4] sm:$0xf]
        %v2258 = vld [vmem:[%s2255 + $0x8] sm:$0xf]
        %v2259 = vld [vmem:[%s2255 + $0xc] sm:$0xf]
        %v2260 = vld [vmem:[%s2255 + $0x10] sm:$0xf]
        %v2261 = vld [vmem:[%s2255 + $0x14] sm:$0xf]
        %v2262 = vld [vmem:[%s2255 + $0x18] sm:$0xf]
        %v2263 = vld [vmem:[%s2255 + $0x1c] sm:$0xf]
        %v2272 = vunpack.c.l.b16 %v2256
        %v2273 = vunpack.c.l.b16 %v2257
        %v2274 = vunpack.c.l.b16 %v2258
        %v2275 = vunpack.c.l.b16 %v2259
        %v2276 = vunpack.c.l.b16 %v2260
        %v2277 = vunpack.c.l.b16 %v2261
        %v2278 = vunpack.c.l.b16 %v2262
        %v2279 = vunpack.c.l.b16 %v2263
        %v2280 = vpack.c.b16 %v2273, %v2272
        %v2281 = vpack.c.b16 %v2275, %v2274
        %v2282 = vpack.c.b16 %v2277, %v2276
        %v2283 = vpack.c.b16 %v2279, %v2278
        %v2289 = vsel %vm1073, %v1031, 0
        %2291 = vmatprep.subr.bf16.mxu0 0
        %2292 = vmatpush1.bf16.msra.mxu0 0
        %2293 = vmatprep.subr.bf16.mxu0 0
        %2294 = vmatpush1.bf16.msra.mxu0 0
        %2295 = vmatprep.subr.bf16.mxu0 0
        %2296 = vmatpush1.bf16.msra.mxu0 0
        %2297 = vmatprep.subr.bf16.mxu0 0
        %2298 = vmatpush1.bf16.msra.mxu0 0
        %2299 = vmatprep.subr.bf16.mxu0 0
        %2300 = vmatpush1.bf16.msra.mxu0 %v2283
        %2301 = vmatprep.subr.bf16.mxu0 0
        %2302 = vmatpush1.bf16.msra.mxu0 %v2282
        %2303 = vmatprep.subr.bf16.mxu0 0
        %2304 = vmatpush1.bf16.msra.mxu0 %v2281
        %2305 = vmatprep.subr.bf16.mxu0 0
        %2306 = vmatpush1.bf16.msra.mxu0 %v2280
        %2307 = vmatprep.subr.bf16.mxu0 0
        %2308 = vmatpush2.bf16.msra.mxu0 0
        %2309 = vmatprep.subr.bf16.mxu0 0
        %2310 = vmatpush2.bf16.msra.mxu0 0
        %2311 = vmatprep.subr.bf16.mxu0 0
        %2312 = vmatpush2.bf16.msra.mxu0 0
        %2313 = vmatprep.subr.bf16.mxu0 0
        %2314 = vmatpush2.bf16.msra.mxu0 0
        %2315 = vmatprep.subr.bf16.mxu0 0
        %2316 = vmatpush2.bf16.msra.mxu0 0
        %2317 = vmatprep.subr.bf16.mxu0 0
        %2318 = vmatpush2.bf16.msra.mxu0 0
        %2319 = vmatprep.subr.bf16.mxu0 0
        %2320 = vmatpush2.bf16.msra.mxu0 0
        %2321 = vmatprep.subr.bf16.mxu0 0
        %2322 = vmatpush2.bf16.msra.mxu0 0
        %2323 = vmatprep.mubr.bf16.mxu0 0
        %2324 = vmatmul.mubr.bf16.gmra.mxu0 %v1380
        %v2325 = vpop.f32.mrf.mxu0
        %v2326 = vadd.f32 0.0, %v2325
        %v2327 = vpop.f32.mrf.mxu0
        %v2328 = vpop.f32.mrf.mxu0
        %v2329 = vadd.f32 0.0, %v2328
        %v2330 = vpop.f32.mrf.mxu0
        %2331 = vmatprep.mubr.bf16.mxu0 0
        %2332 = vmatmul.mubr.bf16.gmra.mxu0 %v1383
        %v2333 = vpop.f32.mrf.mxu0
        %v2334 = vadd.f32 0.0, %v2333
        %v2335 = vpop.f32.mrf.mxu0
        %v2336 = vpop.f32.mrf.mxu0
        %v2337 = vadd.f32 0.0, %v2336
        %v2338 = vpop.f32.mrf.mxu0
        %2339 = vmatprep.mubr.bf16.mxu0 0
        %2340 = vmatmul.mubr.bf16.gmra.mxu0 %v1386
        %v2341 = vpop.f32.mrf.mxu0
        %v2342 = vadd.f32 0.0, %v2341
        %v2343 = vpop.f32.mrf.mxu0
        %v2344 = vpop.f32.mrf.mxu0
        %v2345 = vadd.f32 0.0, %v2344
        %v2346 = vpop.f32.mrf.mxu0
        %2347 = vmatprep.mubr.bf16.mxu0 0
        %2348 = vmatmul.mubr.bf16.gmra.mxu0 %v1389
        %v2349 = vpop.f32.mrf.mxu0
        %v2350 = vadd.f32 0.0, %v2349
        %v2351 = vpop.f32.mrf.mxu0
        %v2352 = vpop.f32.mrf.mxu0
        %v2353 = vadd.f32 0.0, %v2352
        %v2354 = vpop.f32.mrf.mxu0
        %2355 = vmatprep.mubr.bf16.mxu0 0
        %2356 = vmatmul.mubr.bf16.gmra.mxu0 %v1392
        %v2357 = vpop.f32.mrf.mxu0
        %v2358 = vadd.f32 0.0, %v2357
        %v2359 = vpop.f32.mrf.mxu0
        %v2360 = vpop.f32.mrf.mxu0
        %v2361 = vadd.f32 0.0, %v2360
        %v2362 = vpop.f32.mrf.mxu0
        %2363 = vmatprep.mubr.bf16.mxu0 0
        %2364 = vmatmul.mubr.bf16.gmra.mxu0 %v1395
        %v2365 = vpop.f32.mrf.mxu0
        %v2366 = vadd.f32 0.0, %v2365
        %v2367 = vpop.f32.mrf.mxu0
        %v2368 = vpop.f32.mrf.mxu0
        %v2369 = vadd.f32 0.0, %v2368
        %v2370 = vpop.f32.mrf.mxu0
        %2371 = vmatprep.mubr.bf16.mxu0 0
        %2372 = vmatmul.mubr.bf16.gmra.mxu0 %v1842
        %v2373 = vpop.f32.mrf.mxu0
        %v2374 = vadd.f32 0.0, %v2373
        %v2375 = vpop.f32.mrf.mxu0
        %v2376 = vpop.f32.mrf.mxu0
        %v2377 = vadd.f32 0.0, %v2376
        %v2378 = vpop.f32.mrf.mxu0
        %2379 = vmatprep.mubr.bf16.mxu0 0
        %2380 = vmatmul.mubr.bf16.gmra.mxu0 %v2289
        %v2381 = vpop.f32.mrf.mxu0
        %v2382 = vadd.f32 0.0, %v2381
        %v2383 = vpop.f32.mrf.mxu0
        %v2384 = vpop.f32.mrf.mxu0
        %v2385 = vadd.f32 0.0, %v2384
        %v2386 = vpop.f32.mrf.mxu0
        %2387 = vdwg.mxu0
        %v2388 = vadd.f32 %v2239, %v2326
        %v2389 = vadd.f32 %v2240, %v2329
        %v2390 = vadd.f32 %v2241, %v2334
        %v2391 = vadd.f32 %v2242, %v2337
        %v2392 = vadd.f32 %v2243, %v2342
        %v2393 = vadd.f32 %v2244, %v2345
        %v2394 = vadd.f32 %v2245, %v2350
        %v2395 = vadd.f32 %v2246, %v2353
        %v2396 = vadd.f32 %v2247, %v2358
        %v2397 = vadd.f32 %v2248, %v2361
        %v2398 = vadd.f32 %v2249, %v2366
        %v2399 = vadd.f32 %v2250, %v2369
        %v2400 = vadd.f32 %v2251, %v2374
        %v2401 = vadd.f32 %v2252, %v2377
        %v2402 = vadd.f32 %v2253, %v2382
        %v2403 = vadd.f32 %v2254, %v2385
        %v2404 = vld [vmem:[%s596] sm:$0x1]
        %v2406 = vlaneseq
        %v2407 = vshrl.u32 %v2406, 7
        %v2408 = vsub.s32 0, %v2407
        %v2409 = vrot.slane %v2404, %v2408
        %v2411 = vadd.f32 %v2388, %v2409
        %v2412 = vadd.f32 %v2389, %v2409
        %v2413 = vadd.f32 %v2390, %v2409
        %v2414 = vadd.f32 %v2391, %v2409
        %v2415 = vadd.f32 %v2392, %v2409
        %v2416 = vadd.f32 %v2393, %v2409
        %v2417 = vadd.f32 %v2394, %v2409
        %v2418 = vadd.f32 %v2395, %v2409
        %v2419 = vadd.f32 %v2396, %v2409
        %v2420 = vadd.f32 %v2397, %v2409
        %v2421 = vadd.f32 %v2398, %v2409
        %v2422 = vadd.f32 %v2399, %v2409
        %v2423 = vadd.f32 %v2400, %v2409
        %v2424 = vadd.f32 %v2401, %v2409
        %v2425 = vadd.f32 %v2402, %v2409
        %v2426 = vadd.f32 %v2403, %v2409
        %v2427 = vld [vmem:[%s606] sm:$0xff]
        %v2428 = vld [vmem:[%s606 + $0x8] sm:$0xff]
        %v2429 = vld [vmem:[%s606 + $0x10] sm:$0xff]
        %v2430 = vld [vmem:[%s606 + $0x18] sm:$0xff]
        %v2431 = vld [vmem:[%s606 + $0x20] sm:$0xff]
        %v2432 = vld [vmem:[%s606 + $0x28] sm:$0xff]
        %v2433 = vld [vmem:[%s606 + $0x30] sm:$0xff]
        %v2434 = vld [vmem:[%s606 + $0x38] sm:$0xff]
        %v2435 = vld [vmem:[%s606 + $0x40] sm:$0xff]
        %v2436 = vld [vmem:[%s606 + $0x48] sm:$0xff]
        %v2437 = vld [vmem:[%s606 + $0x50] sm:$0xff]
        %v2438 = vld [vmem:[%s606 + $0x58] sm:$0xff]
        %v2439 = vld [vmem:[%s606 + $0x60] sm:$0xff]
        %v2440 = vld [vmem:[%s606 + $0x68] sm:$0xff]
        %v2441 = vld [vmem:[%s606 + $0x70] sm:$0xff]
        %v2442 = vld [vmem:[%s606 + $0x78] sm:$0xff]
        %v2443 = vpack.c.bf16 %v2428, %v2427
        %v2444 = vpack.c.bf16 %v2430, %v2429
        %v2445 = vpack.c.bf16 %v2432, %v2431
        %v2446 = vpack.c.bf16 %v2434, %v2433
        %v2447 = vpack.c.bf16 %v2436, %v2435
        %v2448 = vpack.c.bf16 %v2438, %v2437
        %v2449 = vpack.c.bf16 %v2440, %v2439
        %v2450 = vpack.c.bf16 %v2442, %v2441
        %v2451 = vld [vmem:[%s611] sm:$0xf]
        %v2452 = vld [vmem:[%s611 + $0x4] sm:$0xf]
        %v2453 = vld [vmem:[%s611 + $0x8] sm:$0xf]
        %v2454 = vld [vmem:[%s611 + $0xc] sm:$0xf]
        %v2459 = vunpack.c.l.b16 %v2451
        %v2460 = vunpack.c.l.b16 %v2452
        %v2461 = vunpack.c.l.b16 %v2453
        %v2462 = vunpack.c.l.b16 %v2454
        %v2463 = vpack.c.b16 %v2460, %v2459
        %v2464 = vpack.c.b16 %v2462, %v2461
        %vm2467 = vcmask 261120
        %v2469 = vsel %vm2467, %v2443, 0
        %v2472 = vsel %vm2467, %v2444, 0
        %v2475 = vsel %vm2467, %v2445, 0
        %v2478 = vsel %vm2467, %v2446, 0
        %v2481 = vsel %vm2467, %v2447, 0
        %v2484 = vsel %vm2467, %v2448, 0
        %v2487 = vsel %vm2467, %v2449, 0
        %v2490 = vsel %vm2467, %v2450, 0
        %2492 = vmatprep.subr.bf16.mxu0 0
        %2493 = vmatpush1.bf16.msra.mxu0 0
        %2494 = vmatprep.subr.bf16.mxu0 0
        %2495 = vmatpush1.bf16.msra.mxu0 0
        %2496 = vmatprep.subr.bf16.mxu0 0
        %2497 = vmatpush1.bf16.msra.mxu0 0
        %2498 = vmatprep.subr.bf16.mxu0 0
        %2499 = vmatpush1.bf16.msra.mxu0 0
        %2500 = vmatprep.subr.bf16.mxu0 0
        %2501 = vmatpush1.bf16.msra.mxu0 0
        %2502 = vmatprep.subr.bf16.mxu0 0
        %2503 = vmatpush1.bf16.msra.mxu0 0
        %2504 = vmatprep.subr.bf16.mxu0 0
        %2505 = vmatpush1.bf16.msra.mxu0 %v2464
        %2506 = vmatprep.subr.bf16.mxu0 0
        %2507 = vmatpush1.bf16.msra.mxu0 %v2463
        %2508 = vmatprep.subr.bf16.mxu0 0
        %2509 = vmatpush2.bf16.msra.mxu0 0
        %2510 = vmatprep.subr.bf16.mxu0 0
        %2511 = vmatpush2.bf16.msra.mxu0 0
        %2512 = vmatprep.subr.bf16.mxu0 0
        %2513 = vmatpush2.bf16.msra.mxu0 0
        %2514 = vmatprep.subr.bf16.mxu0 0
        %2515 = vmatpush2.bf16.msra.mxu0 0
        %2516 = vmatprep.subr.bf16.mxu0 0
        %2517 = vmatpush2.bf16.msra.mxu0 0
        %2518 = vmatprep.subr.bf16.mxu0 0
        %2519 = vmatpush2.bf16.msra.mxu0 0
        %2520 = vmatprep.subr.bf16.mxu0 0
        %2521 = vmatpush2.bf16.msra.mxu0 0
        %2522 = vmatprep.subr.bf16.mxu0 0
        %2523 = vmatpush2.bf16.msra.mxu0 0
        %2524 = vmatprep.mubr.bf16.mxu0 0
        %2525 = vmatmul.mubr.bf16.gmra.mxu0 %v2469
        %v2526 = vpop.f32.mrf.mxu0
        %v2527 = vadd.f32 0.0, %v2526
        %v2528 = vpop.f32.mrf.mxu0
        %v2529 = vpop.f32.mrf.mxu0
        %v2530 = vadd.f32 0.0, %v2529
        %v2531 = vpop.f32.mrf.mxu0
        %2532 = vmatprep.mubr.bf16.mxu0 0
        %2533 = vmatmul.mubr.bf16.gmra.mxu0 %v2472
        %v2534 = vpop.f32.mrf.mxu0
        %v2535 = vadd.f32 0.0, %v2534
        %v2536 = vpop.f32.mrf.mxu0
        %v2537 = vpop.f32.mrf.mxu0
        %v2538 = vadd.f32 0.0, %v2537
        %v2539 = vpop.f32.mrf.mxu0
        %2540 = vmatprep.mubr.bf16.mxu0 0
        %2541 = vmatmul.mubr.bf16.gmra.mxu0 %v2475
        %v2542 = vpop.f32.mrf.mxu0
        %v2543 = vadd.f32 0.0, %v2542
        %v2544 = vpop.f32.mrf.mxu0
        %v2545 = vpop.f32.mrf.mxu0
        %v2546 = vadd.f32 0.0, %v2545
        %v2547 = vpop.f32.mrf.mxu0
        %2548 = vmatprep.mubr.bf16.mxu0 0
        %2549 = vmatmul.mubr.bf16.gmra.mxu0 %v2478
        %v2550 = vpop.f32.mrf.mxu0
        %v2551 = vadd.f32 0.0, %v2550
        %v2552 = vpop.f32.mrf.mxu0
        %v2553 = vpop.f32.mrf.mxu0
        %v2554 = vadd.f32 0.0, %v2553
        %v2555 = vpop.f32.mrf.mxu0
        %2556 = vmatprep.mubr.bf16.mxu0 0
        %2557 = vmatmul.mubr.bf16.gmra.mxu0 %v2481
        %v2558 = vpop.f32.mrf.mxu0
        %v2559 = vadd.f32 0.0, %v2558
        %v2560 = vpop.f32.mrf.mxu0
        %v2561 = vpop.f32.mrf.mxu0
        %v2562 = vadd.f32 0.0, %v2561
        %v2563 = vpop.f32.mrf.mxu0
        %2564 = vmatprep.mubr.bf16.mxu0 0
        %2565 = vmatmul.mubr.bf16.gmra.mxu0 %v2484
        %v2566 = vpop.f32.mrf.mxu0
        %v2567 = vadd.f32 0.0, %v2566
        %v2568 = vpop.f32.mrf.mxu0
        %v2569 = vpop.f32.mrf.mxu0
        %v2570 = vadd.f32 0.0, %v2569
        %v2571 = vpop.f32.mrf.mxu0
        %2572 = vmatprep.mubr.bf16.mxu0 0
        %2573 = vmatmul.mubr.bf16.gmra.mxu0 %v2487
        %v2574 = vpop.f32.mrf.mxu0
        %v2575 = vadd.f32 0.0, %v2574
        %v2576 = vpop.f32.mrf.mxu0
        %v2577 = vpop.f32.mrf.mxu0
        %v2578 = vadd.f32 0.0, %v2577
        %v2579 = vpop.f32.mrf.mxu0
        %2580 = vmatprep.mubr.bf16.mxu0 0
        %2581 = vmatmul.mubr.bf16.gmra.mxu0 %v2490
        %v2582 = vpop.f32.mrf.mxu0
        %v2583 = vadd.f32 0.0, %v2582
        %v2584 = vpop.f32.mrf.mxu0
        %v2585 = vpop.f32.mrf.mxu0
        %v2586 = vadd.f32 0.0, %v2585
        %v2587 = vpop.f32.mrf.mxu0
        %2588 = vdwg.mxu0
        %v2589 = vadd.f32 %v2411, %v2527
        %v2590 = vadd.f32 %v2412, %v2530
        %v2591 = vadd.f32 %v2413, %v2535
        %v2592 = vadd.f32 %v2414, %v2538
        %v2593 = vadd.f32 %v2415, %v2543
        %v2594 = vadd.f32 %v2416, %v2546
        %v2595 = vadd.f32 %v2417, %v2551
        %v2596 = vadd.f32 %v2418, %v2554
        %v2597 = vadd.f32 %v2419, %v2559
        %v2598 = vadd.f32 %v2420, %v2562
        %v2599 = vadd.f32 %v2421, %v2567
        %v2600 = vadd.f32 %v2422, %v2570
        %v2601 = vadd.f32 %v2423, %v2575
        %v2602 = vadd.f32 %v2424, %v2578
        %v2603 = vadd.f32 %v2425, %v2583
        %v2604 = vadd.f32 %v2426, %v2586
        %2605 = vst.msk [vmem:[%s538] sm:$0xff] %vm1073, %v2589
        %2606 = vst.msk [vmem:[%s538 + $0x8] sm:$0xff] %vm1073, %v2590
        %2607 = vst.msk [vmem:[%s538 + $0x10] sm:$0xff] %vm1073, %v2591
        %2608 = vst.msk [vmem:[%s538 + $0x18] sm:$0xff] %vm1073, %v2592
        %2609 = vst.msk [vmem:[%s538 + $0x20] sm:$0xff] %vm1073, %v2593
        %2610 = vst.msk [vmem:[%s538 + $0x28] sm:$0xff] %vm1073, %v2594
        %2611 = vst.msk [vmem:[%s538 + $0x30] sm:$0xff] %vm1073, %v2595
        %2612 = vst.msk [vmem:[%s538 + $0x38] sm:$0xff] %vm1073, %v2596
        %2613 = vst.msk [vmem:[%s538 + $0x40] sm:$0xff] %vm1073, %v2597
        %2614 = vst.msk [vmem:[%s538 + $0x48] sm:$0xff] %vm1073, %v2598
        %2615 = vst.msk [vmem:[%s538 + $0x50] sm:$0xff] %vm1073, %v2599
        %2616 = vst.msk [vmem:[%s538 + $0x58] sm:$0xff] %vm1073, %v2600
        %2617 = vst.msk [vmem:[%s538 + $0x60] sm:$0xff] %vm1073, %v2601
        %2618 = vst.msk [vmem:[%s538 + $0x68] sm:$0xff] %vm1073, %v2602
        %2619 = vst.msk [vmem:[%s538 + $0x70] sm:$0xff] %vm1073, %v2603
        %2620 = vst.msk [vmem:[%s538 + $0x78] sm:$0xff] %vm1073, %v2604
        %s2621 = sand.u32 %s312, 1
        %s2622 = scalar_lea.sflag [#allocation3], %s2621
        %s2623 = sand.u32 %s312, 1
        %s2624 = smul.addr %s2623, 128
        %s2625 = scalar_lea.vmem [#allocation2], %s2624
        // Predicated region
        $region57: #{unet_residual_block.5} parent=55 // pred_check
          %p2626 = pneg %p322
        $region58: #{unet_residual_block.5} parent=55 // pred_check_branch
          %2628 = sbr.rel (%p2626) target = $region60
        $region59: #{unet_residual_block.5} parent=55 // pred_region
          %s2629 = smul.u32 8, %s30
          %s2631 = ssub.s32 2048, 2048
          %2632 = vsyncadd %s2622, %s2631
          %s2633 = smul.addr %s2629, 2
          %s2634 = sadd.s32 %s29, %s2633
          %s2635 = smul.addr %s28, 32
          %s2636 = sadd.s32 %s2634, %s2635
          %s2637 = smul.addr %s2636, 128
          %s2638 = scalar_lea.hbm %s9, %s2637
          %s2639 = sshll.u32 %s2625, 4
          %s2640 = int_to_ptr.vmem [resolvable:$true] %s2639
          %2645 = dma.vmem_to_hbm [thread:$0]  %s2640, 2048, %s2638, %s2622, 128, 128, 8
        $region60: #{unet_residual_block.5} parent=55 // pred_fallthru
          _
      $region56: #{unet_residual_block.5} parent=5 // pred_fallthru
        _
      %p2646 = scmp.le.s32.totalorder 2, %s18
      // Predicated region
      $region61: #{unet_residual_block.5} parent=5 // pred_check
        %p2647 = pneg %p2646
      $region62: #{unet_residual_block.5} parent=5 // pred_check_branch
        %2649 = sbr.rel (%p2647) target = $region64
      $region63: #{unet_residual_block.5} parent=5 // pred_region
        %s2650 = ssub.s32 %s18, 2
        // Predicated region
        $region65: #{unet_residual_block.5} parent=63 // pred_check
          %p2651 = pneg %p328
        $region66: #{unet_residual_block.5} parent=63 // pred_check_branch
          %2653 = sbr.rel (%p2651) target = $region68
        $region67: #{unet_residual_block.5} parent=63 // pred_region
          %s2654 = sand.u32 %s313, 1
          %s2655 = scalar_lea.sflag [#allocation3], %s2654
          %s2656 = sand.u32 %s313, 1
          %s2657 = smul.addr %s2656, 128
          %s2658 = scalar_lea.vmem [#allocation2], %s2657
          %2659 = dma.done %s2655, 2048
        $region68: #{unet_residual_block.5} parent=63 // pred_fallthru
          _
      $region64: #{unet_residual_block.5} parent=5 // pred_fallthru
        _
    $region6: #{unet_residual_block.5} parent=1 // loop_footer
      %s22 = sadd.s32 1, %s18
    $region7: #{unet_residual_block.5} parent=1 // loop_footer_branch
      %17 = sbr.rel target = $region3
    $region8: #{unet_residual_block.5} parent=1 // loop_exit
      _
    %2660 = vsyncpa [#allocation3], 1
    %s2661 = scalar_lea.sflag [#allocation3], 1
    %2662 = vsyncpa %s2661, 1

</llo_original>
